<compile_context>
chip_gen: v7x
topology: tpu7x:2x2x1
jax: 0.10.0
libtpu: 0.0.40
codegen_flags: <defaults>
</compile_context>

<pallas_src>
import math
import functools

import jax
import jax.numpy as jnp
from jax import lax
from jax.experimental import pallas as pl
from jax.experimental.pallas import tpu as pltpu


# ----------------------------------------------------------------------------
# Fused Pallas kernel (4 encoder layers + mean pool + FC in one call)
# ----------------------------------------------------------------------------

def _fused_transformer_kernel(x_ref, wqkv_ref, bqkv_ref, wo_ref, small_ref,
                              w1_ref, b1_ref, w2_ref, mask_ref, pool_ref,
                              fcw_ref, fcb_ref, o_ref, act_ref,
                              *, B, S, D, H, eps):
    """One grid step = one post-norm encoder layer on the resident (B*S, D) slab.

    On the last grid step the sequence mean-pool and the final Linear are fused
    in as well and written to o_ref.
    """
    l = pl.program_id(0)
    n_layers = pl.num_programs(0)
    N = B * S
    hd = D // H
    scale = 1.0 / math.sqrt(hd)

    # Load the input activation once; afterwards it lives in VMEM scratch.
    @pl.when(l == 0)
    def _():
        act_ref[...] = x_ref[...]

    x = act_ref[...]                                               # (N, D) f32
    x_bf = x.astype(jnp.bfloat16)

    # ---- QKV projection: one lane-dense bf16 matmul --------------------------
    qkv = jnp.dot(x_bf, wqkv_ref[...],
                  preferred_element_type=jnp.float32) + bqkv_ref[...]   # (N, 3D) f32

    mask = mask_ref[...]                                           # (N, N) additive bias
    wo_t = wo_ref[...]                                             # (D, D) bf16 (= Wo.T)

    # ---- per-head attention (static unrolled, H=4) ----------------------------
    # Head-sum fused into the output projection via accumulation.
    attn = jnp.zeros((N, D), jnp.float32)
    for h in range(H):
        lo = h * hd
        hi = lo + hd
        qh = qkv[:, lo:hi].astype(jnp.bfloat16)                    # (N, hd)
        kh = qkv[:, D + lo:D + hi].astype(jnp.bfloat16)            # (N, hd)
        vh = qkv[:, 2 * D + lo:2 * D + hi].astype(jnp.bfloat16)    # (N, hd)
        s = lax.dot_general(qh, kh, (((1,), (1,)), ((), ())),
                            preferred_element_type=jnp.float32) * scale + mask
        s = s - jnp.max(s, axis=-1, keepdims=True)
        p = jnp.exp(s)
        p = p / jnp.sum(p, axis=-1, keepdims=True)                 # f32 softmax
        o = jnp.dot(p.astype(jnp.bfloat16), vh,
                    preferred_element_type=jnp.float32)            # (N, hd)
        attn = attn + jnp.dot(o.astype(jnp.bfloat16), wo_t[lo:hi, :],
                              preferred_element_type=jnp.float32)  # (N, D)

    small = small_ref[...]                                         # (6, D) f32
    bo, ln1w, ln1b = small[0:1, :], small[1:2, :], small[2:3, :]
    ln2w, ln2b, b2 = small[3:4, :], small[4:5, :], small[5:6, :]

    # ---- residual + LayerNorm1 (post-norm) ------------------------------------
    x1 = x + attn + bo
    mu1 = jnp.mean(x1, axis=-1, keepdims=True)
    var1 = jnp.mean((x1 - mu1) ** 2, axis=-1, keepdims=True)
    x1n = (x1 - mu1) * lax.rsqrt(var1 + eps) * ln1w + ln1b

    # ---- feed-forward (relu) + residual + LayerNorm2 ---------------------------
    h1 = jnp.dot(x1n.astype(jnp.bfloat16), w1_ref[...],
                 preferred_element_type=jnp.float32) + b1_ref[...]
    h1 = jnp.maximum(h1, 0.0)
    h2 = jnp.dot(h1.astype(jnp.bfloat16), w2_ref[...],
                 preferred_element_type=jnp.float32) + b2
    x2 = x1n + h2
    mu2 = jnp.mean(x2, axis=-1, keepdims=True)
    var2 = jnp.mean((x2 - mu2) ** 2, axis=-1, keepdims=True)
    out = (x2 - mu2) * lax.rsqrt(var2 + eps) * ln2w + ln2b

    act_ref[...] = out

    # ---- last layer: mean over the sequence + final Linear ---------------------
    @pl.when(l == n_layers - 1)
    def _():
        # Pool matrix precomputed on host; final FC kept f32 (negligible FLOPs,
        # protects final-output accuracy).
        pooled = jnp.dot(pool_ref[...], out,
                         preferred_element_type=jnp.float32)       # (B, D)
        o_ref[...] = jnp.dot(pooled, fcw_ref[...],
                             preferred_element_type=jnp.float32) + fcb_ref[...]


# ----------------------------------------------------------------------------
# Wrapper
# ----------------------------------------------------------------------------

def transformer_model(x, params, *, H, eps=1e-5):
    """x: (B, S, D) float32 -> (B, num_classes) float32."""
    B, S, D = x.shape
    N = B * S
    L = params["wqkv"].shape[0]
    DFF = params["w1"].shape[-1]
    C = params["fc_w"].shape[1]

    # Block-diagonal attention bias (tokens attend only within their own
    # sequence) and the mean-pool matrix, built once on the host.
    seq_id = jnp.arange(N, dtype=jnp.int32) // S
    mask = jnp.where(seq_id[:, None] == seq_id[None, :],
                     jnp.float32(0.0), jnp.float32(-1e30))          # (N, N)
    pool = (jnp.arange(B, dtype=jnp.int32)[:, None] == seq_id[None, :]
            ).astype(jnp.float32) / jnp.float32(S)                  # (B, N)

    kernel = functools.partial(_fused_transformer_kernel,
                               B=B, S=S, D=D, H=H, eps=eps)
    grid_spec = pltpu.PrefetchScalarGridSpec(
        num_scalar_prefetch=0,
        grid=(L,),
        in_specs=[
            pl.BlockSpec((N, D), lambda l: (0, 0)),                  # x (resident)
            pl.BlockSpec((None, D, 3 * D), lambda l: (l, 0, 0)),     # wqkv  bf16
            pl.BlockSpec((None, 1, 3 * D), lambda l: (l, 0, 0)),     # bqkv  f32
            pl.BlockSpec((None, D, D), lambda l: (l, 0, 0)),         # wo.T  bf16
            pl.BlockSpec((None, 6, D), lambda l: (l, 0, 0)),         # packed small params
            pl.BlockSpec((None, D, DFF), lambda l: (l, 0, 0)),       # w1    bf16
            pl.BlockSpec((None, 1, DFF), lambda l: (l, 0, 0)),       # b1    f32
            pl.BlockSpec((None, DFF, D), lambda l: (l, 0, 0)),       # w2    bf16
            pl.BlockSpec((N, N), lambda l: (0, 0)),                  # attention mask
            pl.BlockSpec((B, N), lambda l: (0, 0)),                  # pooling matrix
            pl.BlockSpec((D, C), lambda l: (0, 0)),                  # fc_w
            pl.BlockSpec((1, C), lambda l: (0, 0)),                  # fc_b
        ],
        out_specs=pl.BlockSpec((B, C), lambda l: (0, 0)),            # resident output
        scratch_shapes=[pltpu.VMEM((N, D), jnp.float32)],            # persistent activation
    )
    return pl.pallas_call(
        kernel,
        out_shape=jax.ShapeDtypeStruct((B, C), jnp.float32),
        grid_spec=grid_spec,
        compiler_params=pltpu.CompilerParams(dimension_semantics=("arbitrary",)),
    )(x.reshape(N, D), params["wqkv"], params["bqkv"], params["wo"],
      params["small"], params["w1"], params["b1"], params["w2"],
      mask, pool, params["fc_w"], params["fc_b"])


# ----------------------------------------------------------------------------
# Deterministic parameter construction (synthetic, matches PyTorch shapes)
# ----------------------------------------------------------------------------

def init_params(key, D, DFF, C, H, num_layers):
    wqkv_l, bqkv_l, wo_l, small_l, w1_l, b1_l, w2_l = [], [], [], [], [], [], []
    raw_layers = []
    for _ in range(num_layers):
        key, *ks = jax.random.split(key, 9)
        wqkv = 0.05 * jax.random.normal(ks[0], (3 * D, D), jnp.float32)   # in_proj_weight
        bqkv = 0.05 * jax.random.normal(ks[1], (3 * D,), jnp.float32)     # in_proj_bias
        wo   = 0.05 * jax.random.normal(ks[2], (D, D), jnp.float32)       # out_proj.weight
        bo   = 0.05 * jax.random.normal(ks[3], (D,), jnp.float32)         # out_proj.bias
        w1   = 0.05 * jax.random.normal(ks[4], (DFF, D), jnp.float32)     # linear1.weight
        b1   = 0.05 * jax.random.normal(ks[5], (DFF,), jnp.float32)
        w2   = 0.05 * jax.random.normal(ks[6], (D, DFF), jnp.float32)     # linear2.weight
        b2   = 0.05 * jax.random.normal(ks[7], (D,), jnp.float32)
        ln1w = jnp.ones((D,), jnp.float32); ln1b = jnp.zeros((D,), jnp.float32)
        ln2w = jnp.ones((D,), jnp.float32); ln2b = jnp.zeros((D,), jnp.float32)

        # bf16 weight storage (halves weight HBM traffic; MXU runs bf16xbf16).
        # The reference uses the same bf16-rounded weight values so the check
        # isolates the activation-cast rounding only.
        wqkv_bf = wqkv.astype(jnp.bfloat16)
        wo_bf   = wo.astype(jnp.bfloat16)
        w1_bf   = w1.astype(jnp.bfloat16)
        w2_bf   = w2.astype(jnp.bfloat16)

        raw_layers.append((wqkv_bf.astype(jnp.float32), bqkv,
                           wo_bf.astype(jnp.float32), bo,
                           ln1w, ln1b, ln2w, ln2b,
                           w1_bf.astype(jnp.float32), b1,
                           w2_bf.astype(jnp.float32), b2))

        # Kernel layouts (y = x @ W.T layouts pre-transposed on the host).
        wqkv_l.append(wqkv_bf.T)                                   # (D, 3D)  bf16
        bqkv_l.append(bqkv[None, :])                               # (1, 3D)  f32
        wo_l.append(wo_bf.T)                                       # (D, D)   bf16 (Wo.T)
        small_l.append(jnp.stack([bo, ln1w, ln1b, ln2w, ln2b, b2], axis=0))  # (6, D)
        w1_l.append(w1_bf.T)                                       # (D, DFF) bf16
        b1_l.append(b1[None, :])                                   # (1, DFF) f32
        w2_l.append(w2_bf.T)                                       # (DFF, D) bf16

    key, k1, k2 = jax.random.split(key, 3)
    fc_w = 0.05 * jax.random.normal(k1, (C, D), jnp.float32)
    fc_b = 0.05 * jax.random.normal(k2, (C,), jnp.float32)

    params = {
        "wqkv": jnp.stack(wqkv_l),    # (L, D, 3D)  bf16
        "bqkv": jnp.stack(bqkv_l),    # (L, 1, 3D)  f32
        "wo":   jnp.stack(wo_l),      # (L, D, D)   bf16
        "small": jnp.stack(small_l),  # (L, 6, D)   f32
        "w1":   jnp.stack(w1_l),      # (L, D, DFF) bf16
        "b1":   jnp.stack(b1_l),      # (L, 1, DFF) f32
        "w2":   jnp.stack(w2_l),      # (L, DFF, D) bf16
        "fc_w": fc_w.T,               # (D, C)      f32
        "fc_b": fc_b[None, :],        # (1, C)      f32
    }
    ref_params = {"layers": raw_layers, "fc": (fc_w, fc_b)}
    return params, ref_params


# ----------------------------------------------------------------------------
# Pure-JAX reference (PyTorch-style math in f32, for numerical verification)
# ----------------------------------------------------------------------------

def _ref_layernorm(x, w, b, eps):
    mu = jnp.mean(x, axis=-1, keepdims=True)
    var = jnp.mean((x - mu) ** 2, axis=-1, keepdims=True)
    return (x - mu) * lax.rsqrt(var + eps) * w + b


def reference_model(x, ref_params, *, H, eps=1e-5):
    B, S, D = x.shape
    hd = D // H
    h = x
    for (wqkv, bqkv, wo, bo, ln1w, ln1b, ln2w, ln2b,
         w1, b1, w2, b2) in ref_params["layers"]:
        qkv = h @ wqkv.T + bqkv
        q, k, v = jnp.split(qkv, 3, axis=-1)
        split = lambda t: t.reshape(B, S, H, hd).transpose(0, 2, 1, 3)
        qh, kh, vh = split(q), split(k), split(v)
        s = jnp.einsum('bhqd,bhkd->bhqk', qh, kh) / math.sqrt(hd)
        p = jax.nn.softmax(s, axis=-1)
        o = jnp.einsum('bhqk,bhkd->bhqd', p, vh).transpose(0, 2, 1, 3).reshape(B, S, D)
        attn = o @ wo.T + bo
        x1 = _ref_layernorm(h + attn, ln1w, ln1b, eps)
        ff = jax.nn.relu(x1 @ w1.T + b1) @ w2.T + b2
        h = _ref_layernorm(x1 + ff, ln2w, ln2b, eps)
    pooled = jnp.mean(h, axis=1)
    fc_w, fc_b = ref_params["fc"]
    return pooled @ fc_w.T + fc_b


# ----------------------------------------------------------------------------
# Main
# ----------------------------------------------------------------------------

if __name__ == "__main__":
    B, S = 2, 8                 # batch, sequence length
    D = 32                      # input_dim / d_model
    H = 4                       # nhead
    DFF = 2048                  # PyTorch default dim_feedforward
    C = 10                      # num_classes
    NUM_LAYERS = 4

    key = jax.random.PRNGKey(0)
    key, pkey, xkey = jax.random.split(key, 3)
    params, ref_params = init_params(pkey, D, DFF, C, H, NUM_LAYERS)
    x = jax.random.normal(xkey, (B, S, D), jnp.float32)

    out = jax.block_until_ready(transformer_model(x, params, H=H))
    ref = jax.block_until_ready(reference_model(x, ref_params, H=H))

    assert out.shape == (B, C), out.shape
    # Tolerance re-validated for bf16 mixed-precision matmuls (f32 reference):
    # observed error is a few 1e-3; 2e-2 leaves comfortable margin.
    max_diff = float(jnp.max(jnp.abs(out - ref)))
    assert jnp.allclose(out, ref, atol=2e-2, rtol=2e-2), \
        f"max abs diff = {max_diff}"

    print("KERNEL_OK")
</pallas_src>

<mosaic_0001>
module attributes {stable_mosaic.version = 11 : i64} {
  func.func @_fused_transformer_kernel(%arg0: i32, %arg1: memref<16x32xf32, #tpu.memory_space<vmem>>, %arg2: memref<1x32x96xbf16, #tpu.memory_space<vmem>>, %arg3: memref<1x1x96xf32, #tpu.memory_space<vmem>>, %arg4: memref<1x32x32xbf16, #tpu.memory_space<vmem>>, %arg5: memref<1x6x32xf32, #tpu.memory_space<vmem>>, %arg6: memref<1x32x2048xbf16, #tpu.memory_space<vmem>>, %arg7: memref<1x1x2048xf32, #tpu.memory_space<vmem>>, %arg8: memref<1x2048x32xbf16, #tpu.memory_space<vmem>>, %arg9: memref<16x16xf32, #tpu.memory_space<vmem>>, %arg10: memref<2x16xf32, #tpu.memory_space<vmem>>, %arg11: memref<32x10xf32, #tpu.memory_space<vmem>>, %arg12: memref<1x10xf32, #tpu.memory_space<vmem>>, %arg13: memref<2x10xf32, #tpu.memory_space<vmem>>, %arg14: memref<16x32xf32, #tpu.memory_space<vmem>>) attributes {dimension_semantics = [#tpu.dimension_semantics<arbitrary>], iteration_bounds = array<i64: 4>, scalar_prefetch = 0 : i64, scratch_operands = 1 : i64, tpu.core_type = #tpu.core_type<tc>, window_params = [{pipeline_mode = #tpu.pipeline_mode<synchronous>, transform_indices = @transform_0, window_bounds = array<i64: 16, 32>}, {transform_indices = @transform_1, window_bounds = array<i64: 1, 32, 96>}, {transform_indices = @transform_2, window_bounds = array<i64: 1, 1, 96>}, {transform_indices = @transform_3, window_bounds = array<i64: 1, 32, 32>}, {transform_indices = @transform_4, window_bounds = array<i64: 1, 6, 32>}, {transform_indices = @transform_5, window_bounds = array<i64: 1, 32, 2048>}, {transform_indices = @transform_6, window_bounds = array<i64: 1, 1, 2048>}, {transform_indices = @transform_7, window_bounds = array<i64: 1, 2048, 32>}, {pipeline_mode = #tpu.pipeline_mode<synchronous>, transform_indices = @transform_8, window_bounds = array<i64: 16, 16>}, {pipeline_mode = #tpu.pipeline_mode<synchronous>, transform_indices = @transform_9, window_bounds = array<i64: 2, 16>}, {pipeline_mode = #tpu.pipeline_mode<synchronous>, transform_indices = @transform_10, window_bounds = array<i64: 32, 10>}, {pipeline_mode = #tpu.pipeline_mode<synchronous>, transform_indices = @transform_11, window_bounds = array<i64: 1, 10>}, {pipeline_mode = #tpu.pipeline_mode<synchronous>, transform_indices = @transform_12, window_bounds = array<i64: 2, 10>}]} {
    %c0_i32 = arith.constant 0 : i32
    %0 = arith.cmpi eq, %arg0, %c0_i32 : i32
    %1 = arith.extui %0 : i1 to i32
    %c0_i32_0 = arith.constant 0 : i32
    %2 = arith.cmpi ne, %1, %c0_i32_0 : i32
    scf.if %2 {
      %c0_66 = arith.constant 0 : index
      %c0_67 = arith.constant 0 : index
      %192 = vector.load %arg1[%c0_66, %c0_67] : memref<16x32xf32, #tpu.memory_space<vmem>>, vector<16x32xf32>
      %c0_68 = arith.constant 0 : index
      %c0_69 = arith.constant 0 : index
      %193 = vector.load %arg14[%c0_68, %c0_69] : memref<16x32xf32, #tpu.memory_space<vmem>>, vector<16x32xf32>
      tpu.vector_store %arg14[%c0_68, %c0_69], %192 {strides = array<i32>} : memref<16x32xf32, #tpu.memory_space<vmem>>, vector<16x32xf32>,
    } else {
    }
    %c0 = arith.constant 0 : index
    %c0_1 = arith.constant 0 : index
    %3 = vector.load %arg14[%c0, %c0_1] : memref<16x32xf32, #tpu.memory_space<vmem>>, vector<16x32xf32>
    %4 = arith.truncf %3 : vector<16x32xf32> to vector<16x32xbf16>
    %c0_2 = arith.constant 0 : index
    %c0_3 = arith.constant 0 : index
    %c0_4 = arith.constant 0 : index
    %5 = vector.load %arg2[%c0_2, %c0_3, %c0_4] : memref<1x32x96xbf16, #tpu.memory_space<vmem>>, vector<1x32x96xbf16>
    %6 = vector.shape_cast %5 : vector<1x32x96xbf16> to vector<32x96xbf16>
    %cst = arith.constant dense<0.000000e+00> : vector<16x96xf32>
    %7 = tpu.matmul %4, %6, %cst {dimension_numbers = #tpu.dot_dimension_numbers<[1], [0], [0], [1], [0, 0, 1, 1], [], []>} : vector<16x32xbf16>, vector<32x96xbf16>, vector<16x96xf32> -> vector<16x96xf32>
    %c0_5 = arith.constant 0 : index
    %c0_6 = arith.constant 0 : index
    %c0_7 = arith.constant 0 : index
    %8 = vector.load %arg3[%c0_5, %c0_6, %c0_7] : memref<1x1x96xf32, #tpu.memory_space<vmem>>, vector<1x1x96xf32>
    %9 = vector.shape_cast %8 : vector<1x1x96xf32> to vector<1x96xf32>
    %10 = vector.broadcast %9 : vector<1x96xf32> to vector<16x96xf32>
    %11 = arith.addf %7, %10 : vector<16x96xf32>
    %c0_8 = arith.constant 0 : index
    %c0_9 = arith.constant 0 : index
    %12 = vector.load %arg9[%c0_8, %c0_9] : memref<16x16xf32, #tpu.memory_space<vmem>>, vector<16x16xf32>
    %c0_10 = arith.constant 0 : index
    %c0_11 = arith.constant 0 : index
    %c0_12 = arith.constant 0 : index
    %13 = vector.load %arg4[%c0_10, %c0_11, %c0_12] : memref<1x32x32xbf16, #tpu.memory_space<vmem>>, vector<1x32x32xbf16>
    %14 = vector.shape_cast %13 : vector<1x32x32xbf16> to vector<32x32xbf16>
    %cst_13 = arith.constant 0.000000e+00 : f32
    %15 = vector.broadcast %cst_13 : f32 to vector<16x32xf32>
    %16 = vector.extract_strided_slice %11 {offsets = [0, 0], sizes = [16, 8], strides = [1, 1]} : vector<16x96xf32> to vector<16x8xf32>
    %17 = arith.truncf %16 : vector<16x8xf32> to vector<16x8xbf16>
    %18 = vector.extract_strided_slice %11 {offsets = [0, 32], sizes = [16, 8], strides = [1, 1]} : vector<16x96xf32> to vector<16x8xf32>
    %19 = arith.truncf %18 : vector<16x8xf32> to vector<16x8xbf16>
    %20 = vector.extract_strided_slice %11 {offsets = [0, 64], sizes = [16, 8], strides = [1, 1]} : vector<16x96xf32> to vector<16x8xf32>
    %21 = arith.truncf %20 : vector<16x8xf32> to vector<16x8xbf16>
    %cst_14 = arith.constant dense<0.000000e+00> : vector<16x16xf32>
    %22 = tpu.matmul %17, %19, %cst_14 {dimension_numbers = #tpu.dot_dimension_numbers<[1], [1], [0], [0], [0, 0, 1, 0], [], []>} : vector<16x8xbf16>, vector<16x8xbf16>, vector<16x16xf32> -> vector<16x16xf32>
    %cst_15 = arith.constant 0.353553385 : f32
    %23 = vector.broadcast %cst_15 : f32 to vector<16x16xf32>
    %24 = arith.mulf %22, %23 : vector<16x16xf32>
    %25 = arith.addf %24, %12 : vector<16x16xf32>
    %cst_16 = arith.constant dense<0xFF800000> : vector<16xf32>
    %26 = vector.multi_reduction <maximumf>, %25, %cst_16 [1] : vector<16x16xf32> to vector<16xf32>
    %27 = vector.shape_cast %26 : vector<16xf32> to vector<16x1xf32>
    %28 = vector.broadcast %27 : vector<16x1xf32> to vector<16x16xf32>
    %29 = arith.subf %25, %28 : vector<16x16xf32>
    %30 = math.exp %29 : vector<16x16xf32>
    %cst_17 = arith.constant dense<0.000000e+00> : vector<16xf32>
    %31 = vector.multi_reduction <add>, %30, %cst_17 [1] : vector<16x16xf32> to vector<16xf32>
    %32 = vector.shape_cast %31 : vector<16xf32> to vector<16x1xf32>
    %33 = vector.broadcast %32 : vector<16x1xf32> to vector<16x16xf32>
    %34 = arith.divf %30, %33 : vector<16x16xf32>
    %35 = arith.truncf %34 : vector<16x16xf32> to vector<16x16xbf16>
    %cst_18 = arith.constant dense<0.000000e+00> : vector<16x8xf32>
    %36 = tpu.matmul %35, %21, %cst_18 {dimension_numbers = #tpu.dot_dimension_numbers<[1], [0], [0], [1], [0, 0, 1, 1], [], []>} : vector<16x16xbf16>, vector<16x8xbf16>, vector<16x8xf32> -> vector<16x8xf32>
    %37 = arith.truncf %36 : vector<16x8xf32> to vector<16x8xbf16>
    %38 = vector.extract_strided_slice %14 {offsets = [0, 0], sizes = [8, 32], strides = [1, 1]} : vector<32x32xbf16> to vector<8x32xbf16>
    %cst_19 = arith.constant dense<0.000000e+00> : vector<16x32xf32>
    %39 = tpu.matmul %37, %38, %cst_19 {dimension_numbers = #tpu.dot_dimension_numbers<[1], [0], [0], [1], [0, 0, 1, 1], [], []>} : vector<16x8xbf16>, vector<8x32xbf16>, vector<16x32xf32> -> vector<16x32xf32>
    %40 = arith.addf %15, %39 : vector<16x32xf32>
    %41 = vector.extract_strided_slice %11 {offsets = [0, 8], sizes = [16, 8], strides = [1, 1]} : vector<16x96xf32> to vector<16x8xf32>
    %42 = arith.truncf %41 : vector<16x8xf32> to vector<16x8xbf16>
    %43 = vector.extract_strided_slice %11 {offsets = [0, 40], sizes = [16, 8], strides = [1, 1]} : vector<16x96xf32> to vector<16x8xf32>
    %44 = arith.truncf %43 : vector<16x8xf32> to vector<16x8xbf16>
    %45 = vector.extract_strided_slice %11 {offsets = [0, 72], sizes = [16, 8], strides = [1, 1]} : vector<16x96xf32> to vector<16x8xf32>
    %46 = arith.truncf %45 : vector<16x8xf32> to vector<16x8xbf16>
    %cst_20 = arith.constant dense<0.000000e+00> : vector<16x16xf32>
    %47 = tpu.matmul %42, %44, %cst_20 {dimension_numbers = #tpu.dot_dimension_numbers<[1], [1], [0], [0], [0, 0, 1, 0], [], []>} : vector<16x8xbf16>, vector<16x8xbf16>, vector<16x16xf32> -> vector<16x16xf32>
    %cst_21 = arith.constant 0.353553385 : f32
    %48 = vector.broadcast %cst_21 : f32 to vector<16x16xf32>
    %49 = arith.mulf %47, %48 : vector<16x16xf32>
    %50 = arith.addf %49, %12 : vector<16x16xf32>
    %cst_22 = arith.constant dense<0xFF800000> : vector<16xf32>
    %51 = vector.multi_reduction <maximumf>, %50, %cst_22 [1] : vector<16x16xf32> to vector<16xf32>
    %52 = vector.shape_cast %51 : vector<16xf32> to vector<16x1xf32>
    %53 = vector.broadcast %52 : vector<16x1xf32> to vector<16x16xf32>
    %54 = arith.subf %50, %53 : vector<16x16xf32>
    %55 = math.exp %54 : vector<16x16xf32>
    %cst_23 = arith.constant dense<0.000000e+00> : vector<16xf32>
    %56 = vector.multi_reduction <add>, %55, %cst_23 [1] : vector<16x16xf32> to vector<16xf32>
    %57 = vector.shape_cast %56 : vector<16xf32> to vector<16x1xf32>
    %58 = vector.broadcast %57 : vector<16x1xf32> to vector<16x16xf32>
    %59 = arith.divf %55, %58 : vector<16x16xf32>
    %60 = arith.truncf %59 : vector<16x16xf32> to vector<16x16xbf16>
    %cst_24 = arith.constant dense<0.000000e+00> : vector<16x8xf32>
    %61 = tpu.matmul %60, %46, %cst_24 {dimension_numbers = #tpu.dot_dimension_numbers<[1], [0], [0], [1], [0, 0, 1, 1], [], []>} : vector<16x16xbf16>, vector<16x8xbf16>, vector<16x8xf32> -> vector<16x8xf32>
    %62 = arith.truncf %61 : vector<16x8xf32> to vector<16x8xbf16>
    %63 = vector.extract_strided_slice %14 {offsets = [8, 0], sizes = [8, 32], strides = [1, 1]} : vector<32x32xbf16> to vector<8x32xbf16>
    %cst_25 = arith.constant dense<0.000000e+00> : vector<16x32xf32>
    %64 = tpu.matmul %62, %63, %cst_25 {dimension_numbers = #tpu.dot_dimension_numbers<[1], [0], [0], [1], [0, 0, 1, 1], [], []>} : vector<16x8xbf16>, vector<8x32xbf16>, vector<16x32xf32> -> vector<16x32xf32>
    %65 = arith.addf %40, %64 : vector<16x32xf32>
    %66 = vector.extract_strided_slice %11 {offsets = [0, 16], sizes = [16, 8], strides = [1, 1]} : vector<16x96xf32> to vector<16x8xf32>
    %67 = arith.truncf %66 : vector<16x8xf32> to vector<16x8xbf16>
    %68 = vector.extract_strided_slice %11 {offsets = [0, 48], sizes = [16, 8], strides = [1, 1]} : vector<16x96xf32> to vector<16x8xf32>
    %69 = arith.truncf %68 : vector<16x8xf32> to vector<16x8xbf16>
    %70 = vector.extract_strided_slice %11 {offsets = [0, 80], sizes = [16, 8], strides = [1, 1]} : vector<16x96xf32> to vector<16x8xf32>
    %71 = arith.truncf %70 : vector<16x8xf32> to vector<16x8xbf16>
    %cst_26 = arith.constant dense<0.000000e+00> : vector<16x16xf32>
    %72 = tpu.matmul %67, %69, %cst_26 {dimension_numbers = #tpu.dot_dimension_numbers<[1], [1], [0], [0], [0, 0, 1, 0], [], []>} : vector<16x8xbf16>, vector<16x8xbf16>, vector<16x16xf32> -> vector<16x16xf32>
    %cst_27 = arith.constant 0.353553385 : f32
    %73 = vector.broadcast %cst_27 : f32 to vector<16x16xf32>
    %74 = arith.mulf %72, %73 : vector<16x16xf32>
    %75 = arith.addf %74, %12 : vector<16x16xf32>
    %cst_28 = arith.constant dense<0xFF800000> : vector<16xf32>
    %76 = vector.multi_reduction <maximumf>, %75, %cst_28 [1] : vector<16x16xf32> to vector<16xf32>
    %77 = vector.shape_cast %76 : vector<16xf32> to vector<16x1xf32>
    %78 = vector.broadcast %77 : vector<16x1xf32> to vector<16x16xf32>
    %79 = arith.subf %75, %78 : vector<16x16xf32>
    %80 = math.exp %79 : vector<16x16xf32>
    %cst_29 = arith.constant dense<0.000000e+00> : vector<16xf32>
    %81 = vector.multi_reduction <add>, %80, %cst_29 [1] : vector<16x16xf32> to vector<16xf32>
    %82 = vector.shape_cast %81 : vector<16xf32> to vector<16x1xf32>
    %83 = vector.broadcast %82 : vector<16x1xf32> to vector<16x16xf32>
    %84 = arith.divf %80, %83 : vector<16x16xf32>
    %85 = arith.truncf %84 : vector<16x16xf32> to vector<16x16xbf16>
    %cst_30 = arith.constant dense<0.000000e+00> : vector<16x8xf32>
    %86 = tpu.matmul %85, %71, %cst_30 {dimension_numbers = #tpu.dot_dimension_numbers<[1], [0], [0], [1], [0, 0, 1, 1], [], []>} : vector<16x16xbf16>, vector<16x8xbf16>, vector<16x8xf32> -> vector<16x8xf32>
    %87 = arith.truncf %86 : vector<16x8xf32> to vector<16x8xbf16>
    %88 = vector.extract_strided_slice %14 {offsets = [16, 0], sizes = [8, 32], strides = [1, 1]} : vector<32x32xbf16> to vector<8x32xbf16>
    %cst_31 = arith.constant dense<0.000000e+00> : vector<16x32xf32>
    %89 = tpu.matmul %87, %88, %cst_31 {dimension_numbers = #tpu.dot_dimension_numbers<[1], [0], [0], [1], [0, 0, 1, 1], [], []>} : vector<16x8xbf16>, vector<8x32xbf16>, vector<16x32xf32> -> vector<16x32xf32>
    %90 = arith.addf %65, %89 : vector<16x32xf32>
    %91 = vector.extract_strided_slice %11 {offsets = [0, 24], sizes = [16, 8], strides = [1, 1]} : vector<16x96xf32> to vector<16x8xf32>
    %92 = arith.truncf %91 : vector<16x8xf32> to vector<16x8xbf16>
    %93 = vector.extract_strided_slice %11 {offsets = [0, 56], sizes = [16, 8], strides = [1, 1]} : vector<16x96xf32> to vector<16x8xf32>
    %94 = arith.truncf %93 : vector<16x8xf32> to vector<16x8xbf16>
    %95 = vector.extract_strided_slice %11 {offsets = [0, 88], sizes = [16, 8], strides = [1, 1]} : vector<16x96xf32> to vector<16x8xf32>
    %96 = arith.truncf %95 : vector<16x8xf32> to vector<16x8xbf16>
    %cst_32 = arith.constant dense<0.000000e+00> : vector<16x16xf32>
    %97 = tpu.matmul %92, %94, %cst_32 {dimension_numbers = #tpu.dot_dimension_numbers<[1], [1], [0], [0], [0, 0, 1, 0], [], []>} : vector<16x8xbf16>, vector<16x8xbf16>, vector<16x16xf32> -> vector<16x16xf32>
    %cst_33 = arith.constant 0.353553385 : f32
    %98 = vector.broadcast %cst_33 : f32 to vector<16x16xf32>
    %99 = arith.mulf %97, %98 : vector<16x16xf32>
    %100 = arith.addf %99, %12 : vector<16x16xf32>
    %cst_34 = arith.constant dense<0xFF800000> : vector<16xf32>
    %101 = vector.multi_reduction <maximumf>, %100, %cst_34 [1] : vector<16x16xf32> to vector<16xf32>
    %102 = vector.shape_cast %101 : vector<16xf32> to vector<16x1xf32>
    %103 = vector.broadcast %102 : vector<16x1xf32> to vector<16x16xf32>
    %104 = arith.subf %100, %103 : vector<16x16xf32>
    %105 = math.exp %104 : vector<16x16xf32>
    %cst_35 = arith.constant dense<0.000000e+00> : vector<16xf32>
    %106 = vector.multi_reduction <add>, %105, %cst_35 [1] : vector<16x16xf32> to vector<16xf32>
    %107 = vector.shape_cast %106 : vector<16xf32> to vector<16x1xf32>
    %108 = vector.broadcast %107 : vector<16x1xf32> to vector<16x16xf32>
    %109 = arith.divf %105, %108 : vector<16x16xf32>
    %110 = arith.truncf %109 : vector<16x16xf32> to vector<16x16xbf16>
    %cst_36 = arith.constant dense<0.000000e+00> : vector<16x8xf32>
    %111 = tpu.matmul %110, %96, %cst_36 {dimension_numbers = #tpu.dot_dimension_numbers<[1], [0], [0], [1], [0, 0, 1, 1], [], []>} : vector<16x16xbf16>, vector<16x8xbf16>, vector<16x8xf32> -> vector<16x8xf32>
    %112 = arith.truncf %111 : vector<16x8xf32> to vector<16x8xbf16>
    %113 = vector.extract_strided_slice %14 {offsets = [24, 0], sizes = [8, 32], strides = [1, 1]} : vector<32x32xbf16> to vector<8x32xbf16>
    %cst_37 = arith.constant dense<0.000000e+00> : vector<16x32xf32>
    %114 = tpu.matmul %112, %113, %cst_37 {dimension_numbers = #tpu.dot_dimension_numbers<[1], [0], [0], [1], [0, 0, 1, 1], [], []>} : vector<16x8xbf16>, vector<8x32xbf16>, vector<16x32xf32> -> vector<16x32xf32>
    %115 = arith.addf %90, %114 : vector<16x32xf32>
    %c0_38 = arith.constant 0 : index
    %c0_39 = arith.constant 0 : index
    %c0_40 = arith.constant 0 : index
    %116 = vector.load %arg5[%c0_38, %c0_39, %c0_40] : memref<1x6x32xf32, #tpu.memory_space<vmem>>, vector<1x6x32xf32>
    %117 = vector.shape_cast %116 : vector<1x6x32xf32> to vector<6x32xf32>
    %118 = vector.extract_strided_slice %117 {offsets = [0, 0], sizes = [1, 32], strides = [1, 1]} : vector<6x32xf32> to vector<1x32xf32>
    %119 = vector.extract_strided_slice %117 {offsets = [1, 0], sizes = [1, 32], strides = [1, 1]} : vector<6x32xf32> to vector<1x32xf32>
    %120 = vector.extract_strided_slice %117 {offsets = [2, 0], sizes = [1, 32], strides = [1, 1]} : vector<6x32xf32> to vector<1x32xf32>
    %121 = vector.extract_strided_slice %117 {offsets = [3, 0], sizes = [1, 32], strides = [1, 1]} : vector<6x32xf32> to vector<1x32xf32>
    %122 = vector.extract_strided_slice %117 {offsets = [4, 0], sizes = [1, 32], strides = [1, 1]} : vector<6x32xf32> to vector<1x32xf32>
    %123 = vector.extract_strided_slice %117 {offsets = [5, 0], sizes = [1, 32], strides = [1, 1]} : vector<6x32xf32> to vector<1x32xf32>
    %124 = arith.addf %3, %115 : vector<16x32xf32>
    %125 = vector.broadcast %118 : vector<1x32xf32> to vector<16x32xf32>
    %126 = arith.addf %124, %125 : vector<16x32xf32>
    %cst_41 = arith.constant dense<0.000000e+00> : vector<16xf32>
    %127 = vector.multi_reduction <add>, %126, %cst_41 [1] : vector<16x32xf32> to vector<16xf32>
    %128 = vector.shape_cast %127 : vector<16xf32> to vector<16x1xf32>
    %cst_42 = arith.constant 3.200000e+01 : f32
    %129 = vector.broadcast %cst_42 : f32 to vector<16x1xf32>
    %130 = arith.divf %128, %129 : vector<16x1xf32>
    %131 = vector.broadcast %130 : vector<16x1xf32> to vector<16x32xf32>
    %132 = arith.subf %126, %131 : vector<16x32xf32>
    %133 = arith.mulf %132, %132 : vector<16x32xf32>
    %cst_43 = arith.constant dense<0.000000e+00> : vector<16xf32>
    %134 = vector.multi_reduction <add>, %133, %cst_43 [1] : vector<16x32xf32> to vector<16xf32>
    %135 = vector.shape_cast %134 : vector<16xf32> to vector<16x1xf32>
    %cst_44 = arith.constant 3.200000e+01 : f32
    %136 = vector.broadcast %cst_44 : f32 to vector<16x1xf32>
    %137 = arith.divf %135, %136 : vector<16x1xf32>
    %138 = vector.broadcast %130 : vector<16x1xf32> to vector<16x32xf32>
    %139 = arith.subf %126, %138 : vector<16x32xf32>
    %cst_45 = arith.constant 9.99999974E-6 : f32
    %140 = vector.broadcast %cst_45 : f32 to vector<16x1xf32>
    %141 = arith.addf %137, %140 : vector<16x1xf32>
    %142 = math.rsqrt %141 : vector<16x1xf32>
    %143 = vector.broadcast %142 : vector<16x1xf32> to vector<16x32xf32>
    %144 = arith.mulf %139, %143 : vector<16x32xf32>
    %145 = vector.broadcast %119 : vector<1x32xf32> to vector<16x32xf32>
    %146 = arith.mulf %144, %145 : vector<16x32xf32>
    %147 = vector.broadcast %120 : vector<1x32xf32> to vector<16x32xf32>
    %148 = arith.addf %146, %147 : vector<16x32xf32>
    %149 = arith.truncf %148 : vector<16x32xf32> to vector<16x32xbf16>
    %c0_46 = arith.constant 0 : index
    %c0_47 = arith.constant 0 : index
    %c0_48 = arith.constant 0 : index
    %150 = vector.load %arg6[%c0_46, %c0_47, %c0_48] : memref<1x32x2048xbf16, #tpu.memory_space<vmem>>, vector<1x32x2048xbf16>
    %151 = vector.shape_cast %150 : vector<1x32x2048xbf16> to vector<32x2048xbf16>
    %cst_49 = arith.constant dense<0.000000e+00> : vector<16x2048xf32>
    %152 = tpu.matmul %149, %151, %cst_49 {dimension_numbers = #tpu.dot_dimension_numbers<[1], [0], [0], [1], [0, 0, 1, 1], [], []>} : vector<16x32xbf16>, vector<32x2048xbf16>, vector<16x2048xf32> -> vector<16x2048xf32>
    %c0_50 = arith.constant 0 : index
    %c0_51 = arith.constant 0 : index
    %c0_52 = arith.constant 0 : index
    %153 = vector.load %arg7[%c0_50, %c0_51, %c0_52] : memref<1x1x2048xf32, #tpu.memory_space<vmem>>, vector<1x1x2048xf32>
    %154 = vector.shape_cast %153 : vector<1x1x2048xf32> to vector<1x2048xf32>
    %155 = vector.broadcast %154 : vector<1x2048xf32> to vector<16x2048xf32>
    %156 = arith.addf %152, %155 : vector<16x2048xf32>
    %cst_53 = arith.constant 0.000000e+00 : f32
    %157 = vector.broadcast %cst_53 : f32 to vector<16x2048xf32>
    %158 = arith.maximumf %156, %157 : vector<16x2048xf32>
    %159 = arith.truncf %158 : vector<16x2048xf32> to vector<16x2048xbf16>
    %c0_54 = arith.constant 0 : index
    %c0_55 = arith.constant 0 : index
    %c0_56 = arith.constant 0 : index
    %160 = vector.load %arg8[%c0_54, %c0_55, %c0_56] : memref<1x2048x32xbf16, #tpu.memory_space<vmem>>, vector<1x2048x32xbf16>
    %161 = vector.shape_cast %160 : vector<1x2048x32xbf16> to vector<2048x32xbf16>
    %cst_57 = arith.constant dense<0.000000e+00> : vector<16x32xf32>
    %162 = tpu.matmul %159, %161, %cst_57 {dimension_numbers = #tpu.dot_dimension_numbers<[1], [0], [0], [1], [0, 0, 1, 1], [], []>} : vector<16x2048xbf16>, vector<2048x32xbf16>, vector<16x32xf32> -> vector<16x32xf32>
    %163 = vector.broadcast %123 : vector<1x32xf32> to vector<16x32xf32>
    %164 = arith.addf %162, %163 : vector<16x32xf32>
    %165 = arith.addf %148, %164 : vector<16x32xf32>
    %cst_58 = arith.constant dense<0.000000e+00> : vector<16xf32>
    %166 = vector.multi_reduction <add>, %165, %cst_58 [1] : vector<16x32xf32> to vector<16xf32>
    %167 = vector.shape_cast %166 : vector<16xf32> to vector<16x1xf32>
    %cst_59 = arith.constant 3.200000e+01 : f32
    %168 = vector.broadcast %cst_59 : f32 to vector<16x1xf32>
    %169 = arith.divf %167, %168 : vector<16x1xf32>
    %170 = vector.broadcast %169 : vector<16x1xf32> to vector<16x32xf32>
    %171 = arith.subf %165, %170 : vector<16x32xf32>
    %172 = arith.mulf %171, %171 : vector<16x32xf32>
    %cst_60 = arith.constant dense<0.000000e+00> : vector<16xf32>
    %173 = vector.multi_reduction <add>, %172, %cst_60 [1] : vector<16x32xf32> to vector<16xf32>
    %174 = vector.shape_cast %173 : vector<16xf32> to vector<16x1xf32>
    %cst_61 = arith.constant 3.200000e+01 : f32
    %175 = vector.broadcast %cst_61 : f32 to vector<16x1xf32>
    %176 = arith.divf %174, %175 : vector<16x1xf32>
    %177 = vector.broadcast %169 : vector<16x1xf32> to vector<16x32xf32>
    %178 = arith.subf %165, %177 : vector<16x32xf32>
    %cst_62 = arith.constant 9.99999974E-6 : f32
    %179 = vector.broadcast %cst_62 : f32 to vector<16x1xf32>
    %180 = arith.addf %176, %179 : vector<16x1xf32>
    %181 = math.rsqrt %180 : vector<16x1xf32>
    %182 = vector.broadcast %181 : vector<16x1xf32> to vector<16x32xf32>
    %183 = arith.mulf %178, %182 : vector<16x32xf32>
    %184 = vector.broadcast %121 : vector<1x32xf32> to vector<16x32xf32>
    %185 = arith.mulf %183, %184 : vector<16x32xf32>
    %186 = vector.broadcast %122 : vector<1x32xf32> to vector<16x32xf32>
    %187 = arith.addf %185, %186 : vector<16x32xf32>
    %c0_63 = arith.constant 0 : index
    %c0_64 = arith.constant 0 : index
    %188 = vector.load %arg14[%c0_63, %c0_64] : memref<16x32xf32, #tpu.memory_space<vmem>>, vector<16x32xf32>
    tpu.vector_store %arg14[%c0_63, %c0_64], %187 {strides = array<i32>} : memref<16x32xf32, #tpu.memory_space<vmem>>, vector<16x32xf32>,
    %c3_i32 = arith.constant 3 : i32
    %189 = arith.cmpi eq, %arg0, %c3_i32 : i32
    %190 = arith.extui %189 : i1 to i32
    %c0_i32_65 = arith.constant 0 : i32
    %191 = arith.cmpi ne, %190, %c0_i32_65 : i32
    scf.if %191 {
      %c0_66 = arith.constant 0 : index
      %c0_67 = arith.constant 0 : index
      %192 = vector.load %arg10[%c0_66, %c0_67] : memref<2x16xf32, #tpu.memory_space<vmem>>, vector<2x16xf32>
      %cst_68 = arith.constant dense<0.000000e+00> : vector<2x32xf32>
      %193 = tpu.matmul %192, %187, %cst_68 {dimension_numbers = #tpu.dot_dimension_numbers<[1], [0], [0], [1], [0, 0, 1, 1], [], []>} : vector<2x16xf32>, vector<16x32xf32>, vector<2x32xf32> -> vector<2x32xf32>
      %c0_69 = arith.constant 0 : index
      %c0_70 = arith.constant 0 : index
      %194 = vector.load %arg11[%c0_69, %c0_70] : memref<32x10xf32, #tpu.memory_space<vmem>>, vector<32x10xf32>
      %cst_71 = arith.constant dense<0.000000e+00> : vector<2x10xf32>
      %195 = tpu.matmul %193, %194, %cst_71 {dimension_numbers = #tpu.dot_dimension_numbers<[1], [0], [0], [1], [0, 0, 1, 1], [], []>} : vector<2x32xf32>, vector<32x10xf32>, vector<2x10xf32> -> vector<2x10xf32>
      %c0_72 = arith.constant 0 : index
      %c0_73 = arith.constant 0 : index
      %196 = vector.load %arg12[%c0_72, %c0_73] : memref<1x10xf32, #tpu.memory_space<vmem>>, vector<1x10xf32>
      %197 = vector.broadcast %196 : vector<1x10xf32> to vector<2x10xf32>
      %198 = arith.addf %195, %197 : vector<2x10xf32>
      %c0_74 = arith.constant 0 : index
      %c0_75 = arith.constant 0 : index
      %199 = vector.load %arg13[%c0_74, %c0_75] : memref<2x10xf32, #tpu.memory_space<vmem>>, vector<2x10xf32>
      tpu.vector_store %arg13[%c0_74, %c0_75], %198 {strides = array<i32>} : memref<2x10xf32, #tpu.memory_space<vmem>>, vector<2x10xf32>,
    } else {
    }
    return
  }
  func.func @transform_0(%arg0: i32) -> (i32, i32) {
    %c0_i32 = arith.constant 0 : i32
    %c0_i32_0 = arith.constant 0 : i32
    %c0_i32_1 = arith.constant 0 : i32
    return %c0_i32, %c0_i32_0 : i32, i32
  }
  func.func @transform_1(%arg0: i32) -> (i32, i32, i32) {
    %c0_i32 = arith.constant 0 : i32
    %c0_i32_0 = arith.constant 0 : i32
    %c0_i32_1 = arith.constant 0 : i32
    return %arg0, %c0_i32, %c0_i32_0 : i32, i32, i32
  }
  func.func @transform_2(%arg0: i32) -> (i32, i32, i32) {
    %c0_i32 = arith.constant 0 : i32
    %c0_i32_0 = arith.constant 0 : i32
    %c0_i32_1 = arith.constant 0 : i32
    return %arg0, %c0_i32, %c0_i32_0 : i32, i32, i32
  }
  func.func @transform_3(%arg0: i32) -> (i32, i32, i32) {
    %c0_i32 = arith.constant 0 : i32
    %c0_i32_0 = arith.constant 0 : i32
    %c0_i32_1 = arith.constant 0 : i32
    return %arg0, %c0_i32, %c0_i32_0 : i32, i32, i32
  }
  func.func @transform_4(%arg0: i32) -> (i32, i32, i32) {
    %c0_i32 = arith.constant 0 : i32
    %c0_i32_0 = arith.constant 0 : i32
    %c0_i32_1 = arith.constant 0 : i32
    return %arg0, %c0_i32, %c0_i32_0 : i32, i32, i32
  }
  func.func @transform_5(%arg0: i32) -> (i32, i32, i32) {
    %c0_i32 = arith.constant 0 : i32
    %c0_i32_0 = arith.constant 0 : i32
    %c0_i32_1 = arith.constant 0 : i32
    return %arg0, %c0_i32, %c0_i32_0 : i32, i32, i32
  }
  func.func @transform_6(%arg0: i32) -> (i32, i32, i32) {
    %c0_i32 = arith.constant 0 : i32
    %c0_i32_0 = arith.constant 0 : i32
    %c0_i32_1 = arith.constant 0 : i32
    return %arg0, %c0_i32, %c0_i32_0 : i32, i32, i32
  }
  func.func @transform_7(%arg0: i32) -> (i32, i32, i32) {
    %c0_i32 = arith.constant 0 : i32
    %c0_i32_0 = arith.constant 0 : i32
    %c0_i32_1 = arith.constant 0 : i32
    return %arg0, %c0_i32, %c0_i32_0 : i32, i32, i32
  }
  func.func @transform_8(%arg0: i32) -> (i32, i32) {
    %c0_i32 = arith.constant 0 : i32
    %c0_i32_0 = arith.constant 0 : i32
    %c0_i32_1 = arith.constant 0 : i32
    return %c0_i32, %c0_i32_0 : i32, i32
  }
  func.func @transform_9(%arg0: i32) -> (i32, i32) {
    %c0_i32 = arith.constant 0 : i32
    %c0_i32_0 = arith.constant 0 : i32
    %c0_i32_1 = arith.constant 0 : i32
    return %c0_i32, %c0_i32_0 : i32, i32
  }
  func.func @transform_10(%arg0: i32) -> (i32, i32) {
    %c0_i32 = arith.constant 0 : i32
    %c0_i32_0 = arith.constant 0 : i32
    %c0_i32_1 = arith.constant 0 : i32
    return %c0_i32, %c0_i32_0 : i32, i32
  }
  func.func @transform_11(%arg0: i32) -> (i32, i32) {
    %c0_i32 = arith.constant 0 : i32
    %c0_i32_0 = arith.constant 0 : i32
    %c0_i32_1 = arith.constant 0 : i32
    return %c0_i32, %c0_i32_0 : i32, i32
  }
  func.func @transform_12(%arg0: i32) -> (i32, i32) {
    %c0_i32 = arith.constant 0 : i32
    %c0_i32_0 = arith.constant 0 : i32
    %c0_i32_1 = arith.constant 0 : i32
    return %c0_i32, %c0_i32_0 : i32, i32
  }
}

</mosaic_0001>

<llo_original>
// kernel: tpu_custom_call.1
$region0: #{tpu_custom_call.1}
  #allocation0 [shape = 'u32[]', space=smem, size = 0x4, offset = 0x4, fixed_abs, tag = 'smem constant byte address 0x4 - core index']
  #allocation1 [shape = 'u32[144,128]{1,0:T(1,128)}', space=vmem, size = 0x12000, scoped, tag = 'internal scratch']
  #allocation2 [shape = 'f32[16,32]{1,0:T(8,128)}', space=vmem, size = 0x2000, scoped, tag = 'scratch operand']
  %s0 = inlined_call_operand.vmem [shape: f32[16,32], index: 0, kind: input, shape index: {}]
  %s1 = inlined_call_operand.vmem [shape: bf16[4,32,96], index: 1, kind: input, shape index: {}]
  %s2 = inlined_call_operand.vmem [shape: f32[4,1,96], index: 2, kind: input, shape index: {}]
  %s3 = inlined_call_operand.vmem [shape: bf16[4,32,32], index: 3, kind: input, shape index: {}]
  %s4 = inlined_call_operand.vmem [shape: f32[4,6,32], index: 4, kind: input, shape index: {}]
  %s5 = inlined_call_operand.vmem [shape: bf16[4,32,2048], index: 5, kind: input, shape index: {}]
  %s6 = inlined_call_operand.vmem [shape: f32[4,1,2048], index: 6, kind: input, shape index: {}]
  %s7 = inlined_call_operand.vmem [shape: bf16[4,2048,32], index: 7, kind: input, shape index: {}]
  %s8 = inlined_call_operand.vmem [shape: f32[16,16], index: 8, kind: input, shape index: {}]
  %s9 = inlined_call_operand.vmem [shape: f32[2,16], index: 9, kind: input, shape index: {}]
  %s10 = inlined_call_operand.vmem [shape: f32[32,10], index: 10, kind: input, shape index: {}]
  %s11 = inlined_call_operand.vmem [shape: f32[1,10], index: 11, kind: input, shape index: {}]
  %s12 = inlined_call_operand.hbm [shape: f32[2,10], index: 12, kind: output, shape index: {}]
  %s13 = sld [smem:[#allocation0]]
  $region89: #{tpu_custom_call.1} parent=0
    _
  %s15 = ssub.s32 1, %s13
  %s16 = scalar_select 0, %s15, %s13
  $region1: #{tpu_custom_call.1} parent=0
    #allocation3 [shape = 'u8[1024]{0}', space=vmem, size = 0x400, scoped, tag = 'output window, operand 0, single buffered']
    #allocation4 [shape = 's32[2]{0}', space=sflag, size = 0x8, scoped, tag = 'scoped memory for tpu_custom_call.1']
    %17 = vsyncpa [#allocation4], 0
    loop: start=0, step=1, limit=6
    $region2: #{tpu_custom_call.1} parent=1 // loop_pre_header
      _
    $region3: #{tpu_custom_call.1} parent=1 // loop_header
      %s19 = sphi 0, %s23
      %p20 = scmp.ge.s32.totalorder %s19, 6
      %s27 = sphi 0, %s27
      %s29 = sphi 0, %s27
      %s30 = sphi 0, %s29
      %s44 = sphi 0, %s30
      %s50 = sphi 0, %s52
      %s53 = sphi 0, %s50
      %s54 = sphi 0, %s53
      %s70 = sphi 0, %s54
      %s76 = sphi 0, %s78
      %s79 = sphi 0, %s76
      %s80 = sphi 0, %s79
      %s96 = sphi 0, %s80
      %s102 = sphi 0, %s104
      %s105 = sphi 0, %s102
      %s106 = sphi 0, %s105
      %s122 = sphi 0, %s106
      %s128 = sphi 0, %s130
      %s131 = sphi 0, %s128
      %s132 = sphi 0, %s131
      %s148 = sphi 0, %s132
      %s154 = sphi 0, %s156
      %s157 = sphi 0, %s154
      %s158 = sphi 0, %s157
      %s174 = sphi 0, %s158
      %s180 = sphi 0, %s182
      %s183 = sphi 0, %s180
      %s184 = sphi 0, %s183
      %s200 = sphi 0, %s184
      %s206 = sphi 0, %s208
      %s209 = sphi 0, %s206
      %s210 = sphi 0, %s209
      %s226 = sphi 0, %s210
      %s230 = sphi 0, %s230
      %s232 = sphi 0, %s230
      %s233 = sphi 0, %s232
      %s247 = sphi 0, %s233
      %s251 = sphi 0, %s251
      %s253 = sphi 0, %s251
      %s254 = sphi 0, %s253
      %s268 = sphi 0, %s254
      %s272 = sphi 0, %s272
      %s274 = sphi 0, %s272
      %s275 = sphi 0, %s274
      %s289 = sphi 0, %s275
      %s293 = sphi 0, %s293
      %s295 = sphi 0, %s293
      %s296 = sphi 0, %s295
      %s310 = sphi 0, %s296
      %s314 = sphi 0, %s314
      %s316 = sphi 0, %s314
      %s317 = sphi 0, %s316
      %s331 = sphi 0, %s317
    $region4: #{tpu_custom_call.1} parent=1 // loop_header_branch
      %22 = sbr.rel (%p20) target = $region8
    $region5: #{tpu_custom_call.1} parent=1 // loop_body
      %s24 = ssub.s32 %s19, 1
      %s25 = ssub.s32 %s19, 2
      %s26 = sadd.s32 %s19, 1
      %s28 = sadd.s32 %s27, 1
      %p31 = scmp.eq.s32.totalorder %s19, 3
      %p32 = scmp.ne.s32.totalorder %s27, %s29
      %p33 = scmp.eq.s32.totalorder %s19, 0
      %p34 = por %p32, %p33
      %p35 = scmp.ne.s32.totalorder %s27, %s29
      %p36 = scmp.eq.s32.totalorder %s24, 3
      %p37 = por %p35, %p36
      %p38 = scmp.ne.s32.totalorder %s29, %s30
      %p39 = scmp.eq.s32.totalorder %s24, 0
      %p40 = por %p38, %p39
      %p41 = scmp.ne.s32.totalorder %s29, %s30
      %p42 = scmp.eq.s32.totalorder %s25, 3
      %p43 = por %p41, %p42
      %p45 = scmp.ne.s32.totalorder %s30, %s44
      %p46 = scmp.eq.s32.totalorder %s25, 0
      %p47 = por %p45, %p46
      %s48 = ssub.s32 %s19, %s26
      %p49 = scmp.eq.s32.totalorder %s48, 0
      %s51 = sadd.s32 %s50, 1
      %s52 = scalar_select %p49, %s50, %s51
      %p55 = pneg %p49
      %p56 = scmp.eq.s32.totalorder %s19, 3
      %p57 = por %p55, %p56
      %p58 = scmp.ne.s32.totalorder %s50, %s53
      %p59 = scmp.eq.s32.totalorder %s19, 0
      %p60 = por %p58, %p59
      %p61 = scmp.ne.s32.totalorder %s50, %s53
      %p62 = scmp.eq.s32.totalorder %s24, 3
      %p63 = por %p61, %p62
      %p64 = scmp.ne.s32.totalorder %s53, %s54
      %p65 = scmp.eq.s32.totalorder %s24, 0
      %p66 = por %p64, %p65
      %p67 = scmp.ne.s32.totalorder %s53, %s54
      %p68 = scmp.eq.s32.totalorder %s25, 3
      %p69 = por %p67, %p68
      %p71 = scmp.ne.s32.totalorder %s54, %s70
      %p72 = scmp.eq.s32.totalorder %s25, 0
      %p73 = por %p71, %p72
      %s74 = ssub.s32 %s19, %s26
      %p75 = scmp.eq.s32.totalorder %s74, 0
      %s77 = sadd.s32 %s76, 1
      %s78 = scalar_select %p75, %s76, %s77
      %p81 = pneg %p75
      %p82 = scmp.eq.s32.totalorder %s19, 3
      %p83 = por %p81, %p82
      %p84 = scmp.ne.s32.totalorder %s76, %s79
      %p85 = scmp.eq.s32.totalorder %s19, 0
      %p86 = por %p84, %p85
      %p87 = scmp.ne.s32.totalorder %s76, %s79
      %p88 = scmp.eq.s32.totalorder %s24, 3
      %p89 = por %p87, %p88
      %p90 = scmp.ne.s32.totalorder %s79, %s80
      %p91 = scmp.eq.s32.totalorder %s24, 0
      %p92 = por %p90, %p91
      %p93 = scmp.ne.s32.totalorder %s79, %s80
      %p94 = scmp.eq.s32.totalorder %s25, 3
      %p95 = por %p93, %p94
      %p97 = scmp.ne.s32.totalorder %s80, %s96
      %p98 = scmp.eq.s32.totalorder %s25, 0
      %p99 = por %p97, %p98
      %s100 = ssub.s32 %s19, %s26
      %p101 = scmp.eq.s32.totalorder %s100, 0
      %s103 = sadd.s32 %s102, 1
      %s104 = scalar_select %p101, %s102, %s103
      %p107 = pneg %p101
      %p108 = scmp.eq.s32.totalorder %s19, 3
      %p109 = por %p107, %p108
      %p110 = scmp.ne.s32.totalorder %s102, %s105
      %p111 = scmp.eq.s32.totalorder %s19, 0
      %p112 = por %p110, %p111
      %p113 = scmp.ne.s32.totalorder %s102, %s105
      %p114 = scmp.eq.s32.totalorder %s24, 3
      %p115 = por %p113, %p114
      %p116 = scmp.ne.s32.totalorder %s105, %s106
      %p117 = scmp.eq.s32.totalorder %s24, 0
      %p118 = por %p116, %p117
      %p119 = scmp.ne.s32.totalorder %s105, %s106
      %p120 = scmp.eq.s32.totalorder %s25, 3
      %p121 = por %p119, %p120
      %p123 = scmp.ne.s32.totalorder %s106, %s122
      %p124 = scmp.eq.s32.totalorder %s25, 0
      %p125 = por %p123, %p124
      %s126 = ssub.s32 %s19, %s26
      %p127 = scmp.eq.s32.totalorder %s126, 0
      %s129 = sadd.s32 %s128, 1
      %s130 = scalar_select %p127, %s128, %s129
      %p133 = pneg %p127
      %p134 = scmp.eq.s32.totalorder %s19, 3
      %p135 = por %p133, %p134
      %p136 = scmp.ne.s32.totalorder %s128, %s131
      %p137 = scmp.eq.s32.totalorder %s19, 0
      %p138 = por %p136, %p137
      %p139 = scmp.ne.s32.totalorder %s128, %s131
      %p140 = scmp.eq.s32.totalorder %s24, 3
      %p141 = por %p139, %p140
      %p142 = scmp.ne.s32.totalorder %s131, %s132
      %p143 = scmp.eq.s32.totalorder %s24, 0
      %p144 = por %p142, %p143
      %p145 = scmp.ne.s32.totalorder %s131, %s132
      %p146 = scmp.eq.s32.totalorder %s25, 3
      %p147 = por %p145, %p146
      %p149 = scmp.ne.s32.totalorder %s132, %s148
      %p150 = scmp.eq.s32.totalorder %s25, 0
      %p151 = por %p149, %p150
      %s152 = ssub.s32 %s19, %s26
      %p153 = scmp.eq.s32.totalorder %s152, 0
      %s155 = sadd.s32 %s154, 1
      %s156 = scalar_select %p153, %s154, %s155
      %p159 = pneg %p153
      %p160 = scmp.eq.s32.totalorder %s19, 3
      %p161 = por %p159, %p160
      %p162 = scmp.ne.s32.totalorder %s154, %s157
      %p163 = scmp.eq.s32.totalorder %s19, 0
      %p164 = por %p162, %p163
      %p165 = scmp.ne.s32.totalorder %s154, %s157
      %p166 = scmp.eq.s32.totalorder %s24, 3
      %p167 = por %p165, %p166
      %p168 = scmp.ne.s32.totalorder %s157, %s158
      %p169 = scmp.eq.s32.totalorder %s24, 0
      %p170 = por %p168, %p169
      %p171 = scmp.ne.s32.totalorder %s157, %s158
      %p172 = scmp.eq.s32.totalorder %s25, 3
      %p173 = por %p171, %p172
      %p175 = scmp.ne.s32.totalorder %s158, %s174
      %p176 = scmp.eq.s32.totalorder %s25, 0
      %p177 = por %p175, %p176
      %s178 = ssub.s32 %s19, %s26
      %p179 = scmp.eq.s32.totalorder %s178, 0
      %s181 = sadd.s32 %s180, 1
      %s182 = scalar_select %p179, %s180, %s181
      %p185 = pneg %p179
      %p186 = scmp.eq.s32.totalorder %s19, 3
      %p187 = por %p185, %p186
      %p188 = scmp.ne.s32.totalorder %s180, %s183
      %p189 = scmp.eq.s32.totalorder %s19, 0
      %p190 = por %p188, %p189
      %p191 = scmp.ne.s32.totalorder %s180, %s183
      %p192 = scmp.eq.s32.totalorder %s24, 3
      %p193 = por %p191, %p192
      %p194 = scmp.ne.s32.totalorder %s183, %s184
      %p195 = scmp.eq.s32.totalorder %s24, 0
      %p196 = por %p194, %p195
      %p197 = scmp.ne.s32.totalorder %s183, %s184
      %p198 = scmp.eq.s32.totalorder %s25, 3
      %p199 = por %p197, %p198
      %p201 = scmp.ne.s32.totalorder %s184, %s200
      %p202 = scmp.eq.s32.totalorder %s25, 0
      %p203 = por %p201, %p202
      %s204 = ssub.s32 %s19, %s26
      %p205 = scmp.eq.s32.totalorder %s204, 0
      %s207 = sadd.s32 %s206, 1
      %s208 = scalar_select %p205, %s206, %s207
      %p211 = pneg %p205
      %p212 = scmp.eq.s32.totalorder %s19, 3
      %p213 = por %p211, %p212
      %p214 = scmp.ne.s32.totalorder %s206, %s209
      %p215 = scmp.eq.s32.totalorder %s19, 0
      %p216 = por %p214, %p215
      %p217 = scmp.ne.s32.totalorder %s206, %s209
      %p218 = scmp.eq.s32.totalorder %s24, 3
      %p219 = por %p217, %p218
      %p220 = scmp.ne.s32.totalorder %s209, %s210
      %p221 = scmp.eq.s32.totalorder %s24, 0
      %p222 = por %p220, %p221
      %p223 = scmp.ne.s32.totalorder %s209, %s210
      %p224 = scmp.eq.s32.totalorder %s25, 3
      %p225 = por %p223, %p224
      %p227 = scmp.ne.s32.totalorder %s210, %s226
      %p228 = scmp.eq.s32.totalorder %s25, 0
      %p229 = por %p227, %p228
      %s231 = sadd.s32 %s230, 1
      %p234 = scmp.eq.s32.totalorder %s19, 3
      %p235 = scmp.ne.s32.totalorder %s230, %s232
      %p236 = scmp.eq.s32.totalorder %s19, 0
      %p237 = por %p235, %p236
      %p238 = scmp.ne.s32.totalorder %s230, %s232
      %p239 = scmp.eq.s32.totalorder %s24, 3
      %p240 = por %p238, %p239
      %p241 = scmp.ne.s32.totalorder %s232, %s233
      %p242 = scmp.eq.s32.totalorder %s24, 0
      %p243 = por %p241, %p242
      %p244 = scmp.ne.s32.totalorder %s232, %s233
      %p245 = scmp.eq.s32.totalorder %s25, 3
      %p246 = por %p244, %p245
      %p248 = scmp.ne.s32.totalorder %s233, %s247
      %p249 = scmp.eq.s32.totalorder %s25, 0
      %p250 = por %p248, %p249
      %s252 = sadd.s32 %s251, 1
      %p255 = scmp.eq.s32.totalorder %s19, 3
      %p256 = scmp.ne.s32.totalorder %s251, %s253
      %p257 = scmp.eq.s32.totalorder %s19, 0
      %p258 = por %p256, %p257
      %p259 = scmp.ne.s32.totalorder %s251, %s253
      %p260 = scmp.eq.s32.totalorder %s24, 3
      %p261 = por %p259, %p260
      %p262 = scmp.ne.s32.totalorder %s253, %s254
      %p263 = scmp.eq.s32.totalorder %s24, 0
      %p264 = por %p262, %p263
      %p265 = scmp.ne.s32.totalorder %s253, %s254
      %p266 = scmp.eq.s32.totalorder %s25, 3
      %p267 = por %p265, %p266
      %p269 = scmp.ne.s32.totalorder %s254, %s268
      %p270 = scmp.eq.s32.totalorder %s25, 0
      %p271 = por %p269, %p270
      %s273 = sadd.s32 %s272, 1
      %p276 = scmp.eq.s32.totalorder %s19, 3
      %p277 = scmp.ne.s32.totalorder %s272, %s274
      %p278 = scmp.eq.s32.totalorder %s19, 0
      %p279 = por %p277, %p278
      %p280 = scmp.ne.s32.totalorder %s272, %s274
      %p281 = scmp.eq.s32.totalorder %s24, 3
      %p282 = por %p280, %p281
      %p283 = scmp.ne.s32.totalorder %s274, %s275
      %p284 = scmp.eq.s32.totalorder %s24, 0
      %p285 = por %p283, %p284
      %p286 = scmp.ne.s32.totalorder %s274, %s275
      %p287 = scmp.eq.s32.totalorder %s25, 3
      %p288 = por %p286, %p287
      %p290 = scmp.ne.s32.totalorder %s275, %s289
      %p291 = scmp.eq.s32.totalorder %s25, 0
      %p292 = por %p290, %p291
      %s294 = sadd.s32 %s293, 1
      %p297 = scmp.eq.s32.totalorder %s19, 3
      %p298 = scmp.ne.s32.totalorder %s293, %s295
      %p299 = scmp.eq.s32.totalorder %s19, 0
      %p300 = por %p298, %p299
      %p301 = scmp.ne.s32.totalorder %s293, %s295
      %p302 = scmp.eq.s32.totalorder %s24, 3
      %p303 = por %p301, %p302
      %p304 = scmp.ne.s32.totalorder %s295, %s296
      %p305 = scmp.eq.s32.totalorder %s24, 0
      %p306 = por %p304, %p305
      %p307 = scmp.ne.s32.totalorder %s295, %s296
      %p308 = scmp.eq.s32.totalorder %s25, 3
      %p309 = por %p307, %p308
      %p311 = scmp.ne.s32.totalorder %s296, %s310
      %p312 = scmp.eq.s32.totalorder %s25, 0
      %p313 = por %p311, %p312
      %s315 = sadd.s32 %s314, 1
      %p318 = scmp.eq.s32.totalorder %s19, 3
      %p319 = scmp.ne.s32.totalorder %s314, %s316
      %p320 = scmp.eq.s32.totalorder %s19, 0
      %p321 = por %p319, %p320
      %p322 = scmp.ne.s32.totalorder %s314, %s316
      %p323 = scmp.eq.s32.totalorder %s24, 3
      %p324 = por %p322, %p323
      %p325 = scmp.ne.s32.totalorder %s316, %s317
      %p326 = scmp.eq.s32.totalorder %s24, 0
      %p327 = por %p325, %p326
      %p328 = scmp.ne.s32.totalorder %s316, %s317
      %p329 = scmp.eq.s32.totalorder %s25, 3
      %p330 = por %p328, %p329
      %p332 = scmp.ne.s32.totalorder %s317, %s331
      %p333 = scmp.eq.s32.totalorder %s25, 0
      %p334 = por %p332, %p333
      %p335 = scmp.le.s32.totalorder 1, %s19
      %p336 = scmp.lt.s32.totalorder %s19, 5
      %p337 = pnand %p335, %p336
      %p338 = pneg %p337
      // Predicated region
      $region9: #{tpu_custom_call.1} parent=5 // pred_check
        _
      $region10: #{tpu_custom_call.1} parent=5 // pred_check_branch
        %340 = sbr.rel (%p337) target = $region12
      $region11: #{tpu_custom_call.1} parent=5 // pred_region
        %s341 = ssub.s32 %s19, 1
        // Predicated region
        $region13: #{tpu_custom_call.1} parent=11 // pred_check
          %p342 = pneg %p40
        $region14: #{tpu_custom_call.1} parent=11 // pred_check_branch
          %344 = sbr.rel (%p342) target = $region16
        $region15: #{tpu_custom_call.1} parent=11 // pred_region
          _
        $region16: #{tpu_custom_call.1} parent=11 // pred_fallthru
          _
        // Predicated region
        $region17: #{tpu_custom_call.1} parent=11 // pred_check
          %p345 = pneg %p243
        $region18: #{tpu_custom_call.1} parent=11 // pred_check_branch
          %347 = sbr.rel (%p345) target = $region20
        $region19: #{tpu_custom_call.1} parent=11 // pred_region
          _
        $region20: #{tpu_custom_call.1} parent=11 // pred_fallthru
          _
        // Predicated region
        $region21: #{tpu_custom_call.1} parent=11 // pred_check
          %p348 = pneg %p264
        $region22: #{tpu_custom_call.1} parent=11 // pred_check_branch
          %350 = sbr.rel (%p348) target = $region24
        $region23: #{tpu_custom_call.1} parent=11 // pred_region
          _
        $region24: #{tpu_custom_call.1} parent=11 // pred_fallthru
          _
        // Predicated region
        $region25: #{tpu_custom_call.1} parent=11 // pred_check
          %p351 = pneg %p285
        $region26: #{tpu_custom_call.1} parent=11 // pred_check_branch
          %353 = sbr.rel (%p351) target = $region28
        $region27: #{tpu_custom_call.1} parent=11 // pred_region
          _
        $region28: #{tpu_custom_call.1} parent=11 // pred_fallthru
          _
        // Predicated region
        $region29: #{tpu_custom_call.1} parent=11 // pred_check
          %p354 = pneg %p306
        $region30: #{tpu_custom_call.1} parent=11 // pred_check_branch
          %356 = sbr.rel (%p354) target = $region32
        $region31: #{tpu_custom_call.1} parent=11 // pred_region
          _
        $region32: #{tpu_custom_call.1} parent=11 // pred_fallthru
          _
      $region12: #{tpu_custom_call.1} parent=5 // pred_fallthru
        _
      %p357 = scmp.lt.s32.totalorder %s19, 4
      // Predicated region
      $region33: #{tpu_custom_call.1} parent=5 // pred_check
        %p358 = pneg %p357
      $region34: #{tpu_custom_call.1} parent=5 // pred_check_branch
        %360 = sbr.rel (%p358) target = $region36
      $region35: #{tpu_custom_call.1} parent=5 // pred_region
        // Predicated region
        $region37: #{tpu_custom_call.1} parent=35 // pred_check
          %p361 = pneg %p60
        $region38: #{tpu_custom_call.1} parent=35 // pred_check_branch
          %363 = sbr.rel (%p361) target = $region40
        $region39: #{tpu_custom_call.1} parent=35 // pred_region
          %p364 = scmp.lt.s32.totalorder %s19, 3
          %s365 = scalar_select %p364, %s19, 3
          %s366 = smul.addr %s365, 4
          %s367 = smul.addr %s366, 4
          %s368 = scalar_lea.vmem %s1, %s367
        $region40: #{tpu_custom_call.1} parent=35 // pred_fallthru
          _
        // Predicated region
        $region41: #{tpu_custom_call.1} parent=35 // pred_check
          %p369 = pneg %p86
        $region42: #{tpu_custom_call.1} parent=35 // pred_check_branch
          %371 = sbr.rel (%p369) target = $region44
        $region43: #{tpu_custom_call.1} parent=35 // pred_region
          %p372 = scmp.lt.s32.totalorder %s19, 3
          %s373 = scalar_select %p372, %s19, 3
          %s374 = scalar_lea.vmem %s2, %s373
        $region44: #{tpu_custom_call.1} parent=35 // pred_fallthru
          _
        // Predicated region
        $region45: #{tpu_custom_call.1} parent=35 // pred_check
          %p375 = pneg %p112
        $region46: #{tpu_custom_call.1} parent=35 // pred_check_branch
          %377 = sbr.rel (%p375) target = $region48
        $region47: #{tpu_custom_call.1} parent=35 // pred_region
          %p378 = scmp.lt.s32.totalorder %s19, 3
          %s379 = scalar_select %p378, %s19, 3
          %s380 = smul.addr %s379, 4
          %s381 = smul.addr %s380, 4
          %s382 = scalar_lea.vmem %s3, %s381
        $region48: #{tpu_custom_call.1} parent=35 // pred_fallthru
          _
        // Predicated region
        $region49: #{tpu_custom_call.1} parent=35 // pred_check
          %p383 = pneg %p138
        $region50: #{tpu_custom_call.1} parent=35 // pred_check_branch
          %385 = sbr.rel (%p383) target = $region52
        $region51: #{tpu_custom_call.1} parent=35 // pred_region
          %p386 = scmp.lt.s32.totalorder %s19, 3
          %s387 = scalar_select %p386, %s19, 3
          %s388 = smul.addr %s387, 8
          %s389 = scalar_lea.vmem %s4, %s388
        $region52: #{tpu_custom_call.1} parent=35 // pred_fallthru
          _
        // Predicated region
        $region53: #{tpu_custom_call.1} parent=35 // pred_check
          %p390 = pneg %p164
        $region54: #{tpu_custom_call.1} parent=35 // pred_check_branch
          %392 = sbr.rel (%p390) target = $region56
        $region55: #{tpu_custom_call.1} parent=35 // pred_region
          %p393 = scmp.lt.s32.totalorder %s19, 3
          %s394 = scalar_select %p393, %s19, 3
          %s395 = smul.addr %s394, 64
          %s396 = smul.addr %s395, 4
          %s397 = scalar_lea.vmem %s5, %s396
        $region56: #{tpu_custom_call.1} parent=35 // pred_fallthru
          _
        // Predicated region
        $region57: #{tpu_custom_call.1} parent=35 // pred_check
          %p398 = pneg %p190
        $region58: #{tpu_custom_call.1} parent=35 // pred_check_branch
          %400 = sbr.rel (%p398) target = $region60
        $region59: #{tpu_custom_call.1} parent=35 // pred_region
          %p401 = scmp.lt.s32.totalorder %s19, 3
          %s402 = scalar_select %p401, %s19, 3
          %s403 = smul.addr %s402, 16
          %s404 = scalar_lea.vmem %s6, %s403
        $region60: #{tpu_custom_call.1} parent=35 // pred_fallthru
          _
        // Predicated region
        $region61: #{tpu_custom_call.1} parent=35 // pred_check
          %p405 = pneg %p216
        $region62: #{tpu_custom_call.1} parent=35 // pred_check_branch
          %407 = sbr.rel (%p405) target = $region64
        $region63: #{tpu_custom_call.1} parent=35 // pred_region
          %p408 = scmp.lt.s32.totalorder %s19, 3
          %s409 = scalar_select %p408, %s19, 3
          %s410 = smul.addr %s409, 256
          %s411 = smul.addr %s410, 4
          %s412 = scalar_lea.vmem %s7, %s411
        $region64: #{tpu_custom_call.1} parent=35 // pred_fallthru
          _
      $region36: #{tpu_custom_call.1} parent=5 // pred_fallthru
        _
      %p413 = scmp.le.s32.totalorder 1, %s19
      %p414 = scmp.lt.s32.totalorder %s19, 5
      %p415 = pnand %p413, %p414
      %p416 = pneg %p415
      // Predicated region
      $region65: #{tpu_custom_call.1} parent=5 // pred_check
        _
      $region66: #{tpu_custom_call.1} parent=5 // pred_check_branch
        %418 = sbr.rel (%p415) target = $region68
      $region67: #{tpu_custom_call.1} parent=5 // pred_region
        %s419 = ssub.s32 %s19, 1
        %p420 = pneg %p40
        %p421 = pneg %p37
        %p422 = scmp.lt.s32.totalorder %s24, 3
        %s423 = scalar_select %p422, %s24, 3
        %s424 = smul.addr %s423, 4
        %s425 = smul.addr %s424, 4
        %s426 = scalar_lea.vmem %s1, %s425
        %p427 = pneg %p66
        %p428 = pneg %p63
        %p429 = scmp.lt.s32.totalorder %s24, 3
        %s430 = scalar_select %p429, %s24, 3
        %s431 = scalar_lea.vmem %s2, %s430
        %p432 = pneg %p92
        %p433 = pneg %p89
        %p434 = scmp.lt.s32.totalorder %s24, 3
        %s435 = scalar_select %p434, %s24, 3
        %s436 = smul.addr %s435, 4
        %s437 = smul.addr %s436, 4
        %s438 = scalar_lea.vmem %s3, %s437
        %p439 = pneg %p118
        %p440 = pneg %p115
        %p441 = scmp.lt.s32.totalorder %s24, 3
        %s442 = scalar_select %p441, %s24, 3
        %s443 = smul.addr %s442, 8
        %s444 = scalar_lea.vmem %s4, %s443
        %p445 = pneg %p144
        %p446 = pneg %p141
        %p447 = scmp.lt.s32.totalorder %s24, 3
        %s448 = scalar_select %p447, %s24, 3
        %s449 = smul.addr %s448, 64
        %s450 = smul.addr %s449, 4
        %s451 = scalar_lea.vmem %s5, %s450
        %p452 = pneg %p170
        %p453 = pneg %p167
        %p454 = scmp.lt.s32.totalorder %s24, 3
        %s455 = scalar_select %p454, %s24, 3
        %s456 = smul.addr %s455, 16
        %s457 = scalar_lea.vmem %s6, %s456
        %p458 = pneg %p196
        %p459 = pneg %p193
        %p460 = scmp.lt.s32.totalorder %s24, 3
        %s461 = scalar_select %p460, %s24, 3
        %s462 = smul.addr %s461, 256
        %s463 = smul.addr %s462, 4
        %s464 = scalar_lea.vmem %s7, %s463
        %p465 = pneg %p222
        %p466 = pneg %p219
        %p467 = pneg %p243
        %p468 = pneg %p240
        %p469 = pneg %p264
        %p470 = pneg %p261
        %p471 = pneg %p285
        %p472 = pneg %p282
        %p473 = pneg %p306
        %p474 = pneg %p303
        %p475 = pneg %p327
        %p476 = pneg %p324
        %p477 = scmp.lt.s32.totalorder %s24, 3
        %s478 = scalar_select %p477, %s24, 3
        %s479 = smul.addr %s478, 4
        %s480 = smul.addr %s479, 4
        %s481 = scalar_lea.vmem %s1, %s480
        %p482 = scmp.lt.s32.totalorder %s24, 3
        %s483 = scalar_select %p482, %s24, 3
        %s484 = scalar_lea.vmem %s2, %s483
        %p485 = scmp.lt.s32.totalorder %s24, 3
        %s486 = scalar_select %p485, %s24, 3
        %s487 = smul.addr %s486, 4
        %s488 = smul.addr %s487, 4
        %s489 = scalar_lea.vmem %s3, %s488
        %p490 = scmp.lt.s32.totalorder %s24, 3
        %s491 = scalar_select %p490, %s24, 3
        %s492 = smul.addr %s491, 8
        %s493 = scalar_lea.vmem %s4, %s492
        %p494 = scmp.lt.s32.totalorder %s24, 3
        %s495 = scalar_select %p494, %s24, 3
        %s496 = smul.addr %s495, 64
        %s497 = smul.addr %s496, 4
        %s498 = scalar_lea.vmem %s5, %s497
        %p499 = scmp.lt.s32.totalorder %s24, 3
        %s500 = scalar_select %p499, %s24, 3
        %s501 = smul.addr %s500, 16
        %s502 = scalar_lea.vmem %s6, %s501
        %p503 = scmp.lt.s32.totalorder %s24, 3
        %s504 = scalar_select %p503, %s24, 3
        %s505 = smul.addr %s504, 256
        %s506 = smul.addr %s505, 4
        %s507 = scalar_lea.vmem %s7, %s506
        %p509 = scmp.eq.s32.totalorder %s24, 0
        // Predicated region
        $region69: #{tpu_custom_call.1} parent=67 // pred_check
          %p510 = pneg %p509
        $region70: #{tpu_custom_call.1} parent=67 // pred_check_branch
          %512 = sbr.rel (%p510) target = $region72
        $region71: #{tpu_custom_call.1} parent=67 // pred_region
          %v513 = vld [vmem:[%s0] sm:$0xff]
          %v514 = vld [vmem:[%s0 + $0x8] sm:$0xff]
          %vm515 = vcmask 261120
          %516 = vst.msk [vmem:[#allocation2] sm:$0xff] %vm515, %v513
          %517 = vst.msk [vmem:[#allocation2 + $0x8] sm:$0xff] %vm515, %v514
        $region72: #{tpu_custom_call.1} parent=67 // pred_fallthru
          _
        %v518 = vld [vmem:[#allocation2] sm:$0xff]
        %v519 = vld [vmem:[#allocation2 + $0x8] sm:$0xff]
        %v520 = vpack.c.bf16 %v519, %v518
        %v521 = vld [vmem:[%s481] sm:$0xf]
        %v522 = vld [vmem:[%s481 + $0x4] sm:$0xf]
        %v523 = vld [vmem:[%s481 + $0x8] sm:$0xf]
        %v524 = vld [vmem:[%s481 + $0xc] sm:$0xf]
        %v525 = vld [vmem:[%s484] sm:$0x1]
        %v527 = vlaneseq
        %v528 = vshrl.u32 %v527, 7
        %v529 = vsub.s32 0, %v528
        %v530 = vrot.slane %v525, %v529
        %v536 = vunpack.c.l.b16 %v521
        %v537 = vunpack.c.l.b16 %v522
        %v538 = vunpack.c.l.b16 %v523
        %v539 = vunpack.c.l.b16 %v524
        %v540 = vpack.c.b16 %v537, %v536
        %v541 = vpack.c.b16 %v539, %v538
        %vm544 = vcmask 261120
        %v546 = vsel %vm544, %v520, 0
        %548 = vmatprep.subr.bf16.mxu0 0
        %549 = vmatpush1.bf16.msra.mxu0 %v540
        %550 = vmatprep.subr.bf16.mxu0 0
        %551 = vmatpush1.bf16.msra.mxu0 %v541
        %552 = vmatprep.subr.bf16.mxu0 0
        %553 = vmatpush1.bf16.msra.mxu0 0
        %554 = vmatprep.subr.bf16.mxu0 0
        %555 = vmatpush1.bf16.msra.mxu0 0
        %556 = vmatprep.subr.bf16.mxu0 0
        %557 = vmatpush1.bf16.msra.mxu0 0
        %558 = vmatprep.subr.bf16.mxu0 0
        %559 = vmatpush1.bf16.msra.mxu0 0
        %560 = vmatprep.subr.bf16.mxu0 0
        %561 = vmatpush1.bf16.msra.mxu0 0
        %562 = vmatprep.subr.bf16.mxu0 0
        %563 = vmatpush1.bf16.msra.mxu0 0
        %564 = vmatprep.subr.bf16.mxu0 0
        %565 = vmatpush1.bf16.msra.mxu0 0
        %566 = vmatprep.subr.bf16.mxu0 0
        %567 = vmatpush1.bf16.msra.mxu0 0
        %568 = vmatprep.subr.bf16.mxu0 0
        %569 = vmatpush1.bf16.msra.mxu0 0
        %570 = vmatprep.subr.bf16.mxu0 0
        %571 = vmatpush1.bf16.msra.mxu0 0
        %572 = vmatprep.subr.bf16.mxu0 0
        %573 = vmatpush1.bf16.msra.mxu0 0
        %574 = vmatprep.subr.bf16.mxu0 0
        %575 = vmatpush1.bf16.msra.mxu0 0
        %576 = vmatprep.subr.bf16.mxu0 0
        %577 = vmatpush1.bf16.msra.mxu0 0
        %578 = vmatprep.subr.bf16.mxu0 0
        %579 = vmatpush1.bf16.msra.mxu0 0
        %580 = vmatprep.mubr.bf16.mxu0 0
        %581 = vmatmul.mubr.bf16.gmra.mrb[0].mxu0 %v546
        %v582 = vpop.f32.mrb[0].mxu0
        %v583 = vadd.f32 %v530, %v582
        %v584 = vpop.f32.mrb[0].mxu0
        %v585 = vpop.f32.mrb[0].mxu0
        %v586 = vadd.f32 %v530, %v585
        %v587 = vpop.f32.mrb[0].mxu0
        %588 = vdwg.mxu0
        %v589 = vld [vmem:[%s8] sm:$0xff]
        %v590 = vld [vmem:[%s8 + $0x8] sm:$0xff]
        %v591 = vld [vmem:[%s489] sm:$0xf]
        %v592 = vld [vmem:[%s489 + $0x4] sm:$0xf]
        %v593 = vld [vmem:[%s489 + $0x8] sm:$0xf]
        %v594 = vld [vmem:[%s489 + $0xc] sm:$0xf]
        %v595 = vpack.c.bf16 %v586, %v583
        %597 = vrot.lane.b32.xlu0 %v595, 96
        %v598 = vpop.permute.xlu0 %597
        %vm599 = vcmask 64512
        %v601 = vsel %vm599, %v595, 0
        %v604 = vsel %vm599, %v598, 0
        %606 = vmatprep.subr.bf16.mxu0 0
        %607 = vmatpush1.bf16.xpose.msra.mxu0 %v604
        %608 = vmatprep.subr.bf16.mxu0 0
        %609 = vmatpush1.bf16.xpose.msra.mxu0 0
        %610 = vmatprep.subr.bf16.mxu0 0
        %611 = vmatpush1.bf16.xpose.msra.mxu0 0
        %612 = vmatprep.subr.bf16.mxu0 0
        %613 = vmatpush1.bf16.xpose.msra.mxu0 0
        %614 = vmatprep.subr.bf16.mxu0 0
        %615 = vmatpush1.bf16.xpose.msra.mxu0 0
        %616 = vmatprep.subr.bf16.mxu0 0
        %617 = vmatpush1.bf16.xpose.msra.mxu0 0
        %618 = vmatprep.subr.bf16.mxu0 0
        %619 = vmatpush1.bf16.xpose.msra.mxu0 0
        %620 = vmatprep.subr.bf16.mxu0 0
        %621 = vmatpush1.bf16.xpose.msra.mxu0 0
        %622 = vmatprep.subr.bf16.mxu0 0
        %623 = vmatpush1.bf16.xpose.msra.mxu0 0
        %624 = vmatprep.subr.bf16.mxu0 0
        %625 = vmatpush1.bf16.xpose.msra.mxu0 0
        %626 = vmatprep.subr.bf16.mxu0 0
        %627 = vmatpush1.bf16.xpose.msra.mxu0 0
        %628 = vmatprep.subr.bf16.mxu0 0
        %629 = vmatpush1.bf16.xpose.msra.mxu0 0
        %630 = vmatprep.subr.bf16.mxu0 0
        %631 = vmatpush1.bf16.xpose.msra.mxu0 0
        %632 = vmatprep.subr.bf16.mxu0 0
        %633 = vmatpush1.bf16.xpose.msra.mxu0 0
        %634 = vmatprep.subr.bf16.mxu0 0
        %635 = vmatpush1.bf16.xpose.msra.mxu0 0
        %636 = vmatprep.subr.bf16.mxu0 0
        %637 = vmatpush1.bf16.xpose.msra.mxu0 0
        %638 = vmatprep.mubr.bf16.mxu0 0
        %639 = vmatmul.mubr.bf16.gmra.mrb[0].mxu0 %v601
        %v640 = vpop.f32.mrb[0].mxu0
        %v641 = vadd.f32 0.0, %v640
        %v642 = vpop.f32.mrb[0].mxu0
        %v643 = vpop.f32.mrb[0].mxu0
        %v644 = vadd.f32 0.0, %v643
        %v645 = vpop.f32.mrb[0].mxu0
        %646 = vdwg.mxu0
        %v647 = vmul.f32 %v641, 0.35355338
        %v648 = vmul.f32 %v644, 0.35355338
        %v649 = vadd.f32 %v647, %v589
        %v650 = vadd.f32 %v648, %v590
        %vm651 = vcmask 130048
        %v652 = vsel %vm651, %v649, -inf
        %653 = vmax.xlane.f32.xlu0 %v652
        %v654 = vpop.xlane.xlu0 %653
        %v655 = vsel %vm651, %v650, -inf
        %656 = vmax.xlane.f32.xlu0 %v655
        %v657 = vpop.xlane.xlu0 %656
        %v658 = vsub.f32 %v649, %v654
        %v659 = vsub.f32 %v650, %v657
        %v660 = vmul.f32 %v658, 1.442695
        %v661 = vpow.pop %v660
        %v662 = vmul.f32 %v659, 1.442695
        %v663 = vpow.pop %v662
        %v664 = vsel %vm651, %v661, 0.0
        %665 = vadd.xlane.f32.xlu0 %v664
        %v666 = vpop.xlane.xlu0 %665
        %v667 = vsel %vm651, %v663, 0.0
        %668 = vadd.xlane.f32.xlu0 %v667
        %v669 = vpop.xlane.xlu0 %668
        %v670 = vrcp.pop %v666
        %v671 = vmul.f32 %v661, %v670
        %v672 = vrcp.pop %v669
        %v673 = vmul.f32 %v663, %v672
        %v674 = vpack.c.bf16 %v673, %v671
        %675 = vrot.lane.b32.xlu0 %v595, 64
        %v676 = vpop.permute.xlu0 %675
        %v679 = vsel %vm651, %v674, 0
        %681 = vmatprep.subr.bf16.mxu0 0
        %682 = vmatpush1.bf16.msra.mxu0 %v676
        %683 = vmatprep.subr.bf16.mxu0 0
        %684 = vmatpush1.bf16.msra.mxu0 0
        %685 = vmatprep.subr.bf16.mxu0 0
        %686 = vmatpush1.bf16.msra.mxu0 0
        %687 = vmatprep.subr.bf16.mxu0 0
        %688 = vmatpush1.bf16.msra.mxu0 0
        %689 = vmatprep.subr.bf16.mxu0 0
        %690 = vmatpush1.bf16.msra.mxu0 0
        %691 = vmatprep.subr.bf16.mxu0 0
        %692 = vmatpush1.bf16.msra.mxu0 0
        %693 = vmatprep.subr.bf16.mxu0 0
        %694 = vmatpush1.bf16.msra.mxu0 0
        %695 = vmatprep.subr.bf16.mxu0 0
        %696 = vmatpush1.bf16.msra.mxu0 0
        %697 = vmatprep.subr.bf16.mxu0 0
        %698 = vmatpush1.bf16.msra.mxu0 0
        %699 = vmatprep.subr.bf16.mxu0 0
        %700 = vmatpush1.bf16.msra.mxu0 0
        %701 = vmatprep.subr.bf16.mxu0 0
        %702 = vmatpush1.bf16.msra.mxu0 0
        %703 = vmatprep.subr.bf16.mxu0 0
        %704 = vmatpush1.bf16.msra.mxu0 0
        %705 = vmatprep.subr.bf16.mxu0 0
        %706 = vmatpush1.bf16.msra.mxu0 0
        %707 = vmatprep.subr.bf16.mxu0 0
        %708 = vmatpush1.bf16.msra.mxu0 0
        %709 = vmatprep.subr.bf16.mxu0 0
        %710 = vmatpush1.bf16.msra.mxu0 0
        %711 = vmatprep.subr.bf16.mxu0 0
        %712 = vmatpush1.bf16.msra.mxu0 0
        %713 = vmatprep.mubr.bf16.mxu0 0
        %714 = vmatmul.mubr.bf16.gmra.mrb[0].mxu0 %v679
        %v715 = vpop.f32.mrb[0].mxu0
        %v716 = vadd.f32 0.0, %v715
        %v717 = vpop.f32.mrb[0].mxu0
        %v718 = vpop.f32.mrb[0].mxu0
        %v719 = vadd.f32 0.0, %v718
        %v720 = vpop.f32.mrb[0].mxu0
        %721 = vdwg.mxu0
        %v722 = vpack.c.bf16 %v719, %v716
        %723 = vrot.lane.b32.xlu0 %v595, 120
        %v724 = vpop.permute.xlu0 %723
        %725 = vrot.lane.b32.xlu0 %v595, 88
        %v726 = vpop.permute.xlu0 %725
        %v728 = vsel %vm599, %v724, 0
        %v731 = vsel %vm599, %v726, 0
        %733 = vmatprep.subr.bf16.mxu0 0
        %734 = vmatpush1.bf16.xpose.msra.mxu0 %v731
        %735 = vmatprep.subr.bf16.mxu0 0
        %736 = vmatpush1.bf16.xpose.msra.mxu0 0
        %737 = vmatprep.subr.bf16.mxu0 0
        %738 = vmatpush1.bf16.xpose.msra.mxu0 0
        %739 = vmatprep.subr.bf16.mxu0 0
        %740 = vmatpush1.bf16.xpose.msra.mxu0 0
        %741 = vmatprep.subr.bf16.mxu0 0
        %742 = vmatpush1.bf16.xpose.msra.mxu0 0
        %743 = vmatprep.subr.bf16.mxu0 0
        %744 = vmatpush1.bf16.xpose.msra.mxu0 0
        %745 = vmatprep.subr.bf16.mxu0 0
        %746 = vmatpush1.bf16.xpose.msra.mxu0 0
        %747 = vmatprep.subr.bf16.mxu0 0
        %748 = vmatpush1.bf16.xpose.msra.mxu0 0
        %749 = vmatprep.subr.bf16.mxu0 0
        %750 = vmatpush1.bf16.xpose.msra.mxu0 0
        %751 = vmatprep.subr.bf16.mxu0 0
        %752 = vmatpush1.bf16.xpose.msra.mxu0 0
        %753 = vmatprep.subr.bf16.mxu0 0
        %754 = vmatpush1.bf16.xpose.msra.mxu0 0
        %755 = vmatprep.subr.bf16.mxu0 0
        %756 = vmatpush1.bf16.xpose.msra.mxu0 0
        %757 = vmatprep.subr.bf16.mxu0 0
        %758 = vmatpush1.bf16.xpose.msra.mxu0 0
        %759 = vmatprep.subr.bf16.mxu0 0
        %760 = vmatpush1.bf16.xpose.msra.mxu0 0
        %761 = vmatprep.subr.bf16.mxu0 0
        %762 = vmatpush1.bf16.xpose.msra.mxu0 0
        %763 = vmatprep.subr.bf16.mxu0 0
        %764 = vmatpush1.bf16.xpose.msra.mxu0 0
        %765 = vmatprep.mubr.bf16.mxu0 0
        %766 = vmatmul.mubr.bf16.gmra.mrb[0].mxu0 %v728
        %v767 = vpop.f32.mrb[0].mxu0
        %v768 = vadd.f32 0.0, %v767
        %v769 = vpop.f32.mrb[0].mxu0
        %v770 = vpop.f32.mrb[0].mxu0
        %v771 = vadd.f32 0.0, %v770
        %v772 = vpop.f32.mrb[0].mxu0
        %773 = vdwg.mxu0
        %v774 = vmul.f32 %v768, 0.35355338
        %v775 = vmul.f32 %v771, 0.35355338
        %v776 = vadd.f32 %v774, %v589
        %v777 = vadd.f32 %v775, %v590
        %v778 = vsel %vm651, %v776, -inf
        %779 = vmax.xlane.f32.xlu0 %v778
        %v780 = vpop.xlane.xlu0 %779
        %v781 = vsel %vm651, %v777, -inf
        %782 = vmax.xlane.f32.xlu0 %v781
        %v783 = vpop.xlane.xlu0 %782
        %v784 = vsub.f32 %v776, %v780
        %v785 = vsub.f32 %v777, %v783
        %v786 = vmul.f32 %v784, 1.442695
        %v787 = vpow.pop %v786
        %v788 = vmul.f32 %v785, 1.442695
        %v789 = vpow.pop %v788
        %v790 = vsel %vm651, %v787, 0.0
        %791 = vadd.xlane.f32.xlu0 %v790
        %v792 = vpop.xlane.xlu0 %791
        %v793 = vsel %vm651, %v789, 0.0
        %794 = vadd.xlane.f32.xlu0 %v793
        %v795 = vpop.xlane.xlu0 %794
        %v796 = vrcp.pop %v792
        %v797 = vmul.f32 %v787, %v796
        %v798 = vrcp.pop %v795
        %v799 = vmul.f32 %v789, %v798
        %v800 = vpack.c.bf16 %v799, %v797
        %801 = vrot.lane.b32.xlu0 %v595, 56
        %v802 = vpop.permute.xlu0 %801
        %v805 = vsel %vm651, %v800, 0
        %807 = vmatprep.subr.bf16.mxu0 0
        %808 = vmatpush1.bf16.msra.mxu0 %v802
        %809 = vmatprep.subr.bf16.mxu0 0
        %810 = vmatpush1.bf16.msra.mxu0 0
        %811 = vmatprep.subr.bf16.mxu0 0
        %812 = vmatpush1.bf16.msra.mxu0 0
        %813 = vmatprep.subr.bf16.mxu0 0
        %814 = vmatpush1.bf16.msra.mxu0 0
        %815 = vmatprep.subr.bf16.mxu0 0
        %816 = vmatpush1.bf16.msra.mxu0 0
        %817 = vmatprep.subr.bf16.mxu0 0
        %818 = vmatpush1.bf16.msra.mxu0 0
        %819 = vmatprep.subr.bf16.mxu0 0
        %820 = vmatpush1.bf16.msra.mxu0 0
        %821 = vmatprep.subr.bf16.mxu0 0
        %822 = vmatpush1.bf16.msra.mxu0 0
        %823 = vmatprep.subr.bf16.mxu0 0
        %824 = vmatpush1.bf16.msra.mxu0 0
        %825 = vmatprep.subr.bf16.mxu0 0
        %826 = vmatpush1.bf16.msra.mxu0 0
        %827 = vmatprep.subr.bf16.mxu0 0
        %828 = vmatpush1.bf16.msra.mxu0 0
        %829 = vmatprep.subr.bf16.mxu0 0
        %830 = vmatpush1.bf16.msra.mxu0 0
        %831 = vmatprep.subr.bf16.mxu0 0
        %832 = vmatpush1.bf16.msra.mxu0 0
        %833 = vmatprep.subr.bf16.mxu0 0
        %834 = vmatpush1.bf16.msra.mxu0 0
        %835 = vmatprep.subr.bf16.mxu0 0
        %836 = vmatpush1.bf16.msra.mxu0 0
        %837 = vmatprep.subr.bf16.mxu0 0
        %838 = vmatpush1.bf16.msra.mxu0 0
        %839 = vmatprep.mubr.bf16.mxu0 0
        %840 = vmatmul.mubr.bf16.gmra.mrb[0].mxu0 %v805
        %v841 = vpop.f32.mrb[0].mxu0
        %v842 = vadd.f32 0.0, %v841
        %v843 = vpop.f32.mrb[0].mxu0
        %v844 = vpop.f32.mrb[0].mxu0
        %v845 = vadd.f32 0.0, %v844
        %v846 = vpop.f32.mrb[0].mxu0
        %847 = vdwg.mxu0
        %v848 = vpack.c.bf16 %v845, %v842
        %v850 = vsel %vm599, %v848, 0
        %vm852 = vcmask 1043456
        %v854 = vsel %vm852, %v592, 0
        %856 = vmatprep.subr.bf16.mxu0 0
        %857 = vmatpush1.bf16.msra.mxu0 %v854
        %858 = vmatprep.subr.bf16.mxu0 0
        %859 = vmatpush1.bf16.msra.mxu0 0
        %860 = vmatprep.subr.bf16.mxu0 0
        %861 = vmatpush1.bf16.msra.mxu0 0
        %862 = vmatprep.subr.bf16.mxu0 0
        %863 = vmatpush1.bf16.msra.mxu0 0
        %864 = vmatprep.subr.bf16.mxu0 0
        %865 = vmatpush1.bf16.msra.mxu0 0
        %866 = vmatprep.subr.bf16.mxu0 0
        %867 = vmatpush1.bf16.msra.mxu0 0
        %868 = vmatprep.subr.bf16.mxu0 0
        %869 = vmatpush1.bf16.msra.mxu0 0
        %870 = vmatprep.subr.bf16.mxu0 0
        %871 = vmatpush1.bf16.msra.mxu0 0
        %872 = vmatprep.subr.bf16.mxu0 0
        %873 = vmatpush1.bf16.msra.mxu0 0
        %874 = vmatprep.subr.bf16.mxu0 0
        %875 = vmatpush1.bf16.msra.mxu0 0
        %876 = vmatprep.subr.bf16.mxu0 0
        %877 = vmatpush1.bf16.msra.mxu0 0
        %878 = vmatprep.subr.bf16.mxu0 0
        %879 = vmatpush1.bf16.msra.mxu0 0
        %880 = vmatprep.subr.bf16.mxu0 0
        %881 = vmatpush1.bf16.msra.mxu0 0
        %882 = vmatprep.subr.bf16.mxu0 0
        %883 = vmatpush1.bf16.msra.mxu0 0
        %884 = vmatprep.subr.bf16.mxu0 0
        %885 = vmatpush1.bf16.msra.mxu0 0
        %886 = vmatprep.subr.bf16.mxu0 0
        %887 = vmatpush1.bf16.msra.mxu0 0
        %888 = vmatprep.mubr.bf16.mxu0 0
        %889 = vmatmul.mubr.bf16.gmra.mrb[0].mxu0 %v850
        %v890 = vpop.f32.mrb[0].mxu0
        %v891 = vadd.f32 0.0, %v890
        %v892 = vpop.f32.mrb[0].mxu0
        %v893 = vpop.f32.mrb[0].mxu0
        %v894 = vadd.f32 0.0, %v893
        %v895 = vpop.f32.mrb[0].mxu0
        %896 = vdwg.mxu0
        %v898 = vsel %vm599, %v722, 0
        %v901 = vsel %vm852, %v591, 0
        %903 = vmatprep.subr.bf16.mxu0 0
        %904 = vmatpush1.bf16.msra.mxu0 %v901
        %905 = vmatprep.subr.bf16.mxu0 0
        %906 = vmatpush1.bf16.msra.mxu0 0
        %907 = vmatprep.subr.bf16.mxu0 0
        %908 = vmatpush1.bf16.msra.mxu0 0
        %909 = vmatprep.subr.bf16.mxu0 0
        %910 = vmatpush1.bf16.msra.mxu0 0
        %911 = vmatprep.subr.bf16.mxu0 0
        %912 = vmatpush1.bf16.msra.mxu0 0
        %913 = vmatprep.subr.bf16.mxu0 0
        %914 = vmatpush1.bf16.msra.mxu0 0
        %915 = vmatprep.subr.bf16.mxu0 0
        %916 = vmatpush1.bf16.msra.mxu0 0
        %917 = vmatprep.subr.bf16.mxu0 0
        %918 = vmatpush1.bf16.msra.mxu0 0
        %919 = vmatprep.subr.bf16.mxu0 0
        %920 = vmatpush1.bf16.msra.mxu0 0
        %921 = vmatprep.subr.bf16.mxu0 0
        %922 = vmatpush1.bf16.msra.mxu0 0
        %923 = vmatprep.subr.bf16.mxu0 0
        %924 = vmatpush1.bf16.msra.mxu0 0
        %925 = vmatprep.subr.bf16.mxu0 0
        %926 = vmatpush1.bf16.msra.mxu0 0
        %927 = vmatprep.subr.bf16.mxu0 0
        %928 = vmatpush1.bf16.msra.mxu0 0
        %929 = vmatprep.subr.bf16.mxu0 0
        %930 = vmatpush1.bf16.msra.mxu0 0
        %931 = vmatprep.subr.bf16.mxu0 0
        %932 = vmatpush1.bf16.msra.mxu0 0
        %933 = vmatprep.subr.bf16.mxu0 0
        %934 = vmatpush1.bf16.msra.mxu0 0
        %935 = vmatprep.mubr.bf16.mxu0 0
        %936 = vmatmul.mubr.bf16.gmra.mrb[0].mxu0 %v898
        %v937 = vpop.f32.mrb[0].mxu0
        %v938 = vadd.f32 %v891, %v937
        %v939 = vpop.f32.mrb[0].mxu0
        %v940 = vpop.f32.mrb[0].mxu0
        %v941 = vadd.f32 %v894, %v940
        %v942 = vpop.f32.mrb[0].mxu0
        %943 = vdwg.mxu0
        %944 = vrot.lane.b32.xlu0 %v595, 112
        %v945 = vpop.permute.xlu0 %944
        %946 = vrot.lane.b32.xlu0 %v595, 80
        %v947 = vpop.permute.xlu0 %946
        %v949 = vsel %vm599, %v945, 0
        %v952 = vsel %vm599, %v947, 0
        %954 = vmatprep.subr.bf16.mxu0 0
        %955 = vmatpush1.bf16.xpose.msra.mxu0 %v952
        %956 = vmatprep.subr.bf16.mxu0 0
        %957 = vmatpush1.bf16.xpose.msra.mxu0 0
        %958 = vmatprep.subr.bf16.mxu0 0
        %959 = vmatpush1.bf16.xpose.msra.mxu0 0
        %960 = vmatprep.subr.bf16.mxu0 0
        %961 = vmatpush1.bf16.xpose.msra.mxu0 0
        %962 = vmatprep.subr.bf16.mxu0 0
        %963 = vmatpush1.bf16.xpose.msra.mxu0 0
        %964 = vmatprep.subr.bf16.mxu0 0
        %965 = vmatpush1.bf16.xpose.msra.mxu0 0
        %966 = vmatprep.subr.bf16.mxu0 0
        %967 = vmatpush1.bf16.xpose.msra.mxu0 0
        %968 = vmatprep.subr.bf16.mxu0 0
        %969 = vmatpush1.bf16.xpose.msra.mxu0 0
        %970 = vmatprep.subr.bf16.mxu0 0
        %971 = vmatpush1.bf16.xpose.msra.mxu0 0
        %972 = vmatprep.subr.bf16.mxu0 0
        %973 = vmatpush1.bf16.xpose.msra.mxu0 0
        %974 = vmatprep.subr.bf16.mxu0 0
        %975 = vmatpush1.bf16.xpose.msra.mxu0 0
        %976 = vmatprep.subr.bf16.mxu0 0
        %977 = vmatpush1.bf16.xpose.msra.mxu0 0
        %978 = vmatprep.subr.bf16.mxu0 0
        %979 = vmatpush1.bf16.xpose.msra.mxu0 0
        %980 = vmatprep.subr.bf16.mxu0 0
        %981 = vmatpush1.bf16.xpose.msra.mxu0 0
        %982 = vmatprep.subr.bf16.mxu0 0
        %983 = vmatpush1.bf16.xpose.msra.mxu0 0
        %984 = vmatprep.subr.bf16.mxu0 0
        %985 = vmatpush1.bf16.xpose.msra.mxu0 0
        %986 = vmatprep.mubr.bf16.mxu0 0
        %987 = vmatmul.mubr.bf16.gmra.mrb[0].mxu0 %v949
        %v988 = vpop.f32.mrb[0].mxu0
        %v989 = vadd.f32 0.0, %v988
        %v990 = vpop.f32.mrb[0].mxu0
        %v991 = vpop.f32.mrb[0].mxu0
        %v992 = vadd.f32 0.0, %v991
        %v993 = vpop.f32.mrb[0].mxu0
        %994 = vdwg.mxu0
        %v995 = vmul.f32 %v989, 0.35355338
        %v996 = vmul.f32 %v992, 0.35355338
        %v997 = vadd.f32 %v995, %v589
        %v998 = vadd.f32 %v996, %v590
        %v999 = vsel %vm651, %v997, -inf
        %1000 = vmax.xlane.f32.xlu0 %v999
        %v1001 = vpop.xlane.xlu0 %1000
        %v1002 = vsel %vm651, %v998, -inf
        %1003 = vmax.xlane.f32.xlu0 %v1002
        %v1004 = vpop.xlane.xlu0 %1003
        %v1005 = vsub.f32 %v997, %v1001
        %v1006 = vsub.f32 %v998, %v1004
        %v1007 = vmul.f32 %v1005, 1.442695
        %v1008 = vpow.pop %v1007
        %v1009 = vmul.f32 %v1006, 1.442695
        %v1010 = vpow.pop %v1009
        %v1011 = vsel %vm651, %v1008, 0.0
        %1012 = vadd.xlane.f32.xlu0 %v1011
        %v1013 = vpop.xlane.xlu0 %1012
        %v1014 = vsel %vm651, %v1010, 0.0
        %1015 = vadd.xlane.f32.xlu0 %v1014
        %v1016 = vpop.xlane.xlu0 %1015
        %v1017 = vrcp.pop %v1013
        %v1018 = vmul.f32 %v1008, %v1017
        %v1019 = vrcp.pop %v1016
        %v1020 = vmul.f32 %v1010, %v1019
        %v1021 = vpack.c.bf16 %v1020, %v1018
        %1022 = vrot.lane.b32.xlu0 %v595, 48
        %v1023 = vpop.permute.xlu0 %1022
        %v1026 = vsel %vm651, %v1021, 0
        %1028 = vmatprep.subr.bf16.mxu0 0
        %1029 = vmatpush1.bf16.msra.mxu0 %v1023
        %1030 = vmatprep.subr.bf16.mxu0 0
        %1031 = vmatpush1.bf16.msra.mxu0 0
        %1032 = vmatprep.subr.bf16.mxu0 0
        %1033 = vmatpush1.bf16.msra.mxu0 0
        %1034 = vmatprep.subr.bf16.mxu0 0
        %1035 = vmatpush1.bf16.msra.mxu0 0
        %1036 = vmatprep.subr.bf16.mxu0 0
        %1037 = vmatpush1.bf16.msra.mxu0 0
        %1038 = vmatprep.subr.bf16.mxu0 0
        %1039 = vmatpush1.bf16.msra.mxu0 0
        %1040 = vmatprep.subr.bf16.mxu0 0
        %1041 = vmatpush1.bf16.msra.mxu0 0
        %1042 = vmatprep.subr.bf16.mxu0 0
        %1043 = vmatpush1.bf16.msra.mxu0 0
        %1044 = vmatprep.subr.bf16.mxu0 0
        %1045 = vmatpush1.bf16.msra.mxu0 0
        %1046 = vmatprep.subr.bf16.mxu0 0
        %1047 = vmatpush1.bf16.msra.mxu0 0
        %1048 = vmatprep.subr.bf16.mxu0 0
        %1049 = vmatpush1.bf16.msra.mxu0 0
        %1050 = vmatprep.subr.bf16.mxu0 0
        %1051 = vmatpush1.bf16.msra.mxu0 0
        %1052 = vmatprep.subr.bf16.mxu0 0
        %1053 = vmatpush1.bf16.msra.mxu0 0
        %1054 = vmatprep.subr.bf16.mxu0 0
        %1055 = vmatpush1.bf16.msra.mxu0 0
        %1056 = vmatprep.subr.bf16.mxu0 0
        %1057 = vmatpush1.bf16.msra.mxu0 0
        %1058 = vmatprep.subr.bf16.mxu0 0
        %1059 = vmatpush1.bf16.msra.mxu0 0
        %1060 = vmatprep.mubr.bf16.mxu0 0
        %1061 = vmatmul.mubr.bf16.gmra.mrb[0].mxu0 %v1026
        %v1062 = vpop.f32.mrb[0].mxu0
        %v1063 = vadd.f32 0.0, %v1062
        %v1064 = vpop.f32.mrb[0].mxu0
        %v1065 = vpop.f32.mrb[0].mxu0
        %v1066 = vadd.f32 0.0, %v1065
        %v1067 = vpop.f32.mrb[0].mxu0
        %1068 = vdwg.mxu0
        %v1069 = vpack.c.bf16 %v1066, %v1063
        %v1071 = vsel %vm599, %v1069, 0
        %v1074 = vsel %vm852, %v593, 0
        %1076 = vmatprep.subr.bf16.mxu0 0
        %1077 = vmatpush1.bf16.msra.mxu0 %v1074
        %1078 = vmatprep.subr.bf16.mxu0 0
        %1079 = vmatpush1.bf16.msra.mxu0 0
        %1080 = vmatprep.subr.bf16.mxu0 0
        %1081 = vmatpush1.bf16.msra.mxu0 0
        %1082 = vmatprep.subr.bf16.mxu0 0
        %1083 = vmatpush1.bf16.msra.mxu0 0
        %1084 = vmatprep.subr.bf16.mxu0 0
        %1085 = vmatpush1.bf16.msra.mxu0 0
        %1086 = vmatprep.subr.bf16.mxu0 0
        %1087 = vmatpush1.bf16.msra.mxu0 0
        %1088 = vmatprep.subr.bf16.mxu0 0
        %1089 = vmatpush1.bf16.msra.mxu0 0
        %1090 = vmatprep.subr.bf16.mxu0 0
        %1091 = vmatpush1.bf16.msra.mxu0 0
        %1092 = vmatprep.subr.bf16.mxu0 0
        %1093 = vmatpush1.bf16.msra.mxu0 0
        %1094 = vmatprep.subr.bf16.mxu0 0
        %1095 = vmatpush1.bf16.msra.mxu0 0
        %1096 = vmatprep.subr.bf16.mxu0 0
        %1097 = vmatpush1.bf16.msra.mxu0 0
        %1098 = vmatprep.subr.bf16.mxu0 0
        %1099 = vmatpush1.bf16.msra.mxu0 0
        %1100 = vmatprep.subr.bf16.mxu0 0
        %1101 = vmatpush1.bf16.msra.mxu0 0
        %1102 = vmatprep.subr.bf16.mxu0 0
        %1103 = vmatpush1.bf16.msra.mxu0 0
        %1104 = vmatprep.subr.bf16.mxu0 0
        %1105 = vmatpush1.bf16.msra.mxu0 0
        %1106 = vmatprep.subr.bf16.mxu0 0
        %1107 = vmatpush1.bf16.msra.mxu0 0
        %1108 = vmatprep.mubr.bf16.mxu0 0
        %1109 = vmatmul.mubr.bf16.gmra.mrb[0].mxu0 %v1071
        %v1110 = vpop.f32.mrb[0].mxu0
        %v1111 = vadd.f32 0.0, %v1110
        %v1112 = vpop.f32.mrb[0].mxu0
        %v1113 = vpop.f32.mrb[0].mxu0
        %v1114 = vadd.f32 0.0, %v1113
        %v1115 = vpop.f32.mrb[0].mxu0
        %1116 = vdwg.mxu0
        %v1117 = vadd.f32 %v938, %v1111
        %v1118 = vadd.f32 %v941, %v1114
        %1119 = vrot.lane.b32.xlu0 %v595, 104
        %v1120 = vpop.permute.xlu0 %1119
        %1121 = vrot.lane.b32.xlu0 %v595, 72
        %v1122 = vpop.permute.xlu0 %1121
        %v1124 = vsel %vm599, %v1120, 0
        %v1127 = vsel %vm599, %v1122, 0
        %1129 = vmatprep.subr.bf16.mxu0 0
        %1130 = vmatpush1.bf16.xpose.msra.mxu0 %v1127
        %1131 = vmatprep.subr.bf16.mxu0 0
        %1132 = vmatpush1.bf16.xpose.msra.mxu0 0
        %1133 = vmatprep.subr.bf16.mxu0 0
        %1134 = vmatpush1.bf16.xpose.msra.mxu0 0
        %1135 = vmatprep.subr.bf16.mxu0 0
        %1136 = vmatpush1.bf16.xpose.msra.mxu0 0
        %1137 = vmatprep.subr.bf16.mxu0 0
        %1138 = vmatpush1.bf16.xpose.msra.mxu0 0
        %1139 = vmatprep.subr.bf16.mxu0 0
        %1140 = vmatpush1.bf16.xpose.msra.mxu0 0
        %1141 = vmatprep.subr.bf16.mxu0 0
        %1142 = vmatpush1.bf16.xpose.msra.mxu0 0
        %1143 = vmatprep.subr.bf16.mxu0 0
        %1144 = vmatpush1.bf16.xpose.msra.mxu0 0
        %1145 = vmatprep.subr.bf16.mxu0 0
        %1146 = vmatpush1.bf16.xpose.msra.mxu0 0
        %1147 = vmatprep.subr.bf16.mxu0 0
        %1148 = vmatpush1.bf16.xpose.msra.mxu0 0
        %1149 = vmatprep.subr.bf16.mxu0 0
        %1150 = vmatpush1.bf16.xpose.msra.mxu0 0
        %1151 = vmatprep.subr.bf16.mxu0 0
        %1152 = vmatpush1.bf16.xpose.msra.mxu0 0
        %1153 = vmatprep.subr.bf16.mxu0 0
        %1154 = vmatpush1.bf16.xpose.msra.mxu0 0
        %1155 = vmatprep.subr.bf16.mxu0 0
        %1156 = vmatpush1.bf16.xpose.msra.mxu0 0
        %1157 = vmatprep.subr.bf16.mxu0 0
        %1158 = vmatpush1.bf16.xpose.msra.mxu0 0
        %1159 = vmatprep.subr.bf16.mxu0 0
        %1160 = vmatpush1.bf16.xpose.msra.mxu0 0
        %1161 = vmatprep.mubr.bf16.mxu0 0
        %1162 = vmatmul.mubr.bf16.gmra.mrb[0].mxu0 %v1124
        %v1163 = vpop.f32.mrb[0].mxu0
        %v1164 = vadd.f32 0.0, %v1163
        %v1165 = vpop.f32.mrb[0].mxu0
        %v1166 = vpop.f32.mrb[0].mxu0
        %v1167 = vadd.f32 0.0, %v1166
        %v1168 = vpop.f32.mrb[0].mxu0
        %1169 = vdwg.mxu0
        %v1170 = vmul.f32 %v1164, 0.35355338
        %v1171 = vmul.f32 %v1167, 0.35355338
        %v1172 = vadd.f32 %v1170, %v589
        %v1173 = vadd.f32 %v1171, %v590
        %v1174 = vsel %vm651, %v1172, -inf
        %1175 = vmax.xlane.f32.xlu0 %v1174
        %v1176 = vpop.xlane.xlu0 %1175
        %v1177 = vsel %vm651, %v1173, -inf
        %1178 = vmax.xlane.f32.xlu0 %v1177
        %v1179 = vpop.xlane.xlu0 %1178
        %v1180 = vsub.f32 %v1172, %v1176
        %v1181 = vsub.f32 %v1173, %v1179
        %v1182 = vmul.f32 %v1180, 1.442695
        %v1183 = vpow.pop %v1182
        %v1184 = vmul.f32 %v1181, 1.442695
        %v1185 = vpow.pop %v1184
        %v1186 = vsel %vm651, %v1183, 0.0
        %1187 = vadd.xlane.f32.xlu0 %v1186
        %v1188 = vpop.xlane.xlu0 %1187
        %v1189 = vsel %vm651, %v1185, 0.0
        %1190 = vadd.xlane.f32.xlu0 %v1189
        %v1191 = vpop.xlane.xlu0 %1190
        %v1192 = vrcp.pop %v1188
        %v1193 = vmul.f32 %v1183, %v1192
        %v1194 = vrcp.pop %v1191
        %v1195 = vmul.f32 %v1185, %v1194
        %v1196 = vpack.c.bf16 %v1195, %v1193
        %1197 = vrot.lane.b32.xlu0 %v595, 40
        %v1198 = vpop.permute.xlu0 %1197
        %v1201 = vsel %vm651, %v1196, 0
        %1203 = vmatprep.subr.bf16.mxu0 0
        %1204 = vmatpush1.bf16.msra.mxu0 %v1198
        %1205 = vmatprep.subr.bf16.mxu0 0
        %1206 = vmatpush1.bf16.msra.mxu0 0
        %1207 = vmatprep.subr.bf16.mxu0 0
        %1208 = vmatpush1.bf16.msra.mxu0 0
        %1209 = vmatprep.subr.bf16.mxu0 0
        %1210 = vmatpush1.bf16.msra.mxu0 0
        %1211 = vmatprep.subr.bf16.mxu0 0
        %1212 = vmatpush1.bf16.msra.mxu0 0
        %1213 = vmatprep.subr.bf16.mxu0 0
        %1214 = vmatpush1.bf16.msra.mxu0 0
        %1215 = vmatprep.subr.bf16.mxu0 0
        %1216 = vmatpush1.bf16.msra.mxu0 0
        %1217 = vmatprep.subr.bf16.mxu0 0
        %1218 = vmatpush1.bf16.msra.mxu0 0
        %1219 = vmatprep.subr.bf16.mxu0 0
        %1220 = vmatpush1.bf16.msra.mxu0 0
        %1221 = vmatprep.subr.bf16.mxu0 0
        %1222 = vmatpush1.bf16.msra.mxu0 0
        %1223 = vmatprep.subr.bf16.mxu0 0
        %1224 = vmatpush1.bf16.msra.mxu0 0
        %1225 = vmatprep.subr.bf16.mxu0 0
        %1226 = vmatpush1.bf16.msra.mxu0 0
        %1227 = vmatprep.subr.bf16.mxu0 0
        %1228 = vmatpush1.bf16.msra.mxu0 0
        %1229 = vmatprep.subr.bf16.mxu0 0
        %1230 = vmatpush1.bf16.msra.mxu0 0
        %1231 = vmatprep.subr.bf16.mxu0 0
        %1232 = vmatpush1.bf16.msra.mxu0 0
        %1233 = vmatprep.subr.bf16.mxu0 0
        %1234 = vmatpush1.bf16.msra.mxu0 0
        %1235 = vmatprep.mubr.bf16.mxu0 0
        %1236 = vmatmul.mubr.bf16.gmra.mrb[0].mxu0 %v1201
        %v1237 = vpop.f32.mrb[0].mxu0
        %v1238 = vadd.f32 0.0, %v1237
        %v1239 = vpop.f32.mrb[0].mxu0
        %v1240 = vpop.f32.mrb[0].mxu0
        %v1241 = vadd.f32 0.0, %v1240
        %v1242 = vpop.f32.mrb[0].mxu0
        %1243 = vdwg.mxu0
        %v1244 = vpack.c.bf16 %v1241, %v1238
        %v1246 = vsel %vm599, %v1244, 0
        %v1249 = vsel %vm852, %v594, 0
        %1251 = vmatprep.subr.bf16.mxu0 0
        %1252 = vmatpush1.bf16.msra.mxu0 %v1249
        %1253 = vmatprep.subr.bf16.mxu0 0
        %1254 = vmatpush1.bf16.msra.mxu0 0
        %1255 = vmatprep.subr.bf16.mxu0 0
        %1256 = vmatpush1.bf16.msra.mxu0 0
        %1257 = vmatprep.subr.bf16.mxu0 0
        %1258 = vmatpush1.bf16.msra.mxu0 0
        %1259 = vmatprep.subr.bf16.mxu0 0
        %1260 = vmatpush1.bf16.msra.mxu0 0
        %1261 = vmatprep.subr.bf16.mxu0 0
        %1262 = vmatpush1.bf16.msra.mxu0 0
        %1263 = vmatprep.subr.bf16.mxu0 0
        %1264 = vmatpush1.bf16.msra.mxu0 0
        %1265 = vmatprep.subr.bf16.mxu0 0
        %1266 = vmatpush1.bf16.msra.mxu0 0
        %1267 = vmatprep.subr.bf16.mxu0 0
        %1268 = vmatpush1.bf16.msra.mxu0 0
        %1269 = vmatprep.subr.bf16.mxu0 0
        %1270 = vmatpush1.bf16.msra.mxu0 0
        %1271 = vmatprep.subr.bf16.mxu0 0
        %1272 = vmatpush1.bf16.msra.mxu0 0
        %1273 = vmatprep.subr.bf16.mxu0 0
        %1274 = vmatpush1.bf16.msra.mxu0 0
        %1275 = vmatprep.subr.bf16.mxu0 0
        %1276 = vmatpush1.bf16.msra.mxu0 0
        %1277 = vmatprep.subr.bf16.mxu0 0
        %1278 = vmatpush1.bf16.msra.mxu0 0
        %1279 = vmatprep.subr.bf16.mxu0 0
        %1280 = vmatpush1.bf16.msra.mxu0 0
        %1281 = vmatprep.subr.bf16.mxu0 0
        %1282 = vmatpush1.bf16.msra.mxu0 0
        %1283 = vmatprep.mubr.bf16.mxu0 0
        %1284 = vmatmul.mubr.bf16.gmra.mrb[0].mxu0 %v1246
        %v1285 = vpop.f32.mrb[0].mxu0
        %v1286 = vadd.f32 0.0, %v1285
        %v1287 = vpop.f32.mrb[0].mxu0
        %v1288 = vpop.f32.mrb[0].mxu0
        %v1289 = vadd.f32 0.0, %v1288
        %v1290 = vpop.f32.mrb[0].mxu0
        %1291 = vdwg.mxu0
        %v1292 = vadd.f32 %v1117, %v1286
        %v1293 = vadd.f32 %v1118, %v1289
        %v1294 = vld [vmem:[%s493] sm:$0x3f]
        %v1295 = vadd.f32 %v518, %v1292
        %v1296 = vadd.f32 %v519, %v1293
        %v1297 = vlaneseq
        %v1298 = vshrl.u32 %v1297, 7
        %v1299 = vsub.s32 0, %v1298
        %v1300 = vrot.slane %v1294, %v1299
        %v1301 = vadd.f32 %v1295, %v1300
        %v1302 = vadd.f32 %v1296, %v1300
        %v1303 = vsel %vm544, %v1301, 0.0
        %1304 = vadd.xlane.f32.xlu0 %v1303
        %v1305 = vpop.xlane.xlu0 %1304
        %v1306 = vsel %vm544, %v1302, 0.0
        %1307 = vadd.xlane.f32.xlu0 %v1306
        %v1308 = vpop.xlane.xlu0 %1307
        %v1309 = vrcp.pop 32.0
        %v1310 = vmul.f32 %v1305, %v1309
        %v1311 = vmul.f32 %v1308, %v1309
        %v1312 = vsub.f32 %v1301, %v1310
        %v1313 = vsub.f32 %v1302, %v1311
        %v1314 = vmul.f32 %v1312, %v1312
        %v1315 = vmul.f32 %v1313, %v1313
        %v1316 = vsel %vm544, %v1314, 0.0
        %1317 = vadd.xlane.f32.xlu0 %v1316
        %v1318 = vpop.xlane.xlu0 %1317
        %v1319 = vsel %vm544, %v1315, 0.0
        %1320 = vadd.xlane.f32.xlu0 %v1319
        %v1321 = vpop.xlane.xlu0 %1320
        %v1322 = vmul.f32 %v1318, %v1309
        %v1323 = vmul.f32 %v1321, %v1309
        %v1324 = vadd.f32 %v1322, 1e-05
        %v1325 = vadd.f32 %v1323, 1e-05
        %v1326 = vrsqrt.pop %v1324
        %v1327 = vrsqrt.pop %v1325
        %v1328 = vmul.f32 %v1312, %v1326
        %v1329 = vmul.f32 %v1313, %v1327
        %v1330 = vlaneseq
        %v1331 = vshrl.u32 %v1330, 7
        %v1332 = vsub.s32 1, %v1331
        %v1333 = vrot.slane %v1294, %v1332
        %v1334 = vmul.f32 %v1328, %v1333
        %v1335 = vmul.f32 %v1329, %v1333
        %v1336 = vlaneseq
        %v1337 = vshrl.u32 %v1336, 7
        %v1338 = vsub.s32 2, %v1337
        %v1339 = vrot.slane %v1294, %v1338
        %v1340 = vadd.f32 %v1334, %v1339
        %v1341 = vadd.f32 %v1335, %v1339
        %v1342 = vpack.c.bf16 %v1341, %v1340
        %v1343 = vld [vmem:[%s498] sm:$0xff]
        %v1344 = vld [vmem:[%s498 + $0x8] sm:$0xff]
        %v1345 = vld [vmem:[%s498 + $0x10] sm:$0xff]
        %v1346 = vld [vmem:[%s498 + $0x18] sm:$0xff]
        %v1347 = vld [vmem:[%s498 + $0x20] sm:$0xff]
        %v1348 = vld [vmem:[%s498 + $0x28] sm:$0xff]
        %v1349 = vld [vmem:[%s498 + $0x30] sm:$0xff]
        %v1350 = vld [vmem:[%s498 + $0x38] sm:$0xff]
        %v1351 = vld [vmem:[%s498 + $0x40] sm:$0xff]
        %v1352 = vld [vmem:[%s498 + $0x48] sm:$0xff]
        %v1353 = vld [vmem:[%s498 + $0x50] sm:$0xff]
        %v1354 = vld [vmem:[%s498 + $0x58] sm:$0xff]
        %v1355 = vld [vmem:[%s498 + $0x60] sm:$0xff]
        %v1356 = vld [vmem:[%s498 + $0x68] sm:$0xff]
        %v1357 = vld [vmem:[%s498 + $0x70] sm:$0xff]
        %v1358 = vld [vmem:[%s498 + $0x78] sm:$0xff]
        %v1359 = vld [vmem:[%s498 + $0x80] sm:$0xff]
        %v1360 = vld [vmem:[%s498 + $0x88] sm:$0xff]
        %v1361 = vld [vmem:[%s498 + $0x90] sm:$0xff]
        %v1362 = vld [vmem:[%s498 + $0x98] sm:$0xff]
        %v1363 = vld [vmem:[%s498 + $0xa0] sm:$0xff]
        %v1364 = vld [vmem:[%s498 + $0xa8] sm:$0xff]
        %v1365 = vld [vmem:[%s498 + $0xb0] sm:$0xff]
        %v1366 = vld [vmem:[%s498 + $0xb8] sm:$0xff]
        %v1367 = vld [vmem:[%s498 + $0xc0] sm:$0xff]
        %v1368 = vld [vmem:[%s498 + $0xc8] sm:$0xff]
        %v1369 = vld [vmem:[%s498 + $0xd0] sm:$0xff]
        %v1370 = vld [vmem:[%s498 + $0xd8] sm:$0xff]
        %v1371 = vld [vmem:[%s498 + $0xe0] sm:$0xff]
        %v1372 = vld [vmem:[%s498 + $0xe8] sm:$0xff]
        %v1373 = vld [vmem:[%s498 + $0xf0] sm:$0xff]
        %v1374 = vld [vmem:[%s498 + $0xf8] sm:$0xff]
        %v1375 = vld [vmem:[%s502] sm:$0xff]
        %v1376 = vld [vmem:[%s502 + $0x8] sm:$0xff]
        %v1379 = vlaneseq
        %v1380 = vshrl.u32 %v1379, 7
        %v1381 = vsub.s32 0, %v1380
        %v1382 = vrot.slane %v1375, %v1381
        %v1383 = vlaneseq
        %v1384 = vshrl.u32 %v1383, 7
        %v1385 = vsub.s32 1, %v1384
        %v1386 = vrot.slane %v1375, %v1385
        %v1387 = vlaneseq
        %v1388 = vshrl.u32 %v1387, 7
        %v1389 = vsub.s32 2, %v1388
        %v1390 = vrot.slane %v1375, %v1389
        %v1391 = vlaneseq
        %v1392 = vshrl.u32 %v1391, 7
        %v1393 = vsub.s32 3, %v1392
        %v1394 = vrot.slane %v1375, %v1393
        %v1395 = vlaneseq
        %v1396 = vshrl.u32 %v1395, 7
        %v1397 = vsub.s32 4, %v1396
        %v1398 = vrot.slane %v1375, %v1397
        %v1399 = vlaneseq
        %v1400 = vshrl.u32 %v1399, 7
        %v1401 = vsub.s32 5, %v1400
        %v1402 = vrot.slane %v1375, %v1401
        %v1403 = vlaneseq
        %v1404 = vshrl.u32 %v1403, 7
        %v1405 = vsub.s32 6, %v1404
        %v1406 = vrot.slane %v1375, %v1405
        %v1407 = vlaneseq
        %v1408 = vshrl.u32 %v1407, 7
        %v1409 = vsub.s32 7, %v1408
        %v1410 = vrot.slane %v1375, %v1409
        %v1411 = vlaneseq
        %v1412 = vshrl.u32 %v1411, 7
        %v1413 = vsub.s32 0, %v1412
        %v1414 = vrot.slane %v1376, %v1413
        %v1415 = vlaneseq
        %v1416 = vshrl.u32 %v1415, 7
        %v1417 = vsub.s32 1, %v1416
        %v1418 = vrot.slane %v1376, %v1417
        %v1419 = vlaneseq
        %v1420 = vshrl.u32 %v1419, 7
        %v1421 = vsub.s32 2, %v1420
        %v1422 = vrot.slane %v1376, %v1421
        %v1423 = vlaneseq
        %v1424 = vshrl.u32 %v1423, 7
        %v1425 = vsub.s32 3, %v1424
        %v1426 = vrot.slane %v1376, %v1425
        %v1427 = vlaneseq
        %v1428 = vshrl.u32 %v1427, 7
        %v1429 = vsub.s32 4, %v1428
        %v1430 = vrot.slane %v1376, %v1429
        %v1431 = vlaneseq
        %v1432 = vshrl.u32 %v1431, 7
        %v1433 = vsub.s32 5, %v1432
        %v1434 = vrot.slane %v1376, %v1433
        %v1435 = vlaneseq
        %v1436 = vshrl.u32 %v1435, 7
        %v1437 = vsub.s32 6, %v1436
        %v1438 = vrot.slane %v1376, %v1437
        %v1439 = vlaneseq
        %v1440 = vshrl.u32 %v1439, 7
        %v1441 = vsub.s32 7, %v1440
        %v1442 = vrot.slane %v1376, %v1441
        %v1491 = vunpack.c.l.b16 %v1343
        %v1492 = vunpack.c.h.b16 %v1343
        %v1493 = vunpack.c.l.b16 %v1344
        %v1494 = vunpack.c.h.b16 %v1344
        %v1495 = vunpack.c.l.b16 %v1345
        %v1496 = vunpack.c.h.b16 %v1345
        %v1497 = vunpack.c.l.b16 %v1346
        %v1498 = vunpack.c.h.b16 %v1346
        %v1499 = vunpack.c.l.b16 %v1347
        %v1500 = vunpack.c.h.b16 %v1347
        %v1501 = vunpack.c.l.b16 %v1348
        %v1502 = vunpack.c.h.b16 %v1348
        %v1503 = vunpack.c.l.b16 %v1349
        %v1504 = vunpack.c.h.b16 %v1349
        %v1505 = vunpack.c.l.b16 %v1350
        %v1506 = vunpack.c.h.b16 %v1350
        %v1507 = vunpack.c.l.b16 %v1351
        %v1508 = vunpack.c.h.b16 %v1351
        %v1509 = vunpack.c.l.b16 %v1352
        %v1510 = vunpack.c.h.b16 %v1352
        %v1511 = vunpack.c.l.b16 %v1353
        %v1512 = vunpack.c.h.b16 %v1353
        %v1513 = vunpack.c.l.b16 %v1354
        %v1514 = vunpack.c.h.b16 %v1354
        %v1515 = vunpack.c.l.b16 %v1355
        %v1516 = vunpack.c.h.b16 %v1355
        %v1517 = vunpack.c.l.b16 %v1356
        %v1518 = vunpack.c.h.b16 %v1356
        %v1519 = vunpack.c.l.b16 %v1357
        %v1520 = vunpack.c.h.b16 %v1357
        %v1521 = vunpack.c.l.b16 %v1358
        %v1522 = vunpack.c.h.b16 %v1358
        %v1523 = vunpack.c.l.b16 %v1359
        %v1524 = vunpack.c.h.b16 %v1359
        %v1525 = vunpack.c.l.b16 %v1360
        %v1526 = vunpack.c.h.b16 %v1360
        %v1527 = vunpack.c.l.b16 %v1361
        %v1528 = vunpack.c.h.b16 %v1361
        %v1529 = vunpack.c.l.b16 %v1362
        %v1530 = vunpack.c.h.b16 %v1362
        %v1531 = vunpack.c.l.b16 %v1363
        %v1532 = vunpack.c.h.b16 %v1363
        %v1533 = vunpack.c.l.b16 %v1364
        %v1534 = vunpack.c.h.b16 %v1364
        %v1535 = vunpack.c.l.b16 %v1365
        %v1536 = vunpack.c.h.b16 %v1365
        %v1537 = vunpack.c.l.b16 %v1366
        %v1538 = vunpack.c.h.b16 %v1366
        %v1539 = vunpack.c.l.b16 %v1367
        %v1540 = vunpack.c.h.b16 %v1367
        %v1541 = vunpack.c.l.b16 %v1368
        %v1542 = vunpack.c.h.b16 %v1368
        %v1543 = vunpack.c.l.b16 %v1369
        %v1544 = vunpack.c.h.b16 %v1369
        %v1545 = vunpack.c.l.b16 %v1370
        %v1546 = vunpack.c.h.b16 %v1370
        %v1547 = vunpack.c.l.b16 %v1371
        %v1548 = vunpack.c.h.b16 %v1371
        %v1549 = vunpack.c.l.b16 %v1372
        %v1550 = vunpack.c.h.b16 %v1372
        %v1551 = vunpack.c.l.b16 %v1373
        %v1552 = vunpack.c.h.b16 %v1373
        %v1553 = vunpack.c.l.b16 %v1374
        %v1554 = vunpack.c.h.b16 %v1374
        %v1555 = vpack.c.b16 %v1507, %v1491
        %v1556 = vpack.c.b16 %v1508, %v1492
        %v1557 = vpack.c.b16 %v1509, %v1493
        %v1558 = vpack.c.b16 %v1510, %v1494
        %v1559 = vpack.c.b16 %v1511, %v1495
        %v1560 = vpack.c.b16 %v1512, %v1496
        %v1561 = vpack.c.b16 %v1513, %v1497
        %v1562 = vpack.c.b16 %v1514, %v1498
        %v1563 = vpack.c.b16 %v1515, %v1499
        %v1564 = vpack.c.b16 %v1516, %v1500
        %v1565 = vpack.c.b16 %v1517, %v1501
        %v1566 = vpack.c.b16 %v1518, %v1502
        %v1567 = vpack.c.b16 %v1519, %v1503
        %v1568 = vpack.c.b16 %v1520, %v1504
        %v1569 = vpack.c.b16 %v1521, %v1505
        %v1570 = vpack.c.b16 %v1522, %v1506
        %v1571 = vpack.c.b16 %v1539, %v1523
        %v1572 = vpack.c.b16 %v1540, %v1524
        %v1573 = vpack.c.b16 %v1541, %v1525
        %v1574 = vpack.c.b16 %v1542, %v1526
        %v1575 = vpack.c.b16 %v1543, %v1527
        %v1576 = vpack.c.b16 %v1544, %v1528
        %v1577 = vpack.c.b16 %v1545, %v1529
        %v1578 = vpack.c.b16 %v1546, %v1530
        %v1579 = vpack.c.b16 %v1547, %v1531
        %v1580 = vpack.c.b16 %v1548, %v1532
        %v1581 = vpack.c.b16 %v1549, %v1533
        %v1582 = vpack.c.b16 %v1550, %v1534
        %v1583 = vpack.c.b16 %v1551, %v1535
        %v1584 = vpack.c.b16 %v1552, %v1536
        %v1585 = vpack.c.b16 %v1553, %v1537
        %v1586 = vpack.c.b16 %v1554, %v1538
        %v1620 = vsel %vm544, %v1342, 0
        %1622 = vmatprep.subr.bf16.mxu0 %v1556
        %1623 = vmatpush1.bf16.msra.mxu0 %v1555
        %1624 = vmatprep.subr.bf16.mxu0 %v1572
        %1625 = vmatpush1.bf16.msra.mxu0 %v1571
        %1626 = vmatprep.subr.bf16.mxu0 0
        %1627 = vmatpush1.bf16.msra.mxu0 0
        %1628 = vmatprep.subr.bf16.mxu0 0
        %1629 = vmatpush1.bf16.msra.mxu0 0
        %1630 = vmatprep.subr.bf16.mxu0 0
        %1631 = vmatpush1.bf16.msra.mxu0 0
        %1632 = vmatprep.subr.bf16.mxu0 0
        %1633 = vmatpush1.bf16.msra.mxu0 0
        %1634 = vmatprep.subr.bf16.mxu0 0
        %1635 = vmatpush1.bf16.msra.mxu0 0
        %1636 = vmatprep.subr.bf16.mxu0 0
        %1637 = vmatpush1.bf16.msra.mxu0 0
        %1638 = vmatprep.subr.bf16.mxu0 0
        %1639 = vmatpush1.bf16.msra.mxu0 0
        %1640 = vmatprep.subr.bf16.mxu0 0
        %1641 = vmatpush1.bf16.msra.mxu0 0
        %1642 = vmatprep.subr.bf16.mxu0 0
        %1643 = vmatpush1.bf16.msra.mxu0 0
        %1644 = vmatprep.subr.bf16.mxu0 0
        %1645 = vmatpush1.bf16.msra.mxu0 0
        %1646 = vmatprep.subr.bf16.mxu0 0
        %1647 = vmatpush1.bf16.msra.mxu0 0
        %1648 = vmatprep.subr.bf16.mxu0 0
        %1649 = vmatpush1.bf16.msra.mxu0 0
        %1650 = vmatprep.subr.bf16.mxu0 0
        %1651 = vmatpush1.bf16.msra.mxu0 0
        %1652 = vmatprep.subr.bf16.mxu0 0
        %1653 = vmatpush1.bf16.msra.mxu0 0
        %1654 = vmatprep.mubr.bf16.mxu0 0
        %1655 = vmatmul.mubr.bf16.gmra.mrb[0].mxu0 %v1620
        %v1656 = vpop.f32.mrb[0].mxu0
        %v1657 = vadd.f32 %v1382, %v1656
        %v1658 = vpop.f32.mrb[0].mxu0
        %v1659 = vadd.f32 %v1386, %v1658
        %v1660 = vpop.f32.mrb[0].mxu0
        %v1661 = vadd.f32 %v1382, %v1660
        %v1662 = vpop.f32.mrb[0].mxu0
        %v1663 = vadd.f32 %v1386, %v1662
        %1664 = vdwg.mxu0
        %1665 = vmatprep.subr.bf16.mxu0 %v1558
        %1666 = vmatpush1.bf16.msra.mxu0 %v1557
        %1667 = vmatprep.subr.bf16.mxu0 %v1574
        %1668 = vmatpush1.bf16.msra.mxu0 %v1573
        %1669 = vmatprep.subr.bf16.mxu0 0
        %1670 = vmatpush1.bf16.msra.mxu0 0
        %1671 = vmatprep.subr.bf16.mxu0 0
        %1672 = vmatpush1.bf16.msra.mxu0 0
        %1673 = vmatprep.subr.bf16.mxu0 0
        %1674 = vmatpush1.bf16.msra.mxu0 0
        %1675 = vmatprep.subr.bf16.mxu0 0
        %1676 = vmatpush1.bf16.msra.mxu0 0
        %1677 = vmatprep.subr.bf16.mxu0 0
        %1678 = vmatpush1.bf16.msra.mxu0 0
        %1679 = vmatprep.subr.bf16.mxu0 0
        %1680 = vmatpush1.bf16.msra.mxu0 0
        %1681 = vmatprep.subr.bf16.mxu0 0
        %1682 = vmatpush1.bf16.msra.mxu0 0
        %1683 = vmatprep.subr.bf16.mxu0 0
        %1684 = vmatpush1.bf16.msra.mxu0 0
        %1685 = vmatprep.subr.bf16.mxu0 0
        %1686 = vmatpush1.bf16.msra.mxu0 0
        %1687 = vmatprep.subr.bf16.mxu0 0
        %1688 = vmatpush1.bf16.msra.mxu0 0
        %1689 = vmatprep.subr.bf16.mxu0 0
        %1690 = vmatpush1.bf16.msra.mxu0 0
        %1691 = vmatprep.subr.bf16.mxu0 0
        %1692 = vmatpush1.bf16.msra.mxu0 0
        %1693 = vmatprep.subr.bf16.mxu0 0
        %1694 = vmatpush1.bf16.msra.mxu0 0
        %1695 = vmatprep.subr.bf16.mxu0 0
        %1696 = vmatpush1.bf16.msra.mxu0 0
        %1697 = vmatprep.mubr.bf16.mxu0 0
        %1698 = vmatmul.mubr.bf16.gmra.mrb[0].mxu0 %v1620
        %v1699 = vpop.f32.mrb[0].mxu0
        %v1700 = vadd.f32 %v1390, %v1699
        %v1701 = vpop.f32.mrb[0].mxu0
        %v1702 = vadd.f32 %v1394, %v1701
        %v1703 = vpop.f32.mrb[0].mxu0
        %v1704 = vadd.f32 %v1390, %v1703
        %v1705 = vpop.f32.mrb[0].mxu0
        %v1706 = vadd.f32 %v1394, %v1705
        %1707 = vdwg.mxu0
        %1708 = vmatprep.subr.bf16.mxu0 %v1560
        %1709 = vmatpush1.bf16.msra.mxu0 %v1559
        %1710 = vmatprep.subr.bf16.mxu0 %v1576
        %1711 = vmatpush1.bf16.msra.mxu0 %v1575
        %1712 = vmatprep.subr.bf16.mxu0 0
        %1713 = vmatpush1.bf16.msra.mxu0 0
        %1714 = vmatprep.subr.bf16.mxu0 0
        %1715 = vmatpush1.bf16.msra.mxu0 0
        %1716 = vmatprep.subr.bf16.mxu0 0
        %1717 = vmatpush1.bf16.msra.mxu0 0
        %1718 = vmatprep.subr.bf16.mxu0 0
        %1719 = vmatpush1.bf16.msra.mxu0 0
        %1720 = vmatprep.subr.bf16.mxu0 0
        %1721 = vmatpush1.bf16.msra.mxu0 0
        %1722 = vmatprep.subr.bf16.mxu0 0
        %1723 = vmatpush1.bf16.msra.mxu0 0
        %1724 = vmatprep.subr.bf16.mxu0 0
        %1725 = vmatpush1.bf16.msra.mxu0 0
        %1726 = vmatprep.subr.bf16.mxu0 0
        %1727 = vmatpush1.bf16.msra.mxu0 0
        %1728 = vmatprep.subr.bf16.mxu0 0
        %1729 = vmatpush1.bf16.msra.mxu0 0
        %1730 = vmatprep.subr.bf16.mxu0 0
        %1731 = vmatpush1.bf16.msra.mxu0 0
        %1732 = vmatprep.subr.bf16.mxu0 0
        %1733 = vmatpush1.bf16.msra.mxu0 0
        %1734 = vmatprep.subr.bf16.mxu0 0
        %1735 = vmatpush1.bf16.msra.mxu0 0
        %1736 = vmatprep.subr.bf16.mxu0 0
        %1737 = vmatpush1.bf16.msra.mxu0 0
        %1738 = vmatprep.subr.bf16.mxu0 0
        %1739 = vmatpush1.bf16.msra.mxu0 0
        %1740 = vmatprep.mubr.bf16.mxu0 0
        %1741 = vmatmul.mubr.bf16.gmra.mrb[0].mxu0 %v1620
        %v1742 = vpop.f32.mrb[0].mxu0
        %v1743 = vadd.f32 %v1398, %v1742
        %v1744 = vpop.f32.mrb[0].mxu0
        %v1745 = vadd.f32 %v1402, %v1744
        %v1746 = vpop.f32.mrb[0].mxu0
        %v1747 = vadd.f32 %v1398, %v1746
        %v1748 = vpop.f32.mrb[0].mxu0
        %v1749 = vadd.f32 %v1402, %v1748
        %1750 = vdwg.mxu0
        %1751 = vmatprep.subr.bf16.mxu0 %v1562
        %1752 = vmatpush1.bf16.msra.mxu0 %v1561
        %1753 = vmatprep.subr.bf16.mxu0 %v1578
        %1754 = vmatpush1.bf16.msra.mxu0 %v1577
        %1755 = vmatprep.subr.bf16.mxu0 0
        %1756 = vmatpush1.bf16.msra.mxu0 0
        %1757 = vmatprep.subr.bf16.mxu0 0
        %1758 = vmatpush1.bf16.msra.mxu0 0
        %1759 = vmatprep.subr.bf16.mxu0 0
        %1760 = vmatpush1.bf16.msra.mxu0 0
        %1761 = vmatprep.subr.bf16.mxu0 0
        %1762 = vmatpush1.bf16.msra.mxu0 0
        %1763 = vmatprep.subr.bf16.mxu0 0
        %1764 = vmatpush1.bf16.msra.mxu0 0
        %1765 = vmatprep.subr.bf16.mxu0 0
        %1766 = vmatpush1.bf16.msra.mxu0 0
        %1767 = vmatprep.subr.bf16.mxu0 0
        %1768 = vmatpush1.bf16.msra.mxu0 0
        %1769 = vmatprep.subr.bf16.mxu0 0
        %1770 = vmatpush1.bf16.msra.mxu0 0
        %1771 = vmatprep.subr.bf16.mxu0 0
        %1772 = vmatpush1.bf16.msra.mxu0 0
        %1773 = vmatprep.subr.bf16.mxu0 0
        %1774 = vmatpush1.bf16.msra.mxu0 0
        %1775 = vmatprep.subr.bf16.mxu0 0
        %1776 = vmatpush1.bf16.msra.mxu0 0
        %1777 = vmatprep.subr.bf16.mxu0 0
        %1778 = vmatpush1.bf16.msra.mxu0 0
        %1779 = vmatprep.subr.bf16.mxu0 0
        %1780 = vmatpush1.bf16.msra.mxu0 0
        %1781 = vmatprep.subr.bf16.mxu0 0
        %1782 = vmatpush1.bf16.msra.mxu0 0
        %1783 = vmatprep.mubr.bf16.mxu0 0
        %1784 = vmatmul.mubr.bf16.gmra.mrb[0].mxu0 %v1620
        %v1785 = vpop.f32.mrb[0].mxu0
        %v1786 = vadd.f32 %v1406, %v1785
        %v1787 = vpop.f32.mrb[0].mxu0
        %v1788 = vadd.f32 %v1410, %v1787
        %v1789 = vpop.f32.mrb[0].mxu0
        %v1790 = vadd.f32 %v1406, %v1789
        %v1791 = vpop.f32.mrb[0].mxu0
        %v1792 = vadd.f32 %v1410, %v1791
        %1793 = vdwg.mxu0
        %1794 = vmatprep.subr.bf16.mxu0 %v1564
        %1795 = vmatpush1.bf16.msra.mxu0 %v1563
        %1796 = vmatprep.subr.bf16.mxu0 %v1580
        %1797 = vmatpush1.bf16.msra.mxu0 %v1579
        %1798 = vmatprep.subr.bf16.mxu0 0
        %1799 = vmatpush1.bf16.msra.mxu0 0
        %1800 = vmatprep.subr.bf16.mxu0 0
        %1801 = vmatpush1.bf16.msra.mxu0 0
        %1802 = vmatprep.subr.bf16.mxu0 0
        %1803 = vmatpush1.bf16.msra.mxu0 0
        %1804 = vmatprep.subr.bf16.mxu0 0
        %1805 = vmatpush1.bf16.msra.mxu0 0
        %1806 = vmatprep.subr.bf16.mxu0 0
        %1807 = vmatpush1.bf16.msra.mxu0 0
        %1808 = vmatprep.subr.bf16.mxu0 0
        %1809 = vmatpush1.bf16.msra.mxu0 0
        %1810 = vmatprep.subr.bf16.mxu0 0
        %1811 = vmatpush1.bf16.msra.mxu0 0
        %1812 = vmatprep.subr.bf16.mxu0 0
        %1813 = vmatpush1.bf16.msra.mxu0 0
        %1814 = vmatprep.subr.bf16.mxu0 0
        %1815 = vmatpush1.bf16.msra.mxu0 0
        %1816 = vmatprep.subr.bf16.mxu0 0
        %1817 = vmatpush1.bf16.msra.mxu0 0
        %1818 = vmatprep.subr.bf16.mxu0 0
        %1819 = vmatpush1.bf16.msra.mxu0 0
        %1820 = vmatprep.subr.bf16.mxu0 0
        %1821 = vmatpush1.bf16.msra.mxu0 0
        %1822 = vmatprep.subr.bf16.mxu0 0
        %1823 = vmatpush1.bf16.msra.mxu0 0
        %1824 = vmatprep.subr.bf16.mxu0 0
        %1825 = vmatpush1.bf16.msra.mxu0 0
        %1826 = vmatprep.mubr.bf16.mxu0 0
        %1827 = vmatmul.mubr.bf16.gmra.mrb[0].mxu0 %v1620
        %v1828 = vpop.f32.mrb[0].mxu0
        %v1829 = vadd.f32 %v1414, %v1828
        %v1830 = vpop.f32.mrb[0].mxu0
        %v1831 = vadd.f32 %v1418, %v1830
        %v1832 = vpop.f32.mrb[0].mxu0
        %v1833 = vadd.f32 %v1414, %v1832
        %v1834 = vpop.f32.mrb[0].mxu0
        %v1835 = vadd.f32 %v1418, %v1834
        %1836 = vdwg.mxu0
        %1837 = vmatprep.subr.bf16.mxu0 %v1566
        %1838 = vmatpush1.bf16.msra.mxu0 %v1565
        %1839 = vmatprep.subr.bf16.mxu0 %v1582
        %1840 = vmatpush1.bf16.msra.mxu0 %v1581
        %1841 = vmatprep.subr.bf16.mxu0 0
        %1842 = vmatpush1.bf16.msra.mxu0 0
        %1843 = vmatprep.subr.bf16.mxu0 0
        %1844 = vmatpush1.bf16.msra.mxu0 0
        %1845 = vmatprep.subr.bf16.mxu0 0
        %1846 = vmatpush1.bf16.msra.mxu0 0
        %1847 = vmatprep.subr.bf16.mxu0 0
        %1848 = vmatpush1.bf16.msra.mxu0 0
        %1849 = vmatprep.subr.bf16.mxu0 0
        %1850 = vmatpush1.bf16.msra.mxu0 0
        %1851 = vmatprep.subr.bf16.mxu0 0
        %1852 = vmatpush1.bf16.msra.mxu0 0
        %1853 = vmatprep.subr.bf16.mxu0 0
        %1854 = vmatpush1.bf16.msra.mxu0 0
        %1855 = vmatprep.subr.bf16.mxu0 0
        %1856 = vmatpush1.bf16.msra.mxu0 0
        %1857 = vmatprep.subr.bf16.mxu0 0
        %1858 = vmatpush1.bf16.msra.mxu0 0
        %1859 = vmatprep.subr.bf16.mxu0 0
        %1860 = vmatpush1.bf16.msra.mxu0 0
        %1861 = vmatprep.subr.bf16.mxu0 0
        %1862 = vmatpush1.bf16.msra.mxu0 0
        %1863 = vmatprep.subr.bf16.mxu0 0
        %1864 = vmatpush1.bf16.msra.mxu0 0
        %1865 = vmatprep.subr.bf16.mxu0 0
        %1866 = vmatpush1.bf16.msra.mxu0 0
        %1867 = vmatprep.subr.bf16.mxu0 0
        %1868 = vmatpush1.bf16.msra.mxu0 0
        %1869 = vmatprep.mubr.bf16.mxu0 0
        %1870 = vmatmul.mubr.bf16.gmra.mrb[0].mxu0 %v1620
        %v1871 = vpop.f32.mrb[0].mxu0
        %v1872 = vadd.f32 %v1422, %v1871
        %v1873 = vpop.f32.mrb[0].mxu0
        %v1874 = vadd.f32 %v1426, %v1873
        %v1875 = vpop.f32.mrb[0].mxu0
        %v1876 = vadd.f32 %v1422, %v1875
        %v1877 = vpop.f32.mrb[0].mxu0
        %v1878 = vadd.f32 %v1426, %v1877
        %1879 = vdwg.mxu0
        %1880 = vmatprep.subr.bf16.mxu0 %v1568
        %1881 = vmatpush1.bf16.msra.mxu0 %v1567
        %1882 = vmatprep.subr.bf16.mxu0 %v1584
        %1883 = vmatpush1.bf16.msra.mxu0 %v1583
        %1884 = vmatprep.subr.bf16.mxu0 0
        %1885 = vmatpush1.bf16.msra.mxu0 0
        %1886 = vmatprep.subr.bf16.mxu0 0
        %1887 = vmatpush1.bf16.msra.mxu0 0
        %1888 = vmatprep.subr.bf16.mxu0 0
        %1889 = vmatpush1.bf16.msra.mxu0 0
        %1890 = vmatprep.subr.bf16.mxu0 0
        %1891 = vmatpush1.bf16.msra.mxu0 0
        %1892 = vmatprep.subr.bf16.mxu0 0
        %1893 = vmatpush1.bf16.msra.mxu0 0
        %1894 = vmatprep.subr.bf16.mxu0 0
        %1895 = vmatpush1.bf16.msra.mxu0 0
        %1896 = vmatprep.subr.bf16.mxu0 0
        %1897 = vmatpush1.bf16.msra.mxu0 0
        %1898 = vmatprep.subr.bf16.mxu0 0
        %1899 = vmatpush1.bf16.msra.mxu0 0
        %1900 = vmatprep.subr.bf16.mxu0 0
        %1901 = vmatpush1.bf16.msra.mxu0 0
        %1902 = vmatprep.subr.bf16.mxu0 0
        %1903 = vmatpush1.bf16.msra.mxu0 0
        %1904 = vmatprep.subr.bf16.mxu0 0
        %1905 = vmatpush1.bf16.msra.mxu0 0
        %1906 = vmatprep.subr.bf16.mxu0 0
        %1907 = vmatpush1.bf16.msra.mxu0 0
        %1908 = vmatprep.subr.bf16.mxu0 0
        %1909 = vmatpush1.bf16.msra.mxu0 0
        %1910 = vmatprep.subr.bf16.mxu0 0
        %1911 = vmatpush1.bf16.msra.mxu0 0
        %1912 = vmatprep.mubr.bf16.mxu0 0
        %1913 = vmatmul.mubr.bf16.gmra.mrb[0].mxu0 %v1620
        %v1914 = vpop.f32.mrb[0].mxu0
        %v1915 = vadd.f32 %v1430, %v1914
        %v1916 = vpop.f32.mrb[0].mxu0
        %v1917 = vadd.f32 %v1434, %v1916
        %v1918 = vpop.f32.mrb[0].mxu0
        %v1919 = vadd.f32 %v1430, %v1918
        %v1920 = vpop.f32.mrb[0].mxu0
        %v1921 = vadd.f32 %v1434, %v1920
        %1922 = vdwg.mxu0
        %1923 = vmatprep.subr.bf16.mxu0 %v1570
        %1924 = vmatpush1.bf16.msra.mxu0 %v1569
        %1925 = vmatprep.subr.bf16.mxu0 %v1586
        %1926 = vmatpush1.bf16.msra.mxu0 %v1585
        %1927 = vmatprep.subr.bf16.mxu0 0
        %1928 = vmatpush1.bf16.msra.mxu0 0
        %1929 = vmatprep.subr.bf16.mxu0 0
        %1930 = vmatpush1.bf16.msra.mxu0 0
        %1931 = vmatprep.subr.bf16.mxu0 0
        %1932 = vmatpush1.bf16.msra.mxu0 0
        %1933 = vmatprep.subr.bf16.mxu0 0
        %1934 = vmatpush1.bf16.msra.mxu0 0
        %1935 = vmatprep.subr.bf16.mxu0 0
        %1936 = vmatpush1.bf16.msra.mxu0 0
        %1937 = vmatprep.subr.bf16.mxu0 0
        %1938 = vmatpush1.bf16.msra.mxu0 0
        %1939 = vmatprep.subr.bf16.mxu0 0
        %1940 = vmatpush1.bf16.msra.mxu0 0
        %1941 = vmatprep.subr.bf16.mxu0 0
        %1942 = vmatpush1.bf16.msra.mxu0 0
        %1943 = vmatprep.subr.bf16.mxu0 0
        %1944 = vmatpush1.bf16.msra.mxu0 0
        %1945 = vmatprep.subr.bf16.mxu0 0
        %1946 = vmatpush1.bf16.msra.mxu0 0
        %1947 = vmatprep.subr.bf16.mxu0 0
        %1948 = vmatpush1.bf16.msra.mxu0 0
        %1949 = vmatprep.subr.bf16.mxu0 0
        %1950 = vmatpush1.bf16.msra.mxu0 0
        %1951 = vmatprep.subr.bf16.mxu0 0
        %1952 = vmatpush1.bf16.msra.mxu0 0
        %1953 = vmatprep.subr.bf16.mxu0 0
        %1954 = vmatpush1.bf16.msra.mxu0 0
        %1955 = vmatprep.mubr.bf16.mxu0 0
        %1956 = vmatmul.mubr.bf16.gmra.mrb[0].mxu0 %v1620
        %v1957 = vpop.f32.mrb[0].mxu0
        %v1958 = vadd.f32 %v1438, %v1957
        %v1959 = vpop.f32.mrb[0].mxu0
        %v1960 = vadd.f32 %v1442, %v1959
        %v1961 = vpop.f32.mrb[0].mxu0
        %v1962 = vadd.f32 %v1438, %v1961
        %v1963 = vpop.f32.mrb[0].mxu0
        %v1964 = vadd.f32 %v1442, %v1963
        %1965 = vdwg.mxu0
        %v1966 = vmax.f32 %v1657, 0.0
        %v1967 = vmax.f32 %v1659, 0.0
        %v1968 = vmax.f32 %v1700, 0.0
        %v1969 = vmax.f32 %v1702, 0.0
        %v1970 = vmax.f32 %v1743, 0.0
        %v1971 = vmax.f32 %v1745, 0.0
        %v1972 = vmax.f32 %v1786, 0.0
        %v1973 = vmax.f32 %v1788, 0.0
        %v1974 = vmax.f32 %v1829, 0.0
        %v1975 = vmax.f32 %v1831, 0.0
        %v1976 = vmax.f32 %v1872, 0.0
        %v1977 = vmax.f32 %v1874, 0.0
        %v1978 = vmax.f32 %v1915, 0.0
        %v1979 = vmax.f32 %v1917, 0.0
        %v1980 = vmax.f32 %v1958, 0.0
        %v1981 = vmax.f32 %v1960, 0.0
        %v1982 = vmax.f32 %v1661, 0.0
        %v1983 = vmax.f32 %v1663, 0.0
        %v1984 = vmax.f32 %v1704, 0.0
        %v1985 = vmax.f32 %v1706, 0.0
        %v1986 = vmax.f32 %v1747, 0.0
        %v1987 = vmax.f32 %v1749, 0.0
        %v1988 = vmax.f32 %v1790, 0.0
        %v1989 = vmax.f32 %v1792, 0.0
        %v1990 = vmax.f32 %v1833, 0.0
        %v1991 = vmax.f32 %v1835, 0.0
        %v1992 = vmax.f32 %v1876, 0.0
        %v1993 = vmax.f32 %v1878, 0.0
        %v1994 = vmax.f32 %v1919, 0.0
        %v1995 = vmax.f32 %v1921, 0.0
        %v1996 = vmax.f32 %v1962, 0.0
        %v1997 = vmax.f32 %v1964, 0.0
        %v1998 = vpack.c.bf16 %v1982, %v1966
        %v1999 = vpack.c.bf16 %v1983, %v1967
        %v2000 = vpack.c.bf16 %v1984, %v1968
        %v2001 = vpack.c.bf16 %v1985, %v1969
        %v2002 = vpack.c.bf16 %v1986, %v1970
        %v2003 = vpack.c.bf16 %v1987, %v1971
        %v2004 = vpack.c.bf16 %v1988, %v1972
        %v2005 = vpack.c.bf16 %v1989, %v1973
        %v2006 = vpack.c.bf16 %v1990, %v1974
        %v2007 = vpack.c.bf16 %v1991, %v1975
        %v2008 = vpack.c.bf16 %v1992, %v1976
        %v2009 = vpack.c.bf16 %v1993, %v1977
        %v2010 = vpack.c.bf16 %v1994, %v1978
        %v2011 = vpack.c.bf16 %v1995, %v1979
        %v2012 = vpack.c.bf16 %v1996, %v1980
        %v2013 = vpack.c.bf16 %v1997, %v1981
        %v2014 = vld [vmem:[%s507] sm:$0xf]
        %v2015 = vld [vmem:[%s507 + $0x4] sm:$0xf]
        %v2016 = vld [vmem:[%s507 + $0x8] sm:$0xf]
        %v2017 = vld [vmem:[%s507 + $0xc] sm:$0xf]
        %v2018 = vld [vmem:[%s507 + $0x10] sm:$0xf]
        %v2019 = vld [vmem:[%s507 + $0x14] sm:$0xf]
        %v2020 = vld [vmem:[%s507 + $0x18] sm:$0xf]
        %v2021 = vld [vmem:[%s507 + $0x1c] sm:$0xf]
        %v2022 = vld [vmem:[%s507 + $0x20] sm:$0xf]
        %v2023 = vld [vmem:[%s507 + $0x24] sm:$0xf]
        %v2024 = vld [vmem:[%s507 + $0x28] sm:$0xf]
        %v2025 = vld [vmem:[%s507 + $0x2c] sm:$0xf]
        %v2026 = vld [vmem:[%s507 + $0x30] sm:$0xf]
        %v2027 = vld [vmem:[%s507 + $0x34] sm:$0xf]
        %v2028 = vld [vmem:[%s507 + $0x38] sm:$0xf]
        %v2029 = vld [vmem:[%s507 + $0x3c] sm:$0xf]
        %v2030 = vld [vmem:[%s507 + $0x40] sm:$0xf]
        %v2031 = vld [vmem:[%s507 + $0x44] sm:$0xf]
        %v2032 = vld [vmem:[%s507 + $0x48] sm:$0xf]
        %v2033 = vld [vmem:[%s507 + $0x4c] sm:$0xf]
        %v2034 = vld [vmem:[%s507 + $0x50] sm:$0xf]
        %v2035 = vld [vmem:[%s507 + $0x54] sm:$0xf]
        %v2036 = vld [vmem:[%s507 + $0x58] sm:$0xf]
        %v2037 = vld [vmem:[%s507 + $0x5c] sm:$0xf]
        %v2038 = vld [vmem:[%s507 + $0x60] sm:$0xf]
        %v2039 = vld [vmem:[%s507 + $0x64] sm:$0xf]
        %v2040 = vld [vmem:[%s507 + $0x68] sm:$0xf]
        %v2041 = vld [vmem:[%s507 + $0x6c] sm:$0xf]
        %v2042 = vld [vmem:[%s507 + $0x70] sm:$0xf]
        %v2043 = vld [vmem:[%s507 + $0x74] sm:$0xf]
        %v2044 = vld [vmem:[%s507 + $0x78] sm:$0xf]
        %v2045 = vld [vmem:[%s507 + $0x7c] sm:$0xf]
        %v2046 = vld [vmem:[%s507 + $0x80] sm:$0xf]
        %v2047 = vld [vmem:[%s507 + $0x84] sm:$0xf]
        %v2048 = vld [vmem:[%s507 + $0x88] sm:$0xf]
        %v2049 = vld [vmem:[%s507 + $0x8c] sm:$0xf]
        %v2050 = vld [vmem:[%s507 + $0x90] sm:$0xf]
        %v2051 = vld [vmem:[%s507 + $0x94] sm:$0xf]
        %v2052 = vld [vmem:[%s507 + $0x98] sm:$0xf]
        %v2053 = vld [vmem:[%s507 + $0x9c] sm:$0xf]
        %v2054 = vld [vmem:[%s507 + $0xa0] sm:$0xf]
        %v2055 = vld [vmem:[%s507 + $0xa4] sm:$0xf]
        %v2056 = vld [vmem:[%s507 + $0xa8] sm:$0xf]
        %v2057 = vld [vmem:[%s507 + $0xac] sm:$0xf]
        %v2058 = vld [vmem:[%s507 + $0xb0] sm:$0xf]
        %v2059 = vld [vmem:[%s507 + $0xb4] sm:$0xf]
        %v2060 = vld [vmem:[%s507 + $0xb8] sm:$0xf]
        %v2061 = vld [vmem:[%s507 + $0xbc] sm:$0xf]
        %v2062 = vld [vmem:[%s507 + $0xc0] sm:$0xf]
        %v2063 = vld [vmem:[%s507 + $0xc4] sm:$0xf]
        %v2064 = vld [vmem:[%s507 + $0xc8] sm:$0xf]
        %v2065 = vld [vmem:[%s507 + $0xcc] sm:$0xf]
        %v2066 = vld [vmem:[%s507 + $0xd0] sm:$0xf]
        %v2067 = vld [vmem:[%s507 + $0xd4] sm:$0xf]
        %v2068 = vld [vmem:[%s507 + $0xd8] sm:$0xf]
        %v2069 = vld [vmem:[%s507 + $0xdc] sm:$0xf]
        %v2070 = vld [vmem:[%s507 + $0xe0] sm:$0xf]
        %v2071 = vld [vmem:[%s507 + $0xe4] sm:$0xf]
        %v2072 = vld [vmem:[%s507 + $0xe8] sm:$0xf]
        %v2073 = vld [vmem:[%s507 + $0xec] sm:$0xf]
        %v2074 = vld [vmem:[%s507 + $0xf0] sm:$0xf]
        %v2075 = vld [vmem:[%s507 + $0xf4] sm:$0xf]
        %v2076 = vld [vmem:[%s507 + $0xf8] sm:$0xf]
        %v2077 = vld [vmem:[%s507 + $0xfc] sm:$0xf]
        %v2078 = vld [vmem:[%s507 + $0x100] sm:$0xf]
        %v2079 = vld [vmem:[%s507 + $0x104] sm:$0xf]
        %v2080 = vld [vmem:[%s507 + $0x108] sm:$0xf]
        %v2081 = vld [vmem:[%s507 + $0x10c] sm:$0xf]
        %v2082 = vld [vmem:[%s507 + $0x110] sm:$0xf]
        %v2083 = vld [vmem:[%s507 + $0x114] sm:$0xf]
        %v2084 = vld [vmem:[%s507 + $0x118] sm:$0xf]
        %v2085 = vld [vmem:[%s507 + $0x11c] sm:$0xf]
        %v2086 = vld [vmem:[%s507 + $0x120] sm:$0xf]
        %v2087 = vld [vmem:[%s507 + $0x124] sm:$0xf]
        %v2088 = vld [vmem:[%s507 + $0x128] sm:$0xf]
        %v2089 = vld [vmem:[%s507 + $0x12c] sm:$0xf]
        %v2090 = vld [vmem:[%s507 + $0x130] sm:$0xf]
        %v2091 = vld [vmem:[%s507 + $0x134] sm:$0xf]
        %v2092 = vld [vmem:[%s507 + $0x138] sm:$0xf]
        %v2093 = vld [vmem:[%s507 + $0x13c] sm:$0xf]
        %v2094 = vld [vmem:[%s507 + $0x140] sm:$0xf]
        %v2095 = vld [vmem:[%s507 + $0x144] sm:$0xf]
        %v2096 = vld [vmem:[%s507 + $0x148] sm:$0xf]
        %v2097 = vld [vmem:[%s507 + $0x14c] sm:$0xf]
        %v2098 = vld [vmem:[%s507 + $0x150] sm:$0xf]
        %v2099 = vld [vmem:[%s507 + $0x154] sm:$0xf]
        %v2100 = vld [vmem:[%s507 + $0x158] sm:$0xf]
        %v2101 = vld [vmem:[%s507 + $0x15c] sm:$0xf]
        %v2102 = vld [vmem:[%s507 + $0x160] sm:$0xf]
        %v2103 = vld [vmem:[%s507 + $0x164] sm:$0xf]
        %v2104 = vld [vmem:[%s507 + $0x168] sm:$0xf]
        %v2105 = vld [vmem:[%s507 + $0x16c] sm:$0xf]
        %v2106 = vld [vmem:[%s507 + $0x170] sm:$0xf]
        %v2107 = vld [vmem:[%s507 + $0x174] sm:$0xf]
        %v2108 = vld [vmem:[%s507 + $0x178] sm:$0xf]
        %v2109 = vld [vmem:[%s507 + $0x17c] sm:$0xf]
        %v2110 = vld [vmem:[%s507 + $0x180] sm:$0xf]
        %v2111 = vld [vmem:[%s507 + $0x184] sm:$0xf]
        %v2112 = vld [vmem:[%s507 + $0x188] sm:$0xf]
        %v2113 = vld [vmem:[%s507 + $0x18c] sm:$0xf]
        %v2114 = vld [vmem:[%s507 + $0x190] sm:$0xf]
        %v2115 = vld [vmem:[%s507 + $0x194] sm:$0xf]
        %v2116 = vld [vmem:[%s507 + $0x198] sm:$0xf]
        %v2117 = vld [vmem:[%s507 + $0x19c] sm:$0xf]
        %v2118 = vld [vmem:[%s507 + $0x1a0] sm:$0xf]
        %v2119 = vld [vmem:[%s507 + $0x1a4] sm:$0xf]
        %v2120 = vld [vmem:[%s507 + $0x1a8] sm:$0xf]
        %v2121 = vld [vmem:[%s507 + $0x1ac] sm:$0xf]
        %v2122 = vld [vmem:[%s507 + $0x1b0] sm:$0xf]
        %v2123 = vld [vmem:[%s507 + $0x1b4] sm:$0xf]
        %v2124 = vld [vmem:[%s507 + $0x1b8] sm:$0xf]
        %v2125 = vld [vmem:[%s507 + $0x1bc] sm:$0xf]
        %v2126 = vld [vmem:[%s507 + $0x1c0] sm:$0xf]
        %v2127 = vld [vmem:[%s507 + $0x1c4] sm:$0xf]
        %v2128 = vld [vmem:[%s507 + $0x1c8] sm:$0xf]
        %v2129 = vld [vmem:[%s507 + $0x1cc] sm:$0xf]
        %v2130 = vld [vmem:[%s507 + $0x1d0] sm:$0xf]
        %v2131 = vld [vmem:[%s507 + $0x1d4] sm:$0xf]
        %v2132 = vld [vmem:[%s507 + $0x1d8] sm:$0xf]
        %v2133 = vld [vmem:[%s507 + $0x1dc] sm:$0xf]
        %v2134 = vld [vmem:[%s507 + $0x1e0] sm:$0xf]
        %v2135 = vld [vmem:[%s507 + $0x1e4] sm:$0xf]
        %v2136 = vld [vmem:[%s507 + $0x1e8] sm:$0xf]
        %v2137 = vld [vmem:[%s507 + $0x1ec] sm:$0xf]
        %v2138 = vld [vmem:[%s507 + $0x1f0] sm:$0xf]
        %v2139 = vld [vmem:[%s507 + $0x1f4] sm:$0xf]
        %v2140 = vld [vmem:[%s507 + $0x1f8] sm:$0xf]
        %v2141 = vld [vmem:[%s507 + $0x1fc] sm:$0xf]
        %v2142 = vld [vmem:[%s507 + $0x200] sm:$0xf]
        %v2143 = vld [vmem:[%s507 + $0x204] sm:$0xf]
        %v2144 = vld [vmem:[%s507 + $0x208] sm:$0xf]
        %v2145 = vld [vmem:[%s507 + $0x20c] sm:$0xf]
        %v2146 = vld [vmem:[%s507 + $0x210] sm:$0xf]
        %v2147 = vld [vmem:[%s507 + $0x214] sm:$0xf]
        %v2148 = vld [vmem:[%s507 + $0x218] sm:$0xf]
        %v2149 = vld [vmem:[%s507 + $0x21c] sm:$0xf]
        %v2150 = vld [vmem:[%s507 + $0x220] sm:$0xf]
        %v2151 = vld [vmem:[%s507 + $0x224] sm:$0xf]
        %v2152 = vld [vmem:[%s507 + $0x228] sm:$0xf]
        %v2153 = vld [vmem:[%s507 + $0x22c] sm:$0xf]
        %v2154 = vld [vmem:[%s507 + $0x230] sm:$0xf]
        %v2155 = vld [vmem:[%s507 + $0x234] sm:$0xf]
        %v2156 = vld [vmem:[%s507 + $0x238] sm:$0xf]
        %v2157 = vld [vmem:[%s507 + $0x23c] sm:$0xf]
        %v2158 = vld [vmem:[%s507 + $0x240] sm:$0xf]
        %v2159 = vld [vmem:[%s507 + $0x244] sm:$0xf]
        %v2160 = vld [vmem:[%s507 + $0x248] sm:$0xf]
        %v2161 = vld [vmem:[%s507 + $0x24c] sm:$0xf]
        %v2162 = vld [vmem:[%s507 + $0x250] sm:$0xf]
        %v2163 = vld [vmem:[%s507 + $0x254] sm:$0xf]
        %v2164 = vld [vmem:[%s507 + $0x258] sm:$0xf]
        %v2165 = vld [vmem:[%s507 + $0x25c] sm:$0xf]
        %v2166 = vld [vmem:[%s507 + $0x260] sm:$0xf]
        %v2167 = vld [vmem:[%s507 + $0x264] sm:$0xf]
        %v2168 = vld [vmem:[%s507 + $0x268] sm:$0xf]
        %v2169 = vld [vmem:[%s507 + $0x26c] sm:$0xf]
        %v2170 = vld [vmem:[%s507 + $0x270] sm:$0xf]
        %v2171 = vld [vmem:[%s507 + $0x274] sm:$0xf]
        %v2172 = vld [vmem:[%s507 + $0x278] sm:$0xf]
        %v2173 = vld [vmem:[%s507 + $0x27c] sm:$0xf]
        %v2174 = vld [vmem:[%s507 + $0x280] sm:$0xf]
        %v2175 = vld [vmem:[%s507 + $0x284] sm:$0xf]
        %v2176 = vld [vmem:[%s507 + $0x288] sm:$0xf]
        %v2177 = vld [vmem:[%s507 + $0x28c] sm:$0xf]
        %v2178 = vld [vmem:[%s507 + $0x290] sm:$0xf]
        %v2179 = vld [vmem:[%s507 + $0x294] sm:$0xf]
        %v2180 = vld [vmem:[%s507 + $0x298] sm:$0xf]
        %v2181 = vld [vmem:[%s507 + $0x29c] sm:$0xf]
        %v2182 = vld [vmem:[%s507 + $0x2a0] sm:$0xf]
        %v2183 = vld [vmem:[%s507 + $0x2a4] sm:$0xf]
        %v2184 = vld [vmem:[%s507 + $0x2a8] sm:$0xf]
        %v2185 = vld [vmem:[%s507 + $0x2ac] sm:$0xf]
        %v2186 = vld [vmem:[%s507 + $0x2b0] sm:$0xf]
        %v2187 = vld [vmem:[%s507 + $0x2b4] sm:$0xf]
        %v2188 = vld [vmem:[%s507 + $0x2b8] sm:$0xf]
        %v2189 = vld [vmem:[%s507 + $0x2bc] sm:$0xf]
        %v2190 = vld [vmem:[%s507 + $0x2c0] sm:$0xf]
        %v2191 = vld [vmem:[%s507 + $0x2c4] sm:$0xf]
        %v2192 = vld [vmem:[%s507 + $0x2c8] sm:$0xf]
        %v2193 = vld [vmem:[%s507 + $0x2cc] sm:$0xf]
        %v2194 = vld [vmem:[%s507 + $0x2d0] sm:$0xf]
        %v2195 = vld [vmem:[%s507 + $0x2d4] sm:$0xf]
        %v2196 = vld [vmem:[%s507 + $0x2d8] sm:$0xf]
        %v2197 = vld [vmem:[%s507 + $0x2dc] sm:$0xf]
        %v2198 = vld [vmem:[%s507 + $0x2e0] sm:$0xf]
        %v2199 = vld [vmem:[%s507 + $0x2e4] sm:$0xf]
        %v2200 = vld [vmem:[%s507 + $0x2e8] sm:$0xf]
        %v2201 = vld [vmem:[%s507 + $0x2ec] sm:$0xf]
        %v2202 = vld [vmem:[%s507 + $0x2f0] sm:$0xf]
        %v2203 = vld [vmem:[%s507 + $0x2f4] sm:$0xf]
        %v2204 = vld [vmem:[%s507 + $0x2f8] sm:$0xf]
        %v2205 = vld [vmem:[%s507 + $0x2fc] sm:$0xf]
        %v2206 = vld [vmem:[%s507 + $0x300] sm:$0xf]
        %v2207 = vld [vmem:[%s507 + $0x304] sm:$0xf]
        %v2208 = vld [vmem:[%s507 + $0x308] sm:$0xf]
        %v2209 = vld [vmem:[%s507 + $0x30c] sm:$0xf]
        %v2210 = vld [vmem:[%s507 + $0x310] sm:$0xf]
        %v2211 = vld [vmem:[%s507 + $0x314] sm:$0xf]
        %v2212 = vld [vmem:[%s507 + $0x318] sm:$0xf]
        %v2213 = vld [vmem:[%s507 + $0x31c] sm:$0xf]
        %v2214 = vld [vmem:[%s507 + $0x320] sm:$0xf]
        %v2215 = vld [vmem:[%s507 + $0x324] sm:$0xf]
        %v2216 = vld [vmem:[%s507 + $0x328] sm:$0xf]
        %v2217 = vld [vmem:[%s507 + $0x32c] sm:$0xf]
        %v2218 = vld [vmem:[%s507 + $0x330] sm:$0xf]
        %v2219 = vld [vmem:[%s507 + $0x334] sm:$0xf]
        %v2220 = vld [vmem:[%s507 + $0x338] sm:$0xf]
        %v2221 = vld [vmem:[%s507 + $0x33c] sm:$0xf]
        %v2222 = vld [vmem:[%s507 + $0x340] sm:$0xf]
        %v2223 = vld [vmem:[%s507 + $0x344] sm:$0xf]
        %v2224 = vld [vmem:[%s507 + $0x348] sm:$0xf]
        %v2225 = vld [vmem:[%s507 + $0x34c] sm:$0xf]
        %v2226 = vld [vmem:[%s507 + $0x350] sm:$0xf]
        %v2227 = vld [vmem:[%s507 + $0x354] sm:$0xf]
        %v2228 = vld [vmem:[%s507 + $0x358] sm:$0xf]
        %v2229 = vld [vmem:[%s507 + $0x35c] sm:$0xf]
        %v2230 = vld [vmem:[%s507 + $0x360] sm:$0xf]
        %v2231 = vld [vmem:[%s507 + $0x364] sm:$0xf]
        %v2232 = vld [vmem:[%s507 + $0x368] sm:$0xf]
        %v2233 = vld [vmem:[%s507 + $0x36c] sm:$0xf]
        %v2234 = vld [vmem:[%s507 + $0x370] sm:$0xf]
        %v2235 = vld [vmem:[%s507 + $0x374] sm:$0xf]
        %v2236 = vld [vmem:[%s507 + $0x378] sm:$0xf]
        %v2237 = vld [vmem:[%s507 + $0x37c] sm:$0xf]
        %v2238 = vld [vmem:[%s507 + $0x380] sm:$0xf]
        %v2239 = vld [vmem:[%s507 + $0x384] sm:$0xf]
        %v2240 = vld [vmem:[%s507 + $0x388] sm:$0xf]
        %v2241 = vld [vmem:[%s507 + $0x38c] sm:$0xf]
        %v2242 = vld [vmem:[%s507 + $0x390] sm:$0xf]
        %v2243 = vld [vmem:[%s507 + $0x394] sm:$0xf]
        %v2244 = vld [vmem:[%s507 + $0x398] sm:$0xf]
        %v2245 = vld [vmem:[%s507 + $0x39c] sm:$0xf]
        %v2246 = vld [vmem:[%s507 + $0x3a0] sm:$0xf]
        %v2247 = vld [vmem:[%s507 + $0x3a4] sm:$0xf]
        %v2248 = vld [vmem:[%s507 + $0x3a8] sm:$0xf]
        %v2249 = vld [vmem:[%s507 + $0x3ac] sm:$0xf]
        %v2250 = vld [vmem:[%s507 + $0x3b0] sm:$0xf]
        %v2251 = vld [vmem:[%s507 + $0x3b4] sm:$0xf]
        %v2252 = vld [vmem:[%s507 + $0x3b8] sm:$0xf]
        %v2253 = vld [vmem:[%s507 + $0x3bc] sm:$0xf]
        %v2254 = vld [vmem:[%s507 + $0x3c0] sm:$0xf]
        %v2255 = vld [vmem:[%s507 + $0x3c4] sm:$0xf]
        %v2256 = vld [vmem:[%s507 + $0x3c8] sm:$0xf]
        %v2257 = vld [vmem:[%s507 + $0x3cc] sm:$0xf]
        %v2258 = vld [vmem:[%s507 + $0x3d0] sm:$0xf]
        %v2259 = vld [vmem:[%s507 + $0x3d4] sm:$0xf]
        %v2260 = vld [vmem:[%s507 + $0x3d8] sm:$0xf]
        %v2261 = vld [vmem:[%s507 + $0x3dc] sm:$0xf]
        %v2262 = vld [vmem:[%s507 + $0x3e0] sm:$0xf]
        %v2263 = vld [vmem:[%s507 + $0x3e4] sm:$0xf]
        %v2264 = vld [vmem:[%s507 + $0x3e8] sm:$0xf]
        %v2265 = vld [vmem:[%s507 + $0x3ec] sm:$0xf]
        %v2266 = vld [vmem:[%s507 + $0x3f0] sm:$0xf]
        %v2267 = vld [vmem:[%s507 + $0x3f4] sm:$0xf]
        %v2268 = vld [vmem:[%s507 + $0x3f8] sm:$0xf]
        %v2269 = vld [vmem:[%s507 + $0x3fc] sm:$0xf]
        %v2270 = vlaneseq
        %v2271 = vshrl.u32 %v2270, 7
        %v2272 = vsub.s32 5, %v2271
        %v2273 = vrot.slane %v1294, %v2272
        %v2530 = vunpack.c.l.b16 %v2014
        %v2531 = vunpack.c.l.b16 %v2015
        %v2532 = vunpack.c.l.b16 %v2016
        %v2533 = vunpack.c.l.b16 %v2017
        %v2534 = vunpack.c.l.b16 %v2018
        %v2535 = vunpack.c.l.b16 %v2019
        %v2536 = vunpack.c.l.b16 %v2020
        %v2537 = vunpack.c.l.b16 %v2021
        %v2538 = vunpack.c.l.b16 %v2022
        %v2539 = vunpack.c.l.b16 %v2023
        %v2540 = vunpack.c.l.b16 %v2024
        %v2541 = vunpack.c.l.b16 %v2025
        %v2542 = vunpack.c.l.b16 %v2026
        %v2543 = vunpack.c.l.b16 %v2027
        %v2544 = vunpack.c.l.b16 %v2028
        %v2545 = vunpack.c.l.b16 %v2029
        %v2546 = vunpack.c.l.b16 %v2030
        %v2547 = vunpack.c.l.b16 %v2031
        %v2548 = vunpack.c.l.b16 %v2032
        %v2549 = vunpack.c.l.b16 %v2033
        %v2550 = vunpack.c.l.b16 %v2034
        %v2551 = vunpack.c.l.b16 %v2035
        %v2552 = vunpack.c.l.b16 %v2036
        %v2553 = vunpack.c.l.b16 %v2037
        %v2554 = vunpack.c.l.b16 %v2038
        %v2555 = vunpack.c.l.b16 %v2039
        %v2556 = vunpack.c.l.b16 %v2040
        %v2557 = vunpack.c.l.b16 %v2041
        %v2558 = vunpack.c.l.b16 %v2042
        %v2559 = vunpack.c.l.b16 %v2043
        %v2560 = vunpack.c.l.b16 %v2044
        %v2561 = vunpack.c.l.b16 %v2045
        %v2562 = vunpack.c.l.b16 %v2046
        %v2563 = vunpack.c.l.b16 %v2047
        %v2564 = vunpack.c.l.b16 %v2048
        %v2565 = vunpack.c.l.b16 %v2049
        %v2566 = vunpack.c.l.b16 %v2050
        %v2567 = vunpack.c.l.b16 %v2051
        %v2568 = vunpack.c.l.b16 %v2052
        %v2569 = vunpack.c.l.b16 %v2053
        %v2570 = vunpack.c.l.b16 %v2054
        %v2571 = vunpack.c.l.b16 %v2055
        %v2572 = vunpack.c.l.b16 %v2056
        %v2573 = vunpack.c.l.b16 %v2057
        %v2574 = vunpack.c.l.b16 %v2058
        %v2575 = vunpack.c.l.b16 %v2059
        %v2576 = vunpack.c.l.b16 %v2060
        %v2577 = vunpack.c.l.b16 %v2061
        %v2578 = vunpack.c.l.b16 %v2062
        %v2579 = vunpack.c.l.b16 %v2063
        %v2580 = vunpack.c.l.b16 %v2064
        %v2581 = vunpack.c.l.b16 %v2065
        %v2582 = vunpack.c.l.b16 %v2066
        %v2583 = vunpack.c.l.b16 %v2067
        %v2584 = vunpack.c.l.b16 %v2068
        %v2585 = vunpack.c.l.b16 %v2069
        %v2586 = vunpack.c.l.b16 %v2070
        %v2587 = vunpack.c.l.b16 %v2071
        %v2588 = vunpack.c.l.b16 %v2072
        %v2589 = vunpack.c.l.b16 %v2073
        %v2590 = vunpack.c.l.b16 %v2074
        %v2591 = vunpack.c.l.b16 %v2075
        %v2592 = vunpack.c.l.b16 %v2076
        %v2593 = vunpack.c.l.b16 %v2077
        %v2594 = vunpack.c.l.b16 %v2078
        %v2595 = vunpack.c.l.b16 %v2079
        %v2596 = vunpack.c.l.b16 %v2080
        %v2597 = vunpack.c.l.b16 %v2081
        %v2598 = vunpack.c.l.b16 %v2082
        %v2599 = vunpack.c.l.b16 %v2083
        %v2600 = vunpack.c.l.b16 %v2084
        %v2601 = vunpack.c.l.b16 %v2085
        %v2602 = vunpack.c.l.b16 %v2086
        %v2603 = vunpack.c.l.b16 %v2087
        %v2604 = vunpack.c.l.b16 %v2088
        %v2605 = vunpack.c.l.b16 %v2089
        %v2606 = vunpack.c.l.b16 %v2090
        %v2607 = vunpack.c.l.b16 %v2091
        %v2608 = vunpack.c.l.b16 %v2092
        %v2609 = vunpack.c.l.b16 %v2093
        %v2610 = vunpack.c.l.b16 %v2094
        %v2611 = vunpack.c.l.b16 %v2095
        %v2612 = vunpack.c.l.b16 %v2096
        %v2613 = vunpack.c.l.b16 %v2097
        %v2614 = vunpack.c.l.b16 %v2098
        %v2615 = vunpack.c.l.b16 %v2099
        %v2616 = vunpack.c.l.b16 %v2100
        %v2617 = vunpack.c.l.b16 %v2101
        %v2618 = vunpack.c.l.b16 %v2102
        %v2619 = vunpack.c.l.b16 %v2103
        %v2620 = vunpack.c.l.b16 %v2104
        %v2621 = vunpack.c.l.b16 %v2105
        %v2622 = vunpack.c.l.b16 %v2106
        %v2623 = vunpack.c.l.b16 %v2107
        %v2624 = vunpack.c.l.b16 %v2108
        %v2625 = vunpack.c.l.b16 %v2109
        %v2626 = vunpack.c.l.b16 %v2110
        %v2627 = vunpack.c.l.b16 %v2111
        %v2628 = vunpack.c.l.b16 %v2112
        %v2629 = vunpack.c.l.b16 %v2113
        %v2630 = vunpack.c.l.b16 %v2114
        %v2631 = vunpack.c.l.b16 %v2115
        %v2632 = vunpack.c.l.b16 %v2116
        %v2633 = vunpack.c.l.b16 %v2117
        %v2634 = vunpack.c.l.b16 %v2118
        %v2635 = vunpack.c.l.b16 %v2119
        %v2636 = vunpack.c.l.b16 %v2120
        %v2637 = vunpack.c.l.b16 %v2121
        %v2638 = vunpack.c.l.b16 %v2122
        %v2639 = vunpack.c.l.b16 %v2123
        %v2640 = vunpack.c.l.b16 %v2124
        %v2641 = vunpack.c.l.b16 %v2125
        %v2642 = vunpack.c.l.b16 %v2126
        %v2643 = vunpack.c.l.b16 %v2127
        %v2644 = vunpack.c.l.b16 %v2128
        %v2645 = vunpack.c.l.b16 %v2129
        %v2646 = vunpack.c.l.b16 %v2130
        %v2647 = vunpack.c.l.b16 %v2131
        %v2648 = vunpack.c.l.b16 %v2132
        %v2649 = vunpack.c.l.b16 %v2133
        %v2650 = vunpack.c.l.b16 %v2134
        %v2651 = vunpack.c.l.b16 %v2135
        %v2652 = vunpack.c.l.b16 %v2136
        %v2653 = vunpack.c.l.b16 %v2137
        %v2654 = vunpack.c.l.b16 %v2138
        %v2655 = vunpack.c.l.b16 %v2139
        %v2656 = vunpack.c.l.b16 %v2140
        %v2657 = vunpack.c.l.b16 %v2141
        %v2658 = vunpack.c.l.b16 %v2142
        %v2659 = vunpack.c.l.b16 %v2143
        %v2660 = vunpack.c.l.b16 %v2144
        %v2661 = vunpack.c.l.b16 %v2145
        %v2662 = vunpack.c.l.b16 %v2146
        %v2663 = vunpack.c.l.b16 %v2147
        %v2664 = vunpack.c.l.b16 %v2148
        %v2665 = vunpack.c.l.b16 %v2149
        %v2666 = vunpack.c.l.b16 %v2150
        %v2667 = vunpack.c.l.b16 %v2151
        %v2668 = vunpack.c.l.b16 %v2152
        %v2669 = vunpack.c.l.b16 %v2153
        %v2670 = vunpack.c.l.b16 %v2154
        %v2671 = vunpack.c.l.b16 %v2155
        %v2672 = vunpack.c.l.b16 %v2156
        %v2673 = vunpack.c.l.b16 %v2157
        %v2674 = vunpack.c.l.b16 %v2158
        %v2675 = vunpack.c.l.b16 %v2159
        %v2676 = vunpack.c.l.b16 %v2160
        %v2677 = vunpack.c.l.b16 %v2161
        %v2678 = vunpack.c.l.b16 %v2162
        %v2679 = vunpack.c.l.b16 %v2163
        %v2680 = vunpack.c.l.b16 %v2164
        %v2681 = vunpack.c.l.b16 %v2165
        %v2682 = vunpack.c.l.b16 %v2166
        %v2683 = vunpack.c.l.b16 %v2167
        %v2684 = vunpack.c.l.b16 %v2168
        %v2685 = vunpack.c.l.b16 %v2169
        %v2686 = vunpack.c.l.b16 %v2170
        %v2687 = vunpack.c.l.b16 %v2171
        %v2688 = vunpack.c.l.b16 %v2172
        %v2689 = vunpack.c.l.b16 %v2173
        %v2690 = vunpack.c.l.b16 %v2174
        %v2691 = vunpack.c.l.b16 %v2175
        %v2692 = vunpack.c.l.b16 %v2176
        %v2693 = vunpack.c.l.b16 %v2177
        %v2694 = vunpack.c.l.b16 %v2178
        %v2695 = vunpack.c.l.b16 %v2179
        %v2696 = vunpack.c.l.b16 %v2180
        %v2697 = vunpack.c.l.b16 %v2181
        %v2698 = vunpack.c.l.b16 %v2182
        %v2699 = vunpack.c.l.b16 %v2183
        %v2700 = vunpack.c.l.b16 %v2184
        %v2701 = vunpack.c.l.b16 %v2185
        %v2702 = vunpack.c.l.b16 %v2186
        %v2703 = vunpack.c.l.b16 %v2187
        %v2704 = vunpack.c.l.b16 %v2188
        %v2705 = vunpack.c.l.b16 %v2189
        %v2706 = vunpack.c.l.b16 %v2190
        %v2707 = vunpack.c.l.b16 %v2191
        %v2708 = vunpack.c.l.b16 %v2192
        %v2709 = vunpack.c.l.b16 %v2193
        %v2710 = vunpack.c.l.b16 %v2194
        %v2711 = vunpack.c.l.b16 %v2195
        %v2712 = vunpack.c.l.b16 %v2196
        %v2713 = vunpack.c.l.b16 %v2197
        %v2714 = vunpack.c.l.b16 %v2198
        %v2715 = vunpack.c.l.b16 %v2199
        %v2716 = vunpack.c.l.b16 %v2200
        %v2717 = vunpack.c.l.b16 %v2201
        %v2718 = vunpack.c.l.b16 %v2202
        %v2719 = vunpack.c.l.b16 %v2203
        %v2720 = vunpack.c.l.b16 %v2204
        %v2721 = vunpack.c.l.b16 %v2205
        %v2722 = vunpack.c.l.b16 %v2206
        %v2723 = vunpack.c.l.b16 %v2207
        %v2724 = vunpack.c.l.b16 %v2208
        %v2725 = vunpack.c.l.b16 %v2209
        %v2726 = vunpack.c.l.b16 %v2210
        %v2727 = vunpack.c.l.b16 %v2211
        %v2728 = vunpack.c.l.b16 %v2212
        %v2729 = vunpack.c.l.b16 %v2213
        %v2730 = vunpack.c.l.b16 %v2214
        %v2731 = vunpack.c.l.b16 %v2215
        %v2732 = vunpack.c.l.b16 %v2216
        %v2733 = vunpack.c.l.b16 %v2217
        %v2734 = vunpack.c.l.b16 %v2218
        %v2735 = vunpack.c.l.b16 %v2219
        %v2736 = vunpack.c.l.b16 %v2220
        %v2737 = vunpack.c.l.b16 %v2221
        %v2738 = vunpack.c.l.b16 %v2222
        %v2739 = vunpack.c.l.b16 %v2223
        %v2740 = vunpack.c.l.b16 %v2224
        %v2741 = vunpack.c.l.b16 %v2225
        %v2742 = vunpack.c.l.b16 %v2226
        %v2743 = vunpack.c.l.b16 %v2227
        %v2744 = vunpack.c.l.b16 %v2228
        %v2745 = vunpack.c.l.b16 %v2229
        %v2746 = vunpack.c.l.b16 %v2230
        %v2747 = vunpack.c.l.b16 %v2231
        %v2748 = vunpack.c.l.b16 %v2232
        %v2749 = vunpack.c.l.b16 %v2233
        %v2750 = vunpack.c.l.b16 %v2234
        %v2751 = vunpack.c.l.b16 %v2235
        %v2752 = vunpack.c.l.b16 %v2236
        %v2753 = vunpack.c.l.b16 %v2237
        %v2754 = vunpack.c.l.b16 %v2238
        %v2755 = vunpack.c.l.b16 %v2239
        %v2756 = vunpack.c.l.b16 %v2240
        %v2757 = vunpack.c.l.b16 %v2241
        %v2758 = vunpack.c.l.b16 %v2242
        %v2759 = vunpack.c.l.b16 %v2243
        %v2760 = vunpack.c.l.b16 %v2244
        %v2761 = vunpack.c.l.b16 %v2245
        %v2762 = vunpack.c.l.b16 %v2246
        %v2763 = vunpack.c.l.b16 %v2247
        %v2764 = vunpack.c.l.b16 %v2248
        %v2765 = vunpack.c.l.b16 %v2249
        %v2766 = vunpack.c.l.b16 %v2250
        %v2767 = vunpack.c.l.b16 %v2251
        %v2768 = vunpack.c.l.b16 %v2252
        %v2769 = vunpack.c.l.b16 %v2253
        %v2770 = vunpack.c.l.b16 %v2254
        %v2771 = vunpack.c.l.b16 %v2255
        %v2772 = vunpack.c.l.b16 %v2256
        %v2773 = vunpack.c.l.b16 %v2257
        %v2774 = vunpack.c.l.b16 %v2258
        %v2775 = vunpack.c.l.b16 %v2259
        %v2776 = vunpack.c.l.b16 %v2260
        %v2777 = vunpack.c.l.b16 %v2261
        %v2778 = vunpack.c.l.b16 %v2262
        %v2779 = vunpack.c.l.b16 %v2263
        %v2780 = vunpack.c.l.b16 %v2264
        %v2781 = vunpack.c.l.b16 %v2265
        %v2782 = vunpack.c.l.b16 %v2266
        %v2783 = vunpack.c.l.b16 %v2267
        %v2784 = vunpack.c.l.b16 %v2268
        %v2785 = vunpack.c.l.b16 %v2269
        %v2786 = vpack.c.b16 %v2531, %v2530
        %v2787 = vpack.c.b16 %v2533, %v2532
        %v2788 = vpack.c.b16 %v2535, %v2534
        %v2789 = vpack.c.b16 %v2537, %v2536
        %v2790 = vpack.c.b16 %v2539, %v2538
        %v2791 = vpack.c.b16 %v2541, %v2540
        %v2792 = vpack.c.b16 %v2543, %v2542
        %v2793 = vpack.c.b16 %v2545, %v2544
        %v2794 = vpack.c.b16 %v2547, %v2546
        %v2795 = vpack.c.b16 %v2549, %v2548
        %v2796 = vpack.c.b16 %v2551, %v2550
        %v2797 = vpack.c.b16 %v2553, %v2552
        %v2798 = vpack.c.b16 %v2555, %v2554
        %v2799 = vpack.c.b16 %v2557, %v2556
        %v2800 = vpack.c.b16 %v2559, %v2558
        %v2801 = vpack.c.b16 %v2561, %v2560
        %v2802 = vpack.c.b16 %v2563, %v2562
        %v2803 = vpack.c.b16 %v2565, %v2564
        %v2804 = vpack.c.b16 %v2567, %v2566
        %v2805 = vpack.c.b16 %v2569, %v2568
        %v2806 = vpack.c.b16 %v2571, %v2570
        %v2807 = vpack.c.b16 %v2573, %v2572
        %v2808 = vpack.c.b16 %v2575, %v2574
        %v2809 = vpack.c.b16 %v2577, %v2576
        %v2810 = vpack.c.b16 %v2579, %v2578
        %v2811 = vpack.c.b16 %v2581, %v2580
        %v2812 = vpack.c.b16 %v2583, %v2582
        %v2813 = vpack.c.b16 %v2585, %v2584
        %v2814 = vpack.c.b16 %v2587, %v2586
        %v2815 = vpack.c.b16 %v2589, %v2588
        %v2816 = vpack.c.b16 %v2591, %v2590
        %v2817 = vpack.c.b16 %v2593, %v2592
        %v2818 = vpack.c.b16 %v2595, %v2594
        %v2819 = vpack.c.b16 %v2597, %v2596
        %v2820 = vpack.c.b16 %v2599, %v2598
        %v2821 = vpack.c.b16 %v2601, %v2600
        %v2822 = vpack.c.b16 %v2603, %v2602
        %v2823 = vpack.c.b16 %v2605, %v2604
        %v2824 = vpack.c.b16 %v2607, %v2606
        %v2825 = vpack.c.b16 %v2609, %v2608
        %v2826 = vpack.c.b16 %v2611, %v2610
        %v2827 = vpack.c.b16 %v2613, %v2612
        %v2828 = vpack.c.b16 %v2615, %v2614
        %v2829 = vpack.c.b16 %v2617, %v2616
        %v2830 = vpack.c.b16 %v2619, %v2618
        %v2831 = vpack.c.b16 %v2621, %v2620
        %v2832 = vpack.c.b16 %v2623, %v2622
        %v2833 = vpack.c.b16 %v2625, %v2624
        %v2834 = vpack.c.b16 %v2627, %v2626
        %v2835 = vpack.c.b16 %v2629, %v2628
        %v2836 = vpack.c.b16 %v2631, %v2630
        %v2837 = vpack.c.b16 %v2633, %v2632
        %v2838 = vpack.c.b16 %v2635, %v2634
        %v2839 = vpack.c.b16 %v2637, %v2636
        %v2840 = vpack.c.b16 %v2639, %v2638
        %v2841 = vpack.c.b16 %v2641, %v2640
        %v2842 = vpack.c.b16 %v2643, %v2642
        %v2843 = vpack.c.b16 %v2645, %v2644
        %v2844 = vpack.c.b16 %v2647, %v2646
        %v2845 = vpack.c.b16 %v2649, %v2648
        %v2846 = vpack.c.b16 %v2651, %v2650
        %v2847 = vpack.c.b16 %v2653, %v2652
        %v2848 = vpack.c.b16 %v2655, %v2654
        %v2849 = vpack.c.b16 %v2657, %v2656
        %v2850 = vpack.c.b16 %v2659, %v2658
        %v2851 = vpack.c.b16 %v2661, %v2660
        %v2852 = vpack.c.b16 %v2663, %v2662
        %v2853 = vpack.c.b16 %v2665, %v2664
        %v2854 = vpack.c.b16 %v2667, %v2666
        %v2855 = vpack.c.b16 %v2669, %v2668
        %v2856 = vpack.c.b16 %v2671, %v2670
        %v2857 = vpack.c.b16 %v2673, %v2672
        %v2858 = vpack.c.b16 %v2675, %v2674
        %v2859 = vpack.c.b16 %v2677, %v2676
        %v2860 = vpack.c.b16 %v2679, %v2678
        %v2861 = vpack.c.b16 %v2681, %v2680
        %v2862 = vpack.c.b16 %v2683, %v2682
        %v2863 = vpack.c.b16 %v2685, %v2684
        %v2864 = vpack.c.b16 %v2687, %v2686
        %v2865 = vpack.c.b16 %v2689, %v2688
        %v2866 = vpack.c.b16 %v2691, %v2690
        %v2867 = vpack.c.b16 %v2693, %v2692
        %v2868 = vpack.c.b16 %v2695, %v2694
        %v2869 = vpack.c.b16 %v2697, %v2696
        %v2870 = vpack.c.b16 %v2699, %v2698
        %v2871 = vpack.c.b16 %v2701, %v2700
        %v2872 = vpack.c.b16 %v2703, %v2702
        %v2873 = vpack.c.b16 %v2705, %v2704
        %v2874 = vpack.c.b16 %v2707, %v2706
        %v2875 = vpack.c.b16 %v2709, %v2708
        %v2876 = vpack.c.b16 %v2711, %v2710
        %v2877 = vpack.c.b16 %v2713, %v2712
        %v2878 = vpack.c.b16 %v2715, %v2714
        %v2879 = vpack.c.b16 %v2717, %v2716
        %v2880 = vpack.c.b16 %v2719, %v2718
        %v2881 = vpack.c.b16 %v2721, %v2720
        %v2882 = vpack.c.b16 %v2723, %v2722
        %v2883 = vpack.c.b16 %v2725, %v2724
        %v2884 = vpack.c.b16 %v2727, %v2726
        %v2885 = vpack.c.b16 %v2729, %v2728
        %v2886 = vpack.c.b16 %v2731, %v2730
        %v2887 = vpack.c.b16 %v2733, %v2732
        %v2888 = vpack.c.b16 %v2735, %v2734
        %v2889 = vpack.c.b16 %v2737, %v2736
        %v2890 = vpack.c.b16 %v2739, %v2738
        %v2891 = vpack.c.b16 %v2741, %v2740
        %v2892 = vpack.c.b16 %v2743, %v2742
        %v2893 = vpack.c.b16 %v2745, %v2744
        %v2894 = vpack.c.b16 %v2747, %v2746
        %v2895 = vpack.c.b16 %v2749, %v2748
        %v2896 = vpack.c.b16 %v2751, %v2750
        %v2897 = vpack.c.b16 %v2753, %v2752
        %v2898 = vpack.c.b16 %v2755, %v2754
        %v2899 = vpack.c.b16 %v2757, %v2756
        %v2900 = vpack.c.b16 %v2759, %v2758
        %v2901 = vpack.c.b16 %v2761, %v2760
        %v2902 = vpack.c.b16 %v2763, %v2762
        %v2903 = vpack.c.b16 %v2765, %v2764
        %v2904 = vpack.c.b16 %v2767, %v2766
        %v2905 = vpack.c.b16 %v2769, %v2768
        %v2906 = vpack.c.b16 %v2771, %v2770
        %v2907 = vpack.c.b16 %v2773, %v2772
        %v2908 = vpack.c.b16 %v2775, %v2774
        %v2909 = vpack.c.b16 %v2777, %v2776
        %v2910 = vpack.c.b16 %v2779, %v2778
        %v2911 = vpack.c.b16 %v2781, %v2780
        %v2912 = vpack.c.b16 %v2783, %v2782
        %v2913 = vpack.c.b16 %v2785, %v2784
        %3042 = vmatprep.subr.bf16.mxu0 0
        %3043 = vmatpush1.bf16.msra.mxu0 %v2786
        %3044 = vmatprep.subr.bf16.mxu0 0
        %3045 = vmatpush1.bf16.msra.mxu0 %v2787
        %3046 = vmatprep.subr.bf16.mxu0 0
        %3047 = vmatpush1.bf16.msra.mxu0 %v2788
        %3048 = vmatprep.subr.bf16.mxu0 0
        %3049 = vmatpush1.bf16.msra.mxu0 %v2789
        %3050 = vmatprep.subr.bf16.mxu0 0
        %3051 = vmatpush1.bf16.msra.mxu0 %v2790
        %3052 = vmatprep.subr.bf16.mxu0 0
        %3053 = vmatpush1.bf16.msra.mxu0 %v2791
        %3054 = vmatprep.subr.bf16.mxu0 0
        %3055 = vmatpush1.bf16.msra.mxu0 %v2792
        %3056 = vmatprep.subr.bf16.mxu0 0
        %3057 = vmatpush1.bf16.msra.mxu0 %v2793
        %3058 = vmatprep.subr.bf16.mxu0 0
        %3059 = vmatpush1.bf16.msra.mxu0 %v2794
        %3060 = vmatprep.subr.bf16.mxu0 0
        %3061 = vmatpush1.bf16.msra.mxu0 %v2795
        %3062 = vmatprep.subr.bf16.mxu0 0
        %3063 = vmatpush1.bf16.msra.mxu0 %v2796
        %3064 = vmatprep.subr.bf16.mxu0 0
        %3065 = vmatpush1.bf16.msra.mxu0 %v2797
        %3066 = vmatprep.subr.bf16.mxu0 0
        %3067 = vmatpush1.bf16.msra.mxu0 %v2798
        %3068 = vmatprep.subr.bf16.mxu0 0
        %3069 = vmatpush1.bf16.msra.mxu0 %v2799
        %3070 = vmatprep.subr.bf16.mxu0 0
        %3071 = vmatpush1.bf16.msra.mxu0 %v2800
        %3072 = vmatprep.subr.bf16.mxu0 0
        %3073 = vmatpush1.bf16.msra.mxu0 %v2801
        %3074 = vmatprep.mubr.bf16.mxu0 %v1999
        %3075 = vmatmul.mubr.bf16.gmra.mrb[0].mxu0 %v1998
        %v3076 = vpop.f32.mrb[0].mxu0
        %v3077 = vadd.f32 %v2273, %v3076
        %v3078 = vpop.f32.mrb[0].mxu0
        %v3079 = vpop.f32.mrb[0].mxu0
        %v3080 = vadd.f32 %v2273, %v3079
        %v3081 = vpop.f32.mrb[0].mxu0
        %3082 = vdwg.mxu0
        %3083 = vmatprep.subr.bf16.mxu0 0
        %3084 = vmatpush1.bf16.msra.mxu0 %v2802
        %3085 = vmatprep.subr.bf16.mxu0 0
        %3086 = vmatpush1.bf16.msra.mxu0 %v2803
        %3087 = vmatprep.subr.bf16.mxu0 0
        %3088 = vmatpush1.bf16.msra.mxu0 %v2804
        %3089 = vmatprep.subr.bf16.mxu0 0
        %3090 = vmatpush1.bf16.msra.mxu0 %v2805
        %3091 = vmatprep.subr.bf16.mxu0 0
        %3092 = vmatpush1.bf16.msra.mxu0 %v2806
        %3093 = vmatprep.subr.bf16.mxu0 0
        %3094 = vmatpush1.bf16.msra.mxu0 %v2807
        %3095 = vmatprep.subr.bf16.mxu0 0
        %3096 = vmatpush1.bf16.msra.mxu0 %v2808
        %3097 = vmatprep.subr.bf16.mxu0 0
        %3098 = vmatpush1.bf16.msra.mxu0 %v2809
        %3099 = vmatprep.subr.bf16.mxu0 0
        %3100 = vmatpush1.bf16.msra.mxu0 %v2810
        %3101 = vmatprep.subr.bf16.mxu0 0
        %3102 = vmatpush1.bf16.msra.mxu0 %v2811
        %3103 = vmatprep.subr.bf16.mxu0 0
        %3104 = vmatpush1.bf16.msra.mxu0 %v2812
        %3105 = vmatprep.subr.bf16.mxu0 0
        %3106 = vmatpush1.bf16.msra.mxu0 %v2813
        %3107 = vmatprep.subr.bf16.mxu0 0
        %3108 = vmatpush1.bf16.msra.mxu0 %v2814
        %3109 = vmatprep.subr.bf16.mxu0 0
        %3110 = vmatpush1.bf16.msra.mxu0 %v2815
        %3111 = vmatprep.subr.bf16.mxu0 0
        %3112 = vmatpush1.bf16.msra.mxu0 %v2816
        %3113 = vmatprep.subr.bf16.mxu0 0
        %3114 = vmatpush1.bf16.msra.mxu0 %v2817
        %3115 = vmatprep.mubr.bf16.mxu0 %v2001
        %3116 = vmatmul.mubr.bf16.gmra.mrb[0].mxu0 %v2000
        %v3117 = vpop.f32.mrb[0].mxu0
        %v3118 = vadd.f32 %v3077, %v3117
        %v3119 = vpop.f32.mrb[0].mxu0
        %v3120 = vpop.f32.mrb[0].mxu0
        %v3121 = vadd.f32 %v3080, %v3120
        %v3122 = vpop.f32.mrb[0].mxu0
        %3123 = vdwg.mxu0
        %3124 = vmatprep.subr.bf16.mxu0 0
        %3125 = vmatpush1.bf16.msra.mxu0 %v2818
        %3126 = vmatprep.subr.bf16.mxu0 0
        %3127 = vmatpush1.bf16.msra.mxu0 %v2819
        %3128 = vmatprep.subr.bf16.mxu0 0
        %3129 = vmatpush1.bf16.msra.mxu0 %v2820
        %3130 = vmatprep.subr.bf16.mxu0 0
        %3131 = vmatpush1.bf16.msra.mxu0 %v2821
        %3132 = vmatprep.subr.bf16.mxu0 0
        %3133 = vmatpush1.bf16.msra.mxu0 %v2822
        %3134 = vmatprep.subr.bf16.mxu0 0
        %3135 = vmatpush1.bf16.msra.mxu0 %v2823
        %3136 = vmatprep.subr.bf16.mxu0 0
        %3137 = vmatpush1.bf16.msra.mxu0 %v2824
        %3138 = vmatprep.subr.bf16.mxu0 0
        %3139 = vmatpush1.bf16.msra.mxu0 %v2825
        %3140 = vmatprep.subr.bf16.mxu0 0
        %3141 = vmatpush1.bf16.msra.mxu0 %v2826
        %3142 = vmatprep.subr.bf16.mxu0 0
        %3143 = vmatpush1.bf16.msra.mxu0 %v2827
        %3144 = vmatprep.subr.bf16.mxu0 0
        %3145 = vmatpush1.bf16.msra.mxu0 %v2828
        %3146 = vmatprep.subr.bf16.mxu0 0
        %3147 = vmatpush1.bf16.msra.mxu0 %v2829
        %3148 = vmatprep.subr.bf16.mxu0 0
        %3149 = vmatpush1.bf16.msra.mxu0 %v2830
        %3150 = vmatprep.subr.bf16.mxu0 0
        %3151 = vmatpush1.bf16.msra.mxu0 %v2831
        %3152 = vmatprep.subr.bf16.mxu0 0
        %3153 = vmatpush1.bf16.msra.mxu0 %v2832
        %3154 = vmatprep.subr.bf16.mxu0 0
        %3155 = vmatpush1.bf16.msra.mxu0 %v2833
        %3156 = vmatprep.mubr.bf16.mxu0 %v2003
        %3157 = vmatmul.mubr.bf16.gmra.mrb[0].mxu0 %v2002
        %v3158 = vpop.f32.mrb[0].mxu0
        %v3159 = vadd.f32 %v3118, %v3158
        %v3160 = vpop.f32.mrb[0].mxu0
        %v3161 = vpop.f32.mrb[0].mxu0
        %v3162 = vadd.f32 %v3121, %v3161
        %v3163 = vpop.f32.mrb[0].mxu0
        %3164 = vdwg.mxu0
        %3165 = vmatprep.subr.bf16.mxu0 0
        %3166 = vmatpush1.bf16.msra.mxu0 %v2834
        %3167 = vmatprep.subr.bf16.mxu0 0
        %3168 = vmatpush1.bf16.msra.mxu0 %v2835
        %3169 = vmatprep.subr.bf16.mxu0 0
        %3170 = vmatpush1.bf16.msra.mxu0 %v2836
        %3171 = vmatprep.subr.bf16.mxu0 0
        %3172 = vmatpush1.bf16.msra.mxu0 %v2837
        %3173 = vmatprep.subr.bf16.mxu0 0
        %3174 = vmatpush1.bf16.msra.mxu0 %v2838
        %3175 = vmatprep.subr.bf16.mxu0 0
        %3176 = vmatpush1.bf16.msra.mxu0 %v2839
        %3177 = vmatprep.subr.bf16.mxu0 0
        %3178 = vmatpush1.bf16.msra.mxu0 %v2840
        %3179 = vmatprep.subr.bf16.mxu0 0
        %3180 = vmatpush1.bf16.msra.mxu0 %v2841
        %3181 = vmatprep.subr.bf16.mxu0 0
        %3182 = vmatpush1.bf16.msra.mxu0 %v2842
        %3183 = vmatprep.subr.bf16.mxu0 0
        %3184 = vmatpush1.bf16.msra.mxu0 %v2843
        %3185 = vmatprep.subr.bf16.mxu0 0
        %3186 = vmatpush1.bf16.msra.mxu0 %v2844
        %3187 = vmatprep.subr.bf16.mxu0 0
        %3188 = vmatpush1.bf16.msra.mxu0 %v2845
        %3189 = vmatprep.subr.bf16.mxu0 0
        %3190 = vmatpush1.bf16.msra.mxu0 %v2846
        %3191 = vmatprep.subr.bf16.mxu0 0
        %3192 = vmatpush1.bf16.msra.mxu0 %v2847
        %3193 = vmatprep.subr.bf16.mxu0 0
        %3194 = vmatpush1.bf16.msra.mxu0 %v2848
        %3195 = vmatprep.subr.bf16.mxu0 0
        %3196 = vmatpush1.bf16.msra.mxu0 %v2849
        %3197 = vmatprep.mubr.bf16.mxu0 %v2005
        %3198 = vmatmul.mubr.bf16.gmra.mrb[0].mxu0 %v2004
        %v3199 = vpop.f32.mrb[0].mxu0
        %v3200 = vadd.f32 %v3159, %v3199
        %v3201 = vpop.f32.mrb[0].mxu0
        %v3202 = vpop.f32.mrb[0].mxu0
        %v3203 = vadd.f32 %v3162, %v3202
        %v3204 = vpop.f32.mrb[0].mxu0
        %3205 = vdwg.mxu0
        %3206 = vmatprep.subr.bf16.mxu0 0
        %3207 = vmatpush1.bf16.msra.mxu0 %v2850
        %3208 = vmatprep.subr.bf16.mxu0 0
        %3209 = vmatpush1.bf16.msra.mxu0 %v2851
        %3210 = vmatprep.subr.bf16.mxu0 0
        %3211 = vmatpush1.bf16.msra.mxu0 %v2852
        %3212 = vmatprep.subr.bf16.mxu0 0
        %3213 = vmatpush1.bf16.msra.mxu0 %v2853
        %3214 = vmatprep.subr.bf16.mxu0 0
        %3215 = vmatpush1.bf16.msra.mxu0 %v2854
        %3216 = vmatprep.subr.bf16.mxu0 0
        %3217 = vmatpush1.bf16.msra.mxu0 %v2855
        %3218 = vmatprep.subr.bf16.mxu0 0
        %3219 = vmatpush1.bf16.msra.mxu0 %v2856
        %3220 = vmatprep.subr.bf16.mxu0 0
        %3221 = vmatpush1.bf16.msra.mxu0 %v2857
        %3222 = vmatprep.subr.bf16.mxu0 0
        %3223 = vmatpush1.bf16.msra.mxu0 %v2858
        %3224 = vmatprep.subr.bf16.mxu0 0
        %3225 = vmatpush1.bf16.msra.mxu0 %v2859
        %3226 = vmatprep.subr.bf16.mxu0 0
        %3227 = vmatpush1.bf16.msra.mxu0 %v2860
        %3228 = vmatprep.subr.bf16.mxu0 0
        %3229 = vmatpush1.bf16.msra.mxu0 %v2861
        %3230 = vmatprep.subr.bf16.mxu0 0
        %3231 = vmatpush1.bf16.msra.mxu0 %v2862
        %3232 = vmatprep.subr.bf16.mxu0 0
        %3233 = vmatpush1.bf16.msra.mxu0 %v2863
        %3234 = vmatprep.subr.bf16.mxu0 0
        %3235 = vmatpush1.bf16.msra.mxu0 %v2864
        %3236 = vmatprep.subr.bf16.mxu0 0
        %3237 = vmatpush1.bf16.msra.mxu0 %v2865
        %3238 = vmatprep.mubr.bf16.mxu0 %v2007
        %3239 = vmatmul.mubr.bf16.gmra.mrb[0].mxu0 %v2006
        %v3240 = vpop.f32.mrb[0].mxu0
        %v3241 = vadd.f32 %v3200, %v3240
        %v3242 = vpop.f32.mrb[0].mxu0
        %v3243 = vpop.f32.mrb[0].mxu0
        %v3244 = vadd.f32 %v3203, %v3243
        %v3245 = vpop.f32.mrb[0].mxu0
        %3246 = vdwg.mxu0
        %3247 = vmatprep.subr.bf16.mxu0 0
        %3248 = vmatpush1.bf16.msra.mxu0 %v2866
        %3249 = vmatprep.subr.bf16.mxu0 0
        %3250 = vmatpush1.bf16.msra.mxu0 %v2867
        %3251 = vmatprep.subr.bf16.mxu0 0
        %3252 = vmatpush1.bf16.msra.mxu0 %v2868
        %3253 = vmatprep.subr.bf16.mxu0 0
        %3254 = vmatpush1.bf16.msra.mxu0 %v2869
        %3255 = vmatprep.subr.bf16.mxu0 0
        %3256 = vmatpush1.bf16.msra.mxu0 %v2870
        %3257 = vmatprep.subr.bf16.mxu0 0
        %3258 = vmatpush1.bf16.msra.mxu0 %v2871
        %3259 = vmatprep.subr.bf16.mxu0 0
        %3260 = vmatpush1.bf16.msra.mxu0 %v2872
        %3261 = vmatprep.subr.bf16.mxu0 0
        %3262 = vmatpush1.bf16.msra.mxu0 %v2873
        %3263 = vmatprep.subr.bf16.mxu0 0
        %3264 = vmatpush1.bf16.msra.mxu0 %v2874
        %3265 = vmatprep.subr.bf16.mxu0 0
        %3266 = vmatpush1.bf16.msra.mxu0 %v2875
        %3267 = vmatprep.subr.bf16.mxu0 0
        %3268 = vmatpush1.bf16.msra.mxu0 %v2876
        %3269 = vmatprep.subr.bf16.mxu0 0
        %3270 = vmatpush1.bf16.msra.mxu0 %v2877
        %3271 = vmatprep.subr.bf16.mxu0 0
        %3272 = vmatpush1.bf16.msra.mxu0 %v2878
        %3273 = vmatprep.subr.bf16.mxu0 0
        %3274 = vmatpush1.bf16.msra.mxu0 %v2879
        %3275 = vmatprep.subr.bf16.mxu0 0
        %3276 = vmatpush1.bf16.msra.mxu0 %v2880
        %3277 = vmatprep.subr.bf16.mxu0 0
        %3278 = vmatpush1.bf16.msra.mxu0 %v2881
        %3279 = vmatprep.mubr.bf16.mxu0 %v2009
        %3280 = vmatmul.mubr.bf16.gmra.mrb[0].mxu0 %v2008
        %v3281 = vpop.f32.mrb[0].mxu0
        %v3282 = vadd.f32 %v3241, %v3281
        %v3283 = vpop.f32.mrb[0].mxu0
        %v3284 = vpop.f32.mrb[0].mxu0
        %v3285 = vadd.f32 %v3244, %v3284
        %v3286 = vpop.f32.mrb[0].mxu0
        %3287 = vdwg.mxu0
        %3288 = vmatprep.subr.bf16.mxu0 0
        %3289 = vmatpush1.bf16.msra.mxu0 %v2882
        %3290 = vmatprep.subr.bf16.mxu0 0
        %3291 = vmatpush1.bf16.msra.mxu0 %v2883
        %3292 = vmatprep.subr.bf16.mxu0 0
        %3293 = vmatpush1.bf16.msra.mxu0 %v2884
        %3294 = vmatprep.subr.bf16.mxu0 0
        %3295 = vmatpush1.bf16.msra.mxu0 %v2885
        %3296 = vmatprep.subr.bf16.mxu0 0
        %3297 = vmatpush1.bf16.msra.mxu0 %v2886
        %3298 = vmatprep.subr.bf16.mxu0 0
        %3299 = vmatpush1.bf16.msra.mxu0 %v2887
        %3300 = vmatprep.subr.bf16.mxu0 0
        %3301 = vmatpush1.bf16.msra.mxu0 %v2888
        %3302 = vmatprep.subr.bf16.mxu0 0
        %3303 = vmatpush1.bf16.msra.mxu0 %v2889
        %3304 = vmatprep.subr.bf16.mxu0 0
        %3305 = vmatpush1.bf16.msra.mxu0 %v2890
        %3306 = vmatprep.subr.bf16.mxu0 0
        %3307 = vmatpush1.bf16.msra.mxu0 %v2891
        %3308 = vmatprep.subr.bf16.mxu0 0
        %3309 = vmatpush1.bf16.msra.mxu0 %v2892
        %3310 = vmatprep.subr.bf16.mxu0 0
        %3311 = vmatpush1.bf16.msra.mxu0 %v2893
        %3312 = vmatprep.subr.bf16.mxu0 0
        %3313 = vmatpush1.bf16.msra.mxu0 %v2894
        %3314 = vmatprep.subr.bf16.mxu0 0
        %3315 = vmatpush1.bf16.msra.mxu0 %v2895
        %3316 = vmatprep.subr.bf16.mxu0 0
        %3317 = vmatpush1.bf16.msra.mxu0 %v2896
        %3318 = vmatprep.subr.bf16.mxu0 0
        %3319 = vmatpush1.bf16.msra.mxu0 %v2897
        %3320 = vmatprep.mubr.bf16.mxu0 %v2011
        %3321 = vmatmul.mubr.bf16.gmra.mrb[0].mxu0 %v2010
        %v3322 = vpop.f32.mrb[0].mxu0
        %v3323 = vadd.f32 %v3282, %v3322
        %v3324 = vpop.f32.mrb[0].mxu0
        %v3325 = vpop.f32.mrb[0].mxu0
        %v3326 = vadd.f32 %v3285, %v3325
        %v3327 = vpop.f32.mrb[0].mxu0
        %3328 = vdwg.mxu0
        %3329 = vmatprep.subr.bf16.mxu0 0
        %3330 = vmatpush1.bf16.msra.mxu0 %v2898
        %3331 = vmatprep.subr.bf16.mxu0 0
        %3332 = vmatpush1.bf16.msra.mxu0 %v2899
        %3333 = vmatprep.subr.bf16.mxu0 0
        %3334 = vmatpush1.bf16.msra.mxu0 %v2900
        %3335 = vmatprep.subr.bf16.mxu0 0
        %3336 = vmatpush1.bf16.msra.mxu0 %v2901
        %3337 = vmatprep.subr.bf16.mxu0 0
        %3338 = vmatpush1.bf16.msra.mxu0 %v2902
        %3339 = vmatprep.subr.bf16.mxu0 0
        %3340 = vmatpush1.bf16.msra.mxu0 %v2903
        %3341 = vmatprep.subr.bf16.mxu0 0
        %3342 = vmatpush1.bf16.msra.mxu0 %v2904
        %3343 = vmatprep.subr.bf16.mxu0 0
        %3344 = vmatpush1.bf16.msra.mxu0 %v2905
        %3345 = vmatprep.subr.bf16.mxu0 0
        %3346 = vmatpush1.bf16.msra.mxu0 %v2906
        %3347 = vmatprep.subr.bf16.mxu0 0
        %3348 = vmatpush1.bf16.msra.mxu0 %v2907
        %3349 = vmatprep.subr.bf16.mxu0 0
        %3350 = vmatpush1.bf16.msra.mxu0 %v2908
        %3351 = vmatprep.subr.bf16.mxu0 0
        %3352 = vmatpush1.bf16.msra.mxu0 %v2909
        %3353 = vmatprep.subr.bf16.mxu0 0
        %3354 = vmatpush1.bf16.msra.mxu0 %v2910
        %3355 = vmatprep.subr.bf16.mxu0 0
        %3356 = vmatpush1.bf16.msra.mxu0 %v2911
        %3357 = vmatprep.subr.bf16.mxu0 0
        %3358 = vmatpush1.bf16.msra.mxu0 %v2912
        %3359 = vmatprep.subr.bf16.mxu0 0
        %3360 = vmatpush1.bf16.msra.mxu0 %v2913
        %3361 = vmatprep.mubr.bf16.mxu0 %v2013
        %3362 = vmatmul.mubr.bf16.gmra.mrb[0].mxu0 %v2012
        %v3363 = vpop.f32.mrb[0].mxu0
        %v3364 = vadd.f32 %v3323, %v3363
        %v3365 = vpop.f32.mrb[0].mxu0
        %v3366 = vpop.f32.mrb[0].mxu0
        %v3367 = vadd.f32 %v3326, %v3366
        %v3368 = vpop.f32.mrb[0].mxu0
        %3369 = vdwg.mxu0
        %v3370 = vadd.f32 %v1340, %v3364
        %v3371 = vadd.f32 %v1341, %v3367
        %v3372 = vsel %vm544, %v3370, 0.0
        %3373 = vadd.xlane.f32.xlu0 %v3372
        %v3374 = vpop.xlane.xlu0 %3373
        %v3375 = vsel %vm544, %v3371, 0.0
        %3376 = vadd.xlane.f32.xlu0 %v3375
        %v3377 = vpop.xlane.xlu0 %3376
        %v3378 = vmul.f32 %v3374, %v1309
        %v3379 = vmul.f32 %v3377, %v1309
        %v3380 = vsub.f32 %v3370, %v3378
        %v3381 = vsub.f32 %v3371, %v3379
        %v3382 = vmul.f32 %v3380, %v3380
        %v3383 = vmul.f32 %v3381, %v3381
        %v3384 = vsel %vm544, %v3382, 0.0
        %3385 = vadd.xlane.f32.xlu0 %v3384
        %v3386 = vpop.xlane.xlu0 %3385
        %v3387 = vsel %vm544, %v3383, 0.0
        %3388 = vadd.xlane.f32.xlu0 %v3387
        %v3389 = vpop.xlane.xlu0 %3388
        %v3390 = vmul.f32 %v3386, %v1309
        %v3391 = vmul.f32 %v3389, %v1309
        %v3392 = vadd.f32 %v3390, 1e-05
        %v3393 = vadd.f32 %v3391, 1e-05
        %v3394 = vrsqrt.pop %v3392
        %v3395 = vrsqrt.pop %v3393
        %v3396 = vmul.f32 %v3380, %v3394
        %v3397 = vmul.f32 %v3381, %v3395
        %v3398 = vlaneseq
        %v3399 = vshrl.u32 %v3398, 7
        %v3400 = vsub.s32 3, %v3399
        %v3401 = vrot.slane %v1294, %v3400
        %v3402 = vmul.f32 %v3396, %v3401
        %v3403 = vmul.f32 %v3397, %v3401
        %v3404 = vlaneseq
        %v3405 = vshrl.u32 %v3404, 7
        %v3406 = vsub.s32 4, %v3405
        %v3407 = vrot.slane %v1294, %v3406
        %v3408 = vadd.f32 %v3402, %v3407
        %v3409 = vadd.f32 %v3403, %v3407
        %3410 = vst.msk [vmem:[#allocation2] sm:$0xff] %vm544, %v3408
        %3411 = vst.msk [vmem:[#allocation2 + $0x8] sm:$0xff] %vm544, %v3409
        %p3412 = scmp.eq.s32.totalorder %s24, 3
        // Predicated region
        $region73: #{tpu_custom_call.1} parent=67 // pred_check
          %p3413 = pneg %p3412
        $region74: #{tpu_custom_call.1} parent=67 // pred_check_branch
          %3415 = sbr.rel (%p3413) target = $region76
        $region75: #{tpu_custom_call.1} parent=67 // pred_region
          %v3416 = vld [vmem:[%s9] sm:$0x3]
          %v3418 = vsel %vm651, %v3416, 0
          %3420 = vmatprep.subr.mxu0 0.0
          %3421 = vmatpush1.msra.mxu0 %v3408
          %3422 = vmatprep.subr.mxu0 0.0
          %3423 = vmatpush1.msra.mxu0 %v3409
          %3424 = vmatprep.subr.mxu0 0.0
          %3425 = vmatpush1.msra.mxu0 0.0
          %3426 = vmatprep.subr.mxu0 0.0
          %3427 = vmatpush1.msra.mxu0 0.0
          %3428 = vmatprep.subr.mxu0 0.0
          %3429 = vmatpush1.msra.mxu0 0.0
          %3430 = vmatprep.subr.mxu0 0.0
          %3431 = vmatpush1.msra.mxu0 0.0
          %3432 = vmatprep.subr.mxu0 0.0
          %3433 = vmatpush1.msra.mxu0 0.0
          %3434 = vmatprep.subr.mxu0 0.0
          %3435 = vmatpush1.msra.mxu0 0.0
          %3436 = vmatprep.subr.mxu0 0.0
          %3437 = vmatpush1.msra.mxu0 0.0
          %3438 = vmatprep.subr.mxu0 0.0
          %3439 = vmatpush1.msra.mxu0 0.0
          %3440 = vmatprep.subr.mxu0 0.0
          %3441 = vmatpush1.msra.mxu0 0.0
          %3442 = vmatprep.subr.mxu0 0.0
          %3443 = vmatpush1.msra.mxu0 0.0
          %3444 = vmatprep.subr.mxu0 0.0
          %3445 = vmatpush1.msra.mxu0 0.0
          %3446 = vmatprep.subr.mxu0 0.0
          %3447 = vmatpush1.msra.mxu0 0.0
          %3448 = vmatprep.subr.mxu0 0.0
          %3449 = vmatpush1.msra.mxu0 0.0
          %3450 = vmatprep.subr.mxu0 0.0
          %3451 = vmatpush1.msra.mxu0 0.0
          %3452 = vmatprep.subr.mxu0 0.0
          %3453 = vmatpush1.msra.mxu0 0.0
          %3454 = vmatprep.subr.mxu0 0.0
          %3455 = vmatpush1.msra.mxu0 0.0
          %3456 = vmatprep.subr.mxu0 0.0
          %3457 = vmatpush1.msra.mxu0 0.0
          %3458 = vmatprep.subr.mxu0 0.0
          %3459 = vmatpush1.msra.mxu0 0.0
          %3460 = vmatprep.subr.mxu0 0.0
          %3461 = vmatpush1.msra.mxu0 0.0
          %3462 = vmatprep.subr.mxu0 0.0
          %3463 = vmatpush1.msra.mxu0 0.0
          %3464 = vmatprep.subr.mxu0 0.0
          %3465 = vmatpush1.msra.mxu0 0.0
          %3466 = vmatprep.subr.mxu0 0.0
          %3467 = vmatpush1.msra.mxu0 0.0
          %3468 = vmatprep.subr.mxu0 0.0
          %3469 = vmatpush1.msra.mxu0 0.0
          %3470 = vmatprep.subr.mxu0 0.0
          %3471 = vmatpush1.msra.mxu0 0.0
          %3472 = vmatprep.subr.mxu0 0.0
          %3473 = vmatpush1.msra.mxu0 0.0
          %3474 = vmatprep.subr.mxu0 0.0
          %3475 = vmatpush1.msra.mxu0 0.0
          %3476 = vmatprep.subr.mxu0 0.0
          %3477 = vmatpush1.msra.mxu0 0.0
          %3478 = vmatprep.subr.mxu0 0.0
          %3479 = vmatpush1.msra.mxu0 0.0
          %3480 = vmatprep.subr.mxu0 0.0
          %3481 = vmatpush1.msra.mxu0 0.0
          %3482 = vmatprep.subr.mxu0 0.0
          %3483 = vmatpush1.msra.mxu0 0.0
          %3484 = vmatprep.mubr.f32.mxu0 0.0
          %3485 = vmatmul.mubr.f32.gmra.mrb[0].mxu0 %v3418
          %v3486 = vpop.f32.mrb[0].mxu0
          %v3487 = vadd.f32 0.0, %v3486
          %v3488 = vpop.f32.mrb[0].mxu0
          %3489 = vdwg.mxu0
          %v3490 = vld [vmem:[%s10] sm:$0xff]
          %v3491 = vld [vmem:[%s10 + $0x8] sm:$0xff]
          %v3492 = vld [vmem:[%s10 + $0x10] sm:$0xff]
          %v3493 = vld [vmem:[%s10 + $0x18] sm:$0xff]
          %v3494 = vld [vmem:[%s11] sm:$0x1]
          %v3496 = vlaneseq
          %v3497 = vshrl.u32 %v3496, 7
          %v3498 = vsub.s32 0, %v3497
          %v3499 = vrot.slane %v3494, %v3498
          %v3502 = vsel %vm544, %v3487, 0
          %3504 = vmatprep.subr.mxu0 0.0
          %3505 = vmatpush1.msra.mxu0 %v3490
          %3506 = vmatprep.subr.mxu0 0.0
          %3507 = vmatpush1.msra.mxu0 %v3491
          %3508 = vmatprep.subr.mxu0 0.0
          %3509 = vmatpush1.msra.mxu0 %v3492
          %3510 = vmatprep.subr.mxu0 0.0
          %3511 = vmatpush1.msra.mxu0 %v3493
          %3512 = vmatprep.subr.mxu0 0.0
          %3513 = vmatpush1.msra.mxu0 0.0
          %3514 = vmatprep.subr.mxu0 0.0
          %3515 = vmatpush1.msra.mxu0 0.0
          %3516 = vmatprep.subr.mxu0 0.0
          %3517 = vmatpush1.msra.mxu0 0.0
          %3518 = vmatprep.subr.mxu0 0.0
          %3519 = vmatpush1.msra.mxu0 0.0
          %3520 = vmatprep.subr.mxu0 0.0
          %3521 = vmatpush1.msra.mxu0 0.0
          %3522 = vmatprep.subr.mxu0 0.0
          %3523 = vmatpush1.msra.mxu0 0.0
          %3524 = vmatprep.subr.mxu0 0.0
          %3525 = vmatpush1.msra.mxu0 0.0
          %3526 = vmatprep.subr.mxu0 0.0
          %3527 = vmatpush1.msra.mxu0 0.0
          %3528 = vmatprep.subr.mxu0 0.0
          %3529 = vmatpush1.msra.mxu0 0.0
          %3530 = vmatprep.subr.mxu0 0.0
          %3531 = vmatpush1.msra.mxu0 0.0
          %3532 = vmatprep.subr.mxu0 0.0
          %3533 = vmatpush1.msra.mxu0 0.0
          %3534 = vmatprep.subr.mxu0 0.0
          %3535 = vmatpush1.msra.mxu0 0.0
          %3536 = vmatprep.subr.mxu0 0.0
          %3537 = vmatpush1.msra.mxu0 0.0
          %3538 = vmatprep.subr.mxu0 0.0
          %3539 = vmatpush1.msra.mxu0 0.0
          %3540 = vmatprep.subr.mxu0 0.0
          %3541 = vmatpush1.msra.mxu0 0.0
          %3542 = vmatprep.subr.mxu0 0.0
          %3543 = vmatpush1.msra.mxu0 0.0
          %3544 = vmatprep.subr.mxu0 0.0
          %3545 = vmatpush1.msra.mxu0 0.0
          %3546 = vmatprep.subr.mxu0 0.0
          %3547 = vmatpush1.msra.mxu0 0.0
          %3548 = vmatprep.subr.mxu0 0.0
          %3549 = vmatpush1.msra.mxu0 0.0
          %3550 = vmatprep.subr.mxu0 0.0
          %3551 = vmatpush1.msra.mxu0 0.0
          %3552 = vmatprep.subr.mxu0 0.0
          %3553 = vmatpush1.msra.mxu0 0.0
          %3554 = vmatprep.subr.mxu0 0.0
          %3555 = vmatpush1.msra.mxu0 0.0
          %3556 = vmatprep.subr.mxu0 0.0
          %3557 = vmatpush1.msra.mxu0 0.0
          %3558 = vmatprep.subr.mxu0 0.0
          %3559 = vmatpush1.msra.mxu0 0.0
          %3560 = vmatprep.subr.mxu0 0.0
          %3561 = vmatpush1.msra.mxu0 0.0
          %3562 = vmatprep.subr.mxu0 0.0
          %3563 = vmatpush1.msra.mxu0 0.0
          %3564 = vmatprep.subr.mxu0 0.0
          %3565 = vmatpush1.msra.mxu0 0.0
          %3566 = vmatprep.subr.mxu0 0.0
          %3567 = vmatpush1.msra.mxu0 0.0
          %3568 = vmatprep.mubr.f32.mxu0 0.0
          %3569 = vmatmul.mubr.f32.gmra.mrb[0].mxu0 %v3502
          %v3570 = vpop.f32.mrb[0].mxu0
          %v3571 = vadd.f32 %v3499, %v3570
          %v3572 = vpop.f32.mrb[0].mxu0
          %3573 = vdwg.mxu0
          %vm3574 = vcmask 74752
          %3575 = vst.msk [vmem:[#allocation3] sm:$0x3] %vm3574, %v3571
        $region76: #{tpu_custom_call.1} parent=67 // pred_fallthru
          _
        // Predicated region
        $region77: #{tpu_custom_call.1} parent=67 // pred_check
          %p3576 = pneg %p324
        $region78: #{tpu_custom_call.1} parent=67 // pred_check_branch
          %3578 = sbr.rel (%p3576) target = $region80
        $region79: #{tpu_custom_call.1} parent=67 // pred_region
          %s3580 = ssub.s32 32, 32
          %3581 = vsyncadd [#allocation4], %s3580
          %s3583 = sshll.u32 [#allocation3], 4
          %s3584 = int_to_ptr.vmem [resolvable:$true] %s3583
          %3586 = dma.vmem_to_hbm [thread:$0]  %s3584, 32, %s12, [#allocation4]
        $region80: #{tpu_custom_call.1} parent=67 // pred_fallthru
          _
        // Predicated region
        $region81: #{tpu_custom_call.1} parent=67 // pred_check
          %p3587 = pneg %p324
        $region82: #{tpu_custom_call.1} parent=67 // pred_check_branch
          %3589 = sbr.rel (%p3587) target = $region84
        $region83: #{tpu_custom_call.1} parent=67 // pred_region
          %3590 = dma.done [#allocation4], 32
        $region84: #{tpu_custom_call.1} parent=67 // pred_fallthru
          _
      $region68: #{tpu_custom_call.1} parent=5 // pred_fallthru
        _
      %p3591 = scmp.le.s32.totalorder 2, %s19
      // Predicated region
      $region85: #{tpu_custom_call.1} parent=5 // pred_check
        %p3592 = pneg %p3591
      $region86: #{tpu_custom_call.1} parent=5 // pred_check_branch
        %3594 = sbr.rel (%p3592) target = $region88
      $region87: #{tpu_custom_call.1} parent=5 // pred_region
        %s3595 = ssub.s32 %s19, 2
      $region88: #{tpu_custom_call.1} parent=5 // pred_fallthru
        _
    $region6: #{tpu_custom_call.1} parent=1 // loop_footer
      %s23 = sadd.s32 1, %s19
    $region7: #{tpu_custom_call.1} parent=1 // loop_footer_branch
      %18 = sbr.rel target = $region3
    $region8: #{tpu_custom_call.1} parent=1 // loop_exit
      _
    %3596 = vsyncpa [#allocation4], 1
    %s3597 = scalar_lea.sflag [#allocation4], 1
    %3598 = vsyncpa %s3597, 1

</llo_original>
